<compile_context>
chip_gen: v7x
topology: tpu7x:2x2x1
jax: 0.10.0
libtpu: 0.0.40
codegen_flags: <defaults>
</compile_context>

<pallas_src>
import functools

import jax
import jax.numpy as jnp
import numpy as np
from jax.experimental import pallas as pl
from jax.experimental.pallas import tpu as pltpu

EPS = 1e-8


def _l2norm(x, axis=-1):
    # torch: x / (sqrt(sum(x^2)) + eps); rsqrt keeps the divide on the EUP.
    return x * jax.lax.rsqrt(jnp.sum(x * x, axis=axis, keepdims=True) + EPS)


def _dot_t(x, w):
    # x @ w.T with f32 accumulation (contract minor dims, no transpose copy).
    return jax.lax.dot_general(x, w, (((x.ndim - 1,), (1,)), ((), ())),
                               preferred_element_type=jnp.float32)


def _caption_tile_sim(raw_scores, q, n_word, img_b, wt, bt, wk, bk,
                      wq, bq, wv, bv, we, be, smooth):
    """raw_scores: (N*R, W) f32 pre-activation attention scores (this caption);
    q: (W, D) f32 padded caption words; n_word: valid word count (int32);
    img_b: (N, R, D) bf16 image regions.  Returns (N,) similarities."""
    n, r, d = img_b.shape
    w = q.shape[0]
    s_dim = wt.shape[0]

    nw_f = n_word.astype(jnp.float32)
    inv_nw = 1.0 / nw_f                                               # scalar, exact
    wmask_row = jax.lax.broadcasted_iota(jnp.int32, (1, w), 1) < n_word   # (1, W)
    wmask_col = (jax.lax.broadcasted_iota(jnp.int32, (w, 1), 0)
                 < n_word).astype(jnp.float32)                        # (W, 1)

    # ---------------- cross_attention (t2i) ----------------------------------
    scores = raw_scores.reshape(n, r, w)                 # leading split only (free)
    scores = jnp.where(scores >= 0, scores, 0.1 * scores)             # LeakyReLU(0.1)
    scores = scores * wmask_row.astype(jnp.float32)[None]             # drop padded words
    scores = _l2norm(scores, axis=-1)                                 # l2norm over words
    attn = jnp.swapaxes(scores, 1, 2)                                 # (N, W, R) minor swap
    a = attn * smooth
    a = a - jnp.max(a, axis=2, keepdims=True)
    ea = jnp.exp(a)
    attn = ea * pl.reciprocal(jnp.sum(ea, axis=2, keepdims=True), approx=True)
    wcontext = jnp.einsum('nwr,nrd->nwd', attn.astype(jnp.bfloat16), img_b,
                          preferred_element_type=jnp.float32)         # (N, W, D)
    wcontext = _l2norm(wcontext, axis=-1)

    # ---------------- Alignment_vector ---------------------------------------
    sim_rep = (q[None] - wcontext) ** 2                               # (N, W, D) f32
    sim_rep = _dot_t(sim_rep.reshape(n * w, d).astype(jnp.bfloat16), wt)
    sim_mid = _l2norm(sim_rep.reshape(n, w, s_dim) + bt, axis=-1)     # (N, W, S)

    # masked mean over valid words
    sim_hig = jnp.sum(sim_mid * wmask_col[None], axis=1) * inv_nw     # (N, S)

    # ---------------- Aggregation_regulator (eval: dropout = identity) -------
    mid_k = jnp.tanh(_dot_t(sim_mid.reshape(n * w, s_dim).astype(jnp.bfloat16),
                            wk).reshape(n, w, s_dim) + bk)            # (N, W, S)
    hig_q = jnp.tanh(_dot_t(sim_hig.astype(jnp.bfloat16), wq) + bq)   # (N, S)
    weights = mid_k * hig_q[:, None, :]                               # (N, W, S)
    # Linear(S, 1) as broadcast-mul + lane reduction (no width-1 matmul)
    v = jnp.sum(weights * wv[:, None, :], axis=-1) + bv[0, 0]         # (N, W)
    v = jnp.where(wmask_row, v, -1e30)                                # mask padded words
    v = v - jnp.max(v, axis=1, keepdims=True)
    ev = jnp.exp(v) * wmask_row.astype(jnp.float32)
    wsm = ev * pl.reciprocal(jnp.sum(ev, axis=1, keepdims=True), approx=True)
    new_hig = _l2norm(jnp.sum(wsm[:, :, None] * sim_mid, axis=1))     # (N, S)

    # ---------------- sim_eval_w + sigmoid ------------------------------------
    logit = jnp.sum(new_hig * we, axis=-1) + be[0, 0]                 # (N,)
    return 1.0 / (1.0 + jnp.exp(-logit))


def _encoder_sim_kernel(smooth, c_blk, lens_ref, cap_ref, img_ref,
                        matrix_ref, wt_ref, bt_ref, wk_ref, bk_ref,
                        wq_ref, bq_ref, wv_ref, bv_ref, we_ref, be_ref,
                        out_ref):
    cb = pl.program_id(1)                       # caption-block index (inner axis)
    img_b = img_ref[...]                        # (N, R, D) bf16, resident across cb
    n, r, d = img_b.shape
    cap = cap_ref[...]                          # (C, W, D) f32
    c, w, _ = cap.shape
    matrix = matrix_ref[...]                    # (1, D) f32 (torch.ones in forward)

    # One flat MXU matmul for every caption in this block:
    #   (N*R, D) @ (D, C*W), bf16 inputs, f32 accumulation, full-K contraction.
    qm = (cap * matrix[None]).astype(jnp.bfloat16).reshape(c * w, d)
    scores_all = _dot_t(img_b.reshape(n * r, d), qm)   # (N*R, C*W) f32

    rows = []
    for j in range(c_blk):                      # static small loop over captions
        n_word = jnp.maximum(lens_ref[cb * c_blk + j], 1)
        sims = _caption_tile_sim(
            scores_all[:, j * w:(j + 1) * w], cap[j], n_word, img_b,
            wt_ref[...], bt_ref[...], wk_ref[...], bk_ref[...],
            wq_ref[...], bq_ref[...], wv_ref[...], bv_ref[...],
            we_ref[...], be_ref[...], smooth)                         # (N,)
        rows.append(sims[None, :])
    # lane-dense (1, 1, C, N) block; each grid step owns a distinct block.
    out_ref[...] = jnp.concatenate(rows, axis=0)[None, None]


_PARAM_ORDER = ('matrix', 'wt', 'bt', 'wk', 'bk', 'wq', 'bq',
                'wv', 'bv', 'we', 'be')
_BF16_PARAMS = ('wt', 'wk', 'wq')               # MXU weight matrices streamed bf16


def encoder_similarity_forward(img_emb, cap_emb, cap_lens, params, smooth,
                               tile_n=None, c_blk=None):
    """Mirrors EncoderSimilarity.forward (attn_type='t2i', self_regulator=
    'only_rar', rar_step=1).  Returns (n_image, n_caption) float32."""
    n_image, n_regions, embed_dim = img_emb.shape
    n_caption, max_words, _ = cap_emb.shape
    sim_dim = params['wt'].shape[0]

    # tile_n is generation specific: at production dims (D~1k, R~36) keep <=64
    # on v7x (64 MiB VMEM); v5e/v6e (128 MiB) can use 128+ with a larger
    # vmem_limit_bytes.
    if tile_n is None:
        tile_n = min(n_image, 64)
    if c_blk is None:
        c_blk = min(n_caption, 4)

    pad_n = (-n_image) % tile_n
    if pad_n:
        img_emb = jnp.concatenate(
            [img_emb, jnp.zeros((pad_n, n_regions, embed_dim), img_emb.dtype)], 0)
    n_img_pad = n_image + pad_n
    n_tiles = n_img_pad // tile_n

    cap_lens = jnp.asarray(cap_lens, dtype=jnp.int32)
    pad_c = (-n_caption) % c_blk
    if pad_c:
        cap_emb = jnp.concatenate(
            [cap_emb, jnp.zeros((pad_c, max_words, embed_dim), cap_emb.dtype)], 0)
        cap_lens = jnp.concatenate(
            [cap_lens, jnp.ones((pad_c,), jnp.int32)], 0)   # len>=1: no 0-divide
    n_cap_pad = n_caption + pad_c
    n_cblocks = n_cap_pad // c_blk

    # Stream the big image operand + MXU weights as bf16 (halves DMA bytes and
    # the double-buffered VMEM footprint; kernel accumulates in f32).
    img_bf = img_emb.astype(jnp.bfloat16)
    param_args = tuple(
        params[k].astype(jnp.bfloat16) if k in _BF16_PARAMS else params[k]
        for k in _PARAM_ORDER)

    def _const(i, c, lens):                     # weights stay VMEM-resident
        return (0, 0)

    in_specs = [
        pl.BlockSpec((c_blk, max_words, embed_dim), lambda i, c, lens: (c, 0, 0)),
        pl.BlockSpec((tile_n, n_regions, embed_dim), lambda i, c, lens: (i, 0, 0)),
    ] + [pl.BlockSpec(p.shape, _const) for p in param_args]

    out_specs = pl.BlockSpec((1, 1, c_blk, tile_n),
                             lambda i, c, lens: (i, c, 0, 0))

    n_steps = n_tiles * n_cblocks
    flops_cap = (4 * tile_n * n_regions * embed_dim * max_words
                 + 2 * tile_n * max_words * embed_dim * sim_dim
                 + 2 * tile_n * max_words * sim_dim * sim_dim)
    cost = pl.CostEstimate(
        flops=int(n_steps * c_blk * flops_cap),
        transcendentals=int(n_steps * c_blk * tile_n * max_words
                            * (n_regions + 2 * sim_dim + 2)),
        bytes_accessed=int(2 * n_img_pad * n_regions * embed_dim
                           + 4 * n_tiles * n_cap_pad * max_words * embed_dim
                           + 4 * n_img_pad * n_cap_pad),
    )

    grid_spec = pltpu.PrefetchScalarGridSpec(
        num_scalar_prefetch=1,
        # image-tile axis OUTER: each image tile is fetched once and reused
        # across every caption block (caption block is the small/cheap DMA).
        grid=(n_tiles, n_cblocks),
        in_specs=in_specs,
        out_specs=out_specs,
    )

    out = pl.pallas_call(
        functools.partial(_encoder_sim_kernel, float(smooth), int(c_blk)),
        grid_spec=grid_spec,
        out_shape=jax.ShapeDtypeStruct((n_tiles, n_cblocks, c_blk, tile_n),
                                       jnp.float32),
        compiler_params=pltpu.CompilerParams(
            dimension_semantics=("parallel", "arbitrary"),
            # safe on every generation incl. v7x (64 MiB physical VMEM);
            # v5e/v6e can raise this toward ~96 MiB together with larger tile_n.
            vmem_limit_bytes=48 * 1024 * 1024,
        ),
        cost_estimate=cost,
    )(cap_lens, cap_emb, img_bf, *param_args)

    # out[i, cb, c, n] = sim(image i*tile_n + n, caption cb*c_blk + c)
    sims = out.transpose(0, 3, 1, 2).reshape(n_img_pad, n_cap_pad)
    return sims[:n_image, :n_caption]


# ----------------------- pure-JAX reference (mirrors the torch loop) ---------
def _reference_caption_sim(q, img, p, smooth):
    """q: (nw, D) caption sliced to its true length (as the torch loop does)."""
    qm = (q * p['matrix']).astype(jnp.bfloat16)
    img_b = img.astype(jnp.bfloat16)
    attn = jnp.einsum('nrd,wd->nrw', img_b, qm,
                      preferred_element_type=jnp.float32)
    attn = jnp.where(attn >= 0, attn, 0.1 * attn)
    attn = _l2norm(attn, axis=-1)
    attn = jnp.swapaxes(attn, 1, 2)                                  # (n, nw, r)
    attn = jax.nn.softmax(attn * smooth, axis=2)
    wcontext = jnp.einsum('nwr,nrd->nwd', attn.astype(jnp.bfloat16), img_b,
                          preferred_element_type=jnp.float32)
    wcontext = _l2norm(wcontext, axis=-1)
    sim_rep = (q[None] - wcontext) ** 2
    sim_rep = jnp.einsum('nwd,sd->nws', sim_rep.astype(jnp.bfloat16),
                         p['wt'].astype(jnp.bfloat16),
                         preferred_element_type=jnp.float32)
    sim_mid = _l2norm(sim_rep + p['bt'], axis=-1)
    sim_hig = jnp.mean(sim_mid, axis=1)
    mid_k = jnp.tanh(jnp.einsum('nws,ts->nwt', sim_mid, p['wk'],
                                preferred_element_type=jnp.float32) + p['bk'])
    hig_q = jnp.tanh(jnp.einsum('ns,ts->nt', sim_hig, p['wq'],
                                preferred_element_type=jnp.float32) + p['bq'])
    weights = mid_k * hig_q[:, None, :]
    v = jnp.einsum('nws,os->nwo', weights, p['wv'],
                   preferred_element_type=jnp.float32)[..., 0] + p['bv'][0, 0]
    wsm = jax.nn.softmax(v, axis=1)
    new_hig = _l2norm(jnp.sum(wsm[:, :, None] * sim_mid, axis=1), axis=-1)
    logit = jnp.einsum('ns,os->no', new_hig, p['we'],
                       preferred_element_type=jnp.float32)[:, 0] + p['be'][0, 0]
    return jax.nn.sigmoid(logit)                                     # (n_image,)


def _xavier_uniform(key, out_f, in_f):
    r = np.sqrt(6.0) / np.sqrt(in_f + out_f)
    return jax.random.uniform(key, (out_f, in_f), jnp.float32, -r, r)


def init_params(key, embed_dim, sim_dim):
    ks = jax.random.split(key, 5)
    return {
        'matrix': jnp.ones((1, embed_dim), jnp.float32),   # torch.ones in forward
        # Alignment_vector.sim_transform_w : Linear(embed_dim, sim_dim)
        'wt': _xavier_uniform(ks[0], sim_dim, embed_dim),
        'bt': jnp.zeros((1, sim_dim), jnp.float32),
        # Aggregation_regulator rar_k_w / rar_q_w : Linear(sim_dim, sim_dim)
        'wk': _xavier_uniform(ks[1], sim_dim, sim_dim),
        'bk': jnp.zeros((1, sim_dim), jnp.float32),
        'wq': _xavier_uniform(ks[2], sim_dim, sim_dim),
        'bq': jnp.zeros((1, sim_dim), jnp.float32),
        # Aggregation_regulator rar_v_w : Linear(sim_dim, 1)
        'wv': _xavier_uniform(ks[3], 1, sim_dim),
        'bv': jnp.zeros((1, 1), jnp.float32),
        # sim_eval_w : Linear(sim_dim, 1)
        'we': _xavier_uniform(ks[4], 1, sim_dim),
        'be': jnp.zeros((1, 1), jnp.float32),
    }


if __name__ == "__main__":
    embed_dim, sim_dim = 32, 16
    n_image, n_regions = 16, 16
    n_caption, max_words = 4, 8
    smooth = 9.0                                  # opt.t2i_smooth

    key = jax.random.PRNGKey(0)
    k_img, k_cap, k_par = jax.random.split(key, 3)
    img_emb = jax.random.normal(k_img, (n_image, n_regions, embed_dim), jnp.float32)
    cap_emb = jax.random.normal(k_cap, (n_caption, max_words, embed_dim), jnp.float32)
    cap_lens = np.array([8, 5, 6, 7], dtype=np.int32)
    params = init_params(k_par, embed_dim, sim_dim)

    sims = encoder_similarity_forward(img_emb, cap_emb, cap_lens, params,
                                      smooth, tile_n=8, c_blk=2)
    sims = jax.block_until_ready(sims)

    # reference: per-caption length slicing, exactly like the torch loop
    ref_cols = []
    for i in range(n_caption):
        nw = int(cap_lens[i])
        ref_cols.append(_reference_caption_sim(cap_emb[i, :nw, :], img_emb,
                                               params, smooth))
    ref = jnp.stack(ref_cols, axis=1)             # (n_image, n_caption)

    assert sims.shape == (n_image, n_caption), sims.shape
    # 5e-3 tolerance: kernel runs the regulator matmuls in bf16 and softmax
    # denominators through the approximate EUP reciprocal, while the reference
    # keeps those stages in f32 (torch-faithful).
    err = float(jnp.max(jnp.abs(sims - ref)))
    assert err < 5e-3, f"mismatch vs reference: max abs err = {err}"
    print("KERNEL_OK")
</pallas_src>

<mosaic_0001>
module attributes {stable_mosaic.version = 11 : i64} {
  func.func @_encoder_sim_kernel(%arg0: i32, %arg1: i32, %arg2: memref<4xi32, #tpu.memory_space<smem>>, %arg3: memref<2x8x32xf32, #tpu.memory_space<vmem>>, %arg4: memref<8x16x32xbf16, #tpu.memory_space<vmem>>, %arg5: memref<1x32xf32, #tpu.memory_space<vmem>>, %arg6: memref<16x32xbf16, #tpu.memory_space<vmem>>, %arg7: memref<1x16xf32, #tpu.memory_space<vmem>>, %arg8: memref<16x16xbf16, #tpu.memory_space<vmem>>, %arg9: memref<1x16xf32, #tpu.memory_space<vmem>>, %arg10: memref<16x16xbf16, #tpu.memory_space<vmem>>, %arg11: memref<1x16xf32, #tpu.memory_space<vmem>>, %arg12: memref<1x16xf32, #tpu.memory_space<vmem>>, %arg13: memref<1x1xf32, #tpu.memory_space<vmem>>, %arg14: memref<1x16xf32, #tpu.memory_space<vmem>>, %arg15: memref<1x1xf32, #tpu.memory_space<vmem>>, %arg16: memref<1x1x2x8xf32, #tpu.memory_space<vmem>>) attributes {dimension_semantics = [#tpu.dimension_semantics<parallel>, #tpu.dimension_semantics<arbitrary>], iteration_bounds = array<i64: 2, 2>, scalar_prefetch = 1 : i64, scratch_operands = 0 : i64, tpu.core_type = #tpu.core_type<tc>, window_params = [{transform_indices = @transform_0, window_bounds = array<i64: 2, 8, 32>}, {transform_indices = @transform_1, window_bounds = array<i64: 8, 16, 32>}, {pipeline_mode = #tpu.pipeline_mode<synchronous>, transform_indices = @transform_2, window_bounds = array<i64: 1, 32>}, {pipeline_mode = #tpu.pipeline_mode<synchronous>, transform_indices = @transform_3, window_bounds = array<i64: 16, 32>}, {pipeline_mode = #tpu.pipeline_mode<synchronous>, transform_indices = @transform_4, window_bounds = array<i64: 1, 16>}, {pipeline_mode = #tpu.pipeline_mode<synchronous>, transform_indices = @transform_5, window_bounds = array<i64: 16, 16>}, {pipeline_mode = #tpu.pipeline_mode<synchronous>, transform_indices = @transform_6, window_bounds = array<i64: 1, 16>}, {pipeline_mode = #tpu.pipeline_mode<synchronous>, transform_indices = @transform_7, window_bounds = array<i64: 16, 16>}, {pipeline_mode = #tpu.pipeline_mode<synchronous>, transform_indices = @transform_8, window_bounds = array<i64: 1, 16>}, {pipeline_mode = #tpu.pipeline_mode<synchronous>, transform_indices = @transform_9, window_bounds = array<i64: 1, 16>}, {pipeline_mode = #tpu.pipeline_mode<synchronous>, transform_indices = @transform_10, window_bounds = array<i64: 1, 1>}, {pipeline_mode = #tpu.pipeline_mode<synchronous>, transform_indices = @transform_11, window_bounds = array<i64: 1, 16>}, {pipeline_mode = #tpu.pipeline_mode<synchronous>, transform_indices = @transform_12, window_bounds = array<i64: 1, 1>}, {transform_indices = @transform_13, window_bounds = array<i64: 1, 1, 2, 8>}]} {
    %c0 = arith.constant 0 : index
    %c0_0 = arith.constant 0 : index
    %c0_1 = arith.constant 0 : index
    %0 = vector.load %arg4[%c0, %c0_0, %c0_1] : memref<8x16x32xbf16, #tpu.memory_space<vmem>>, vector<8x16x32xbf16>
    %c0_2 = arith.constant 0 : index
    %c0_3 = arith.constant 0 : index
    %c0_4 = arith.constant 0 : index
    %1 = vector.load %arg3[%c0_2, %c0_3, %c0_4] : memref<2x8x32xf32, #tpu.memory_space<vmem>>, vector<2x8x32xf32>
    %c0_5 = arith.constant 0 : index
    %c0_6 = arith.constant 0 : index
    %2 = vector.load %arg5[%c0_5, %c0_6] : memref<1x32xf32, #tpu.memory_space<vmem>>, vector<1x32xf32>
    %3 = vector.shape_cast %2 : vector<1x32xf32> to vector<1x1x32xf32>
    %4 = vector.broadcast %3 : vector<1x1x32xf32> to vector<2x8x32xf32>
    %5 = arith.mulf %1, %4 : vector<2x8x32xf32>
    %6 = arith.truncf %5 : vector<2x8x32xf32> to vector<2x8x32xbf16>
    %7 = vector.shape_cast %6 : vector<2x8x32xbf16> to vector<16x32xbf16>
    %8 = vector.shape_cast %0 : vector<8x16x32xbf16> to vector<128x32xbf16>
    %cst = arith.constant dense<0.000000e+00> : vector<128x16xf32>
    %9 = tpu.matmul %8, %7, %cst {dimension_numbers = #tpu.dot_dimension_numbers<[1], [1], [0], [0], [0, 0, 1, 0], [], []>} : vector<128x32xbf16>, vector<16x32xbf16>, vector<128x16xf32> -> vector<128x16xf32>
    %c2_i32 = arith.constant 2 : i32
    %10 = arith.muli %arg1, %c2_i32 : i32
    %c0_i32 = arith.constant 0 : i32
    %11 = arith.addi %10, %c0_i32 : i32
    %12 = arith.index_cast %11 : i32 to index
    %13 = memref.load %arg2[%12] : memref<4xi32, #tpu.memory_space<smem>>
    %c1_i32 = arith.constant 1 : i32
    %14 = arith.maxsi %13, %c1_i32 : i32
    %15 = vector.extract_strided_slice %9 {offsets = [0, 0], sizes = [128, 8], strides = [1, 1]} : vector<128x16xf32> to vector<128x8xf32>
    %16 = vector.extract_strided_slice %1 {offsets = [0, 0, 0], sizes = [1, 8, 32], strides = [1, 1, 1]} : vector<2x8x32xf32> to vector<1x8x32xf32>
    %17 = vector.shape_cast %16 : vector<1x8x32xf32> to vector<8x32xf32>
    %c0_7 = arith.constant 0 : index
    %c0_8 = arith.constant 0 : index
    %18 = vector.load %arg6[%c0_7, %c0_8] : memref<16x32xbf16, #tpu.memory_space<vmem>>, vector<16x32xbf16>
    %c0_9 = arith.constant 0 : index
    %c0_10 = arith.constant 0 : index
    %19 = vector.load %arg7[%c0_9, %c0_10] : memref<1x16xf32, #tpu.memory_space<vmem>>, vector<1x16xf32>
    %c0_11 = arith.constant 0 : index
    %c0_12 = arith.constant 0 : index
    %20 = vector.load %arg8[%c0_11, %c0_12] : memref<16x16xbf16, #tpu.memory_space<vmem>>, vector<16x16xbf16>
    %c0_13 = arith.constant 0 : index
    %c0_14 = arith.constant 0 : index
    %21 = vector.load %arg9[%c0_13, %c0_14] : memref<1x16xf32, #tpu.memory_space<vmem>>, vector<1x16xf32>
    %c0_15 = arith.constant 0 : index
    %c0_16 = arith.constant 0 : index
    %22 = vector.load %arg10[%c0_15, %c0_16] : memref<16x16xbf16, #tpu.memory_space<vmem>>, vector<16x16xbf16>
    %c0_17 = arith.constant 0 : index
    %c0_18 = arith.constant 0 : index
    %23 = vector.load %arg11[%c0_17, %c0_18] : memref<1x16xf32, #tpu.memory_space<vmem>>, vector<1x16xf32>
    %c0_19 = arith.constant 0 : index
    %c0_20 = arith.constant 0 : index
    %24 = vector.load %arg12[%c0_19, %c0_20] : memref<1x16xf32, #tpu.memory_space<vmem>>, vector<1x16xf32>
    %c0_21 = arith.constant 0 : index
    %c0_22 = arith.constant 0 : index
    %25 = vector.load %arg13[%c0_21, %c0_22] : memref<1x1xf32, #tpu.memory_space<vmem>>, vector<1x1xf32>
    %c0_23 = arith.constant 0 : index
    %c0_24 = arith.constant 0 : index
    %26 = vector.load %arg14[%c0_23, %c0_24] : memref<1x16xf32, #tpu.memory_space<vmem>>, vector<1x16xf32>
    %c0_25 = arith.constant 0 : index
    %c0_26 = arith.constant 0 : index
    %27 = vector.load %arg15[%c0_25, %c0_26] : memref<1x1xf32, #tpu.memory_space<vmem>>, vector<1x1xf32>
    %28 = arith.sitofp %14 : i32 to f32
    %cst_27 = arith.constant 1.000000e+00 : f32
    %29 = arith.divf %cst_27, %28 : f32
    %30 = tpu.iota {dimensions = array<i32: 1>} : vector<1x8xi32>
    %31 = vector.broadcast %14 : i32 to vector<1x8xi32>
    %32 = arith.cmpi slt, %30, %31 : vector<1x8xi32>
    %33 = tpu.iota {dimensions = array<i32: 0>} : vector<8x1xi32>
    %34 = vector.broadcast %14 : i32 to vector<8x1xi32>
    %35 = arith.cmpi slt, %33, %34 : vector<8x1xi32>
    %36 = arith.extui %35 : vector<8x1xi1> to vector<8x1xi32>
    %37 = arith.sitofp %36 : vector<8x1xi32> to vector<8x1xf32>
    %38 = vector.shape_cast %15 : vector<128x8xf32> to vector<8x16x8xf32>
    %cst_28 = arith.constant 0.000000e+00 : f32
    %39 = vector.broadcast %cst_28 : f32 to vector<8x16x8xf32>
    %40 = arith.cmpf oge, %38, %39 : vector<8x16x8xf32>
    %cst_29 = arith.constant 1.000000e-01 : f32
    %41 = vector.broadcast %cst_29 : f32 to vector<8x16x8xf32>
    %42 = arith.mulf %41, %38 : vector<8x16x8xf32>
    %43 = arith.select %40, %38, %42 : vector<8x16x8xi1>, vector<8x16x8xf32>
    %44 = arith.extui %32 : vector<1x8xi1> to vector<1x8xi32>
    %45 = arith.sitofp %44 : vector<1x8xi32> to vector<1x8xf32>
    %46 = vector.shape_cast %45 : vector<1x8xf32> to vector<1x1x8xf32>
    %47 = vector.broadcast %46 : vector<1x1x8xf32> to vector<8x16x8xf32>
    %48 = arith.mulf %43, %47 : vector<8x16x8xf32>
    %49 = arith.mulf %48, %48 : vector<8x16x8xf32>
    %cst_30 = arith.constant dense<0.000000e+00> : vector<8x16xf32>
    %50 = vector.multi_reduction <add>, %49, %cst_30 [2] : vector<8x16x8xf32> to vector<8x16xf32>
    %51 = vector.shape_cast %50 : vector<8x16xf32> to vector<8x16x1xf32>
    %cst_31 = arith.constant 9.99999993E-9 : f32
    %52 = vector.broadcast %cst_31 : f32 to vector<8x16x1xf32>
    %53 = arith.addf %51, %52 : vector<8x16x1xf32>
    %54 = math.rsqrt %53 : vector<8x16x1xf32>
    %55 = vector.broadcast %54 : vector<8x16x1xf32> to vector<8x16x8xf32>
    %56 = arith.mulf %48, %55 : vector<8x16x8xf32>
    %57 = tpu.transpose %56, [0, 2, 1] : vector<8x16x8xf32> -> vector<8x8x16xf32>
    %cst_32 = arith.constant 9.000000e+00 : f32
    %58 = vector.broadcast %cst_32 : f32 to vector<8x8x16xf32>
    %59 = arith.mulf %57, %58 : vector<8x8x16xf32>
    %cst_33 = arith.constant dense<0xFF800000> : vector<8x8xf32>
    %60 = vector.multi_reduction <maximumf>, %59, %cst_33 [2] : vector<8x8x16xf32> to vector<8x8xf32>
    %61 = vector.shape_cast %60 : vector<8x8xf32> to vector<8x8x1xf32>
    %62 = vector.broadcast %61 : vector<8x8x1xf32> to vector<8x8x16xf32>
    %63 = arith.subf %59, %62 : vector<8x8x16xf32>
    %64 = math.exp %63 : vector<8x8x16xf32>
    %cst_34 = arith.constant dense<0.000000e+00> : vector<8x8xf32>
    %65 = vector.multi_reduction <add>, %64, %cst_34 [2] : vector<8x8x16xf32> to vector<8x8xf32>
    %66 = vector.shape_cast %65 : vector<8x8xf32> to vector<8x8x1xf32>
    %67 = tpu.reciprocal %66 {approx = true} : vector<8x8x1xf32> -> vector<8x8x1xf32>
    %68 = vector.broadcast %67 : vector<8x8x1xf32> to vector<8x8x16xf32>
    %69 = arith.mulf %64, %68 : vector<8x8x16xf32>
    %70 = arith.truncf %69 : vector<8x8x16xf32> to vector<8x8x16xbf16>
    "tpu.trace_start"() <{level = 10 : i32, message = "nwr,nrd->nwd"}> : () -> ()
    %cst_35 = arith.constant dense<0.000000e+00> : vector<8x8x32xf32>
    %71 = tpu.matmul %70, %0, %cst_35 {dimension_numbers = #tpu.dot_dimension_numbers<[2], [1], [1], [2], [0, 0, 0, 1, 1, 2], [0], [0]>} : vector<8x8x16xbf16>, vector<8x16x32xbf16>, vector<8x8x32xf32> -> vector<8x8x32xf32>
    "tpu.trace_stop"() : () -> ()
    %72 = arith.mulf %71, %71 : vector<8x8x32xf32>
    %cst_36 = arith.constant dense<0.000000e+00> : vector<8x8xf32>
    %73 = vector.multi_reduction <add>, %72, %cst_36 [2] : vector<8x8x32xf32> to vector<8x8xf32>
    %74 = vector.shape_cast %73 : vector<8x8xf32> to vector<8x8x1xf32>
    %cst_37 = arith.constant 9.99999993E-9 : f32
    %75 = vector.broadcast %cst_37 : f32 to vector<8x8x1xf32>
    %76 = arith.addf %74, %75 : vector<8x8x1xf32>
    %77 = math.rsqrt %76 : vector<8x8x1xf32>
    %78 = vector.broadcast %77 : vector<8x8x1xf32> to vector<8x8x32xf32>
    %79 = arith.mulf %71, %78 : vector<8x8x32xf32>
    %80 = vector.shape_cast %17 : vector<8x32xf32> to vector<1x8x32xf32>
    %81 = vector.broadcast %80 : vector<1x8x32xf32> to vector<8x8x32xf32>
    %82 = arith.subf %81, %79 : vector<8x8x32xf32>
    %83 = arith.mulf %82, %82 : vector<8x8x32xf32>
    %84 = vector.shape_cast %83 : vector<8x8x32xf32> to vector<64x32xf32>
    %85 = arith.truncf %84 : vector<64x32xf32> to vector<64x32xbf16>
    %cst_38 = arith.constant dense<0.000000e+00> : vector<64x16xf32>
    %86 = tpu.matmul %85, %18, %cst_38 {dimension_numbers = #tpu.dot_dimension_numbers<[1], [1], [0], [0], [0, 0, 1, 0], [], []>} : vector<64x32xbf16>, vector<16x32xbf16>, vector<64x16xf32> -> vector<64x16xf32>
    %87 = vector.shape_cast %86 : vector<64x16xf32> to vector<8x8x16xf32>
    %88 = vector.shape_cast %19 : vector<1x16xf32> to vector<1x1x16xf32>
    %89 = vector.broadcast %88 : vector<1x1x16xf32> to vector<8x8x16xf32>
    %90 = arith.addf %87, %89 : vector<8x8x16xf32>
    %91 = arith.mulf %90, %90 : vector<8x8x16xf32>
    %cst_39 = arith.constant dense<0.000000e+00> : vector<8x8xf32>
    %92 = vector.multi_reduction <add>, %91, %cst_39 [2] : vector<8x8x16xf32> to vector<8x8xf32>
    %93 = vector.shape_cast %92 : vector<8x8xf32> to vector<8x8x1xf32>
    %cst_40 = arith.constant 9.99999993E-9 : f32
    %94 = vector.broadcast %cst_40 : f32 to vector<8x8x1xf32>
    %95 = arith.addf %93, %94 : vector<8x8x1xf32>
    %96 = math.rsqrt %95 : vector<8x8x1xf32>
    %97 = vector.broadcast %96 : vector<8x8x1xf32> to vector<8x8x16xf32>
    %98 = arith.mulf %90, %97 : vector<8x8x16xf32>
    %99 = vector.shape_cast %37 : vector<8x1xf32> to vector<1x8x1xf32>
    %100 = vector.broadcast %99 : vector<1x8x1xf32> to vector<8x8x16xf32>
    %101 = arith.mulf %98, %100 : vector<8x8x16xf32>
    %cst_41 = arith.constant dense<0.000000e+00> : vector<8x16xf32>
    %102 = vector.multi_reduction <add>, %101, %cst_41 [1] : vector<8x8x16xf32> to vector<8x16xf32>
    %103 = vector.broadcast %29 : f32 to vector<8x16xf32>
    %104 = arith.mulf %102, %103 : vector<8x16xf32>
    %105 = vector.shape_cast %98 : vector<8x8x16xf32> to vector<64x16xf32>
    %106 = arith.truncf %105 : vector<64x16xf32> to vector<64x16xbf16>
    %cst_42 = arith.constant dense<0.000000e+00> : vector<64x16xf32>
    %107 = tpu.matmul %106, %20, %cst_42 {dimension_numbers = #tpu.dot_dimension_numbers<[1], [1], [0], [0], [0, 0, 1, 0], [], []>} : vector<64x16xbf16>, vector<16x16xbf16>, vector<64x16xf32> -> vector<64x16xf32>
    %108 = vector.shape_cast %107 : vector<64x16xf32> to vector<8x8x16xf32>
    %109 = vector.shape_cast %21 : vector<1x16xf32> to vector<1x1x16xf32>
    %110 = vector.broadcast %109 : vector<1x1x16xf32> to vector<8x8x16xf32>
    %111 = arith.addf %108, %110 : vector<8x8x16xf32>
    %112 = math.tanh %111 : vector<8x8x16xf32>
    %113 = arith.truncf %104 : vector<8x16xf32> to vector<8x16xbf16>
    %cst_43 = arith.constant dense<0.000000e+00> : vector<8x16xf32>
    %114 = tpu.matmul %113, %22, %cst_43 {dimension_numbers = #tpu.dot_dimension_numbers<[1], [1], [0], [0], [0, 0, 1, 0], [], []>} : vector<8x16xbf16>, vector<16x16xbf16>, vector<8x16xf32> -> vector<8x16xf32>
    %115 = vector.broadcast %23 : vector<1x16xf32> to vector<8x16xf32>
    %116 = arith.addf %114, %115 : vector<8x16xf32>
    %117 = math.tanh %116 : vector<8x16xf32>
    %118 = vector.shape_cast %117 : vector<8x16xf32> to vector<8x1x16xf32>
    %119 = vector.broadcast %118 : vector<8x1x16xf32> to vector<8x8x16xf32>
    %120 = arith.mulf %112, %119 : vector<8x8x16xf32>
    %121 = vector.shape_cast %24 : vector<1x16xf32> to vector<1x1x16xf32>
    %122 = vector.broadcast %121 : vector<1x1x16xf32> to vector<8x8x16xf32>
    %123 = arith.mulf %120, %122 : vector<8x8x16xf32>
    %cst_44 = arith.constant dense<0.000000e+00> : vector<8x8xf32>
    %124 = vector.multi_reduction <add>, %123, %cst_44 [2] : vector<8x8x16xf32> to vector<8x8xf32>
    %125 = vector.extract %25[0, 0] : f32 from vector<1x1xf32>
    %126 = vector.broadcast %125 : f32 to vector<8x8xf32>
    %127 = arith.addf %124, %126 : vector<8x8xf32>
    %cst_45 = arith.constant -1.000000e+30 : f32
    %128 = vector.shape_cast %32 : vector<1x8xi1> to vector<1x8xi1>
    %129 = vector.broadcast %128 : vector<1x8xi1> to vector<8x8xi1>
    %130 = vector.broadcast %cst_45 : f32 to vector<8x8xf32>
    %131 = arith.select %129, %127, %130 : vector<8x8xi1>, vector<8x8xf32>
    %cst_46 = arith.constant dense<0xFF800000> : vector<8xf32>
    %132 = vector.multi_reduction <maximumf>, %131, %cst_46 [1] : vector<8x8xf32> to vector<8xf32>
    %133 = vector.shape_cast %132 : vector<8xf32> to vector<8x1xf32>
    %134 = vector.broadcast %133 : vector<8x1xf32> to vector<8x8xf32>
    %135 = arith.subf %131, %134 : vector<8x8xf32>
    %136 = math.exp %135 : vector<8x8xf32>
    %137 = arith.extui %32 : vector<1x8xi1> to vector<1x8xi32>
    %138 = arith.sitofp %137 : vector<1x8xi32> to vector<1x8xf32>
    %139 = vector.broadcast %138 : vector<1x8xf32> to vector<8x8xf32>
    %140 = arith.mulf %136, %139 : vector<8x8xf32>
    %cst_47 = arith.constant dense<0.000000e+00> : vector<8xf32>
    %141 = vector.multi_reduction <add>, %140, %cst_47 [1] : vector<8x8xf32> to vector<8xf32>
    %142 = vector.shape_cast %141 : vector<8xf32> to vector<8x1xf32>
    %143 = tpu.reciprocal %142 {approx = true} : vector<8x1xf32> -> vector<8x1xf32>
    %144 = vector.broadcast %143 : vector<8x1xf32> to vector<8x8xf32>
    %145 = arith.mulf %140, %144 : vector<8x8xf32>
    %146 = vector.shape_cast %145 : vector<8x8xf32> to vector<8x8x1xf32>
    %147 = vector.broadcast %146 : vector<8x8x1xf32> to vector<8x8x16xf32>
    %148 = arith.mulf %147, %98 : vector<8x8x16xf32>
    %cst_48 = arith.constant dense<0.000000e+00> : vector<8x16xf32>
    %149 = vector.multi_reduction <add>, %148, %cst_48 [1] : vector<8x8x16xf32> to vector<8x16xf32>
    %150 = arith.mulf %149, %149 : vector<8x16xf32>
    %cst_49 = arith.constant dense<0.000000e+00> : vector<8xf32>
    %151 = vector.multi_reduction <add>, %150, %cst_49 [1] : vector<8x16xf32> to vector<8xf32>
    %152 = vector.shape_cast %151 : vector<8xf32> to vector<8x1xf32>
    %cst_50 = arith.constant 9.99999993E-9 : f32
    %153 = vector.broadcast %cst_50 : f32 to vector<8x1xf32>
    %154 = arith.addf %152, %153 : vector<8x1xf32>
    %155 = math.rsqrt %154 : vector<8x1xf32>
    %156 = vector.broadcast %155 : vector<8x1xf32> to vector<8x16xf32>
    %157 = arith.mulf %149, %156 : vector<8x16xf32>
    %158 = vector.broadcast %26 : vector<1x16xf32> to vector<8x16xf32>
    %159 = arith.mulf %157, %158 : vector<8x16xf32>
    %cst_51 = arith.constant dense<0.000000e+00> : vector<8xf32>
    %160 = vector.multi_reduction <add>, %159, %cst_51 [1] : vector<8x16xf32> to vector<8xf32>
    %161 = vector.extract %27[0, 0] : f32 from vector<1x1xf32>
    %162 = vector.broadcast %161 : f32 to vector<8xf32>
    %163 = arith.addf %160, %162 : vector<8xf32>
    %cst_52 = arith.constant 0.000000e+00 : f32
    %164 = vector.broadcast %cst_52 : f32 to vector<8xf32>
    %165 = arith.subf %164, %163 : vector<8xf32>
    %166 = math.exp %165 : vector<8xf32>
    %cst_53 = arith.constant 1.000000e+00 : f32
    %167 = vector.broadcast %cst_53 : f32 to vector<8xf32>
    %168 = arith.addf %167, %166 : vector<8xf32>
    %cst_54 = arith.constant 1.000000e+00 : f32
    %169 = vector.broadcast %cst_54 : f32 to vector<8xf32>
    %170 = arith.divf %169, %168 : vector<8xf32>
    %171 = vector.shape_cast %170 : vector<8xf32> to vector<1x8xf32>
    %c2_i32_55 = arith.constant 2 : i32
    %172 = arith.muli %arg1, %c2_i32_55 : i32
    %c1_i32_56 = arith.constant 1 : i32
    %173 = arith.addi %172, %c1_i32_56 : i32
    %174 = arith.index_cast %173 : i32 to index
    %175 = memref.load %arg2[%174] : memref<4xi32, #tpu.memory_space<smem>>
    %c1_i32_57 = arith.constant 1 : i32
    %176 = arith.maxsi %175, %c1_i32_57 : i32
    %177 = vector.extract_strided_slice %9 {offsets = [0, 8], sizes = [128, 8], strides = [1, 1]} : vector<128x16xf32> to vector<128x8xf32>
    %178 = vector.extract_strided_slice %1 {offsets = [1, 0, 0], sizes = [1, 8, 32], strides = [1, 1, 1]} : vector<2x8x32xf32> to vector<1x8x32xf32>
    %179 = vector.shape_cast %178 : vector<1x8x32xf32> to vector<8x32xf32>
    %c0_58 = arith.constant 0 : index
    %c0_59 = arith.constant 0 : index
    %180 = vector.load %arg6[%c0_58, %c0_59] : memref<16x32xbf16, #tpu.memory_space<vmem>>, vector<16x32xbf16>
    %c0_60 = arith.constant 0 : index
    %c0_61 = arith.constant 0 : index
    %181 = vector.load %arg7[%c0_60, %c0_61] : memref<1x16xf32, #tpu.memory_space<vmem>>, vector<1x16xf32>
    %c0_62 = arith.constant 0 : index
    %c0_63 = arith.constant 0 : index
    %182 = vector.load %arg8[%c0_62, %c0_63] : memref<16x16xbf16, #tpu.memory_space<vmem>>, vector<16x16xbf16>
    %c0_64 = arith.constant 0 : index
    %c0_65 = arith.constant 0 : index
    %183 = vector.load %arg9[%c0_64, %c0_65] : memref<1x16xf32, #tpu.memory_space<vmem>>, vector<1x16xf32>
    %c0_66 = arith.constant 0 : index
    %c0_67 = arith.constant 0 : index
    %184 = vector.load %arg10[%c0_66, %c0_67] : memref<16x16xbf16, #tpu.memory_space<vmem>>, vector<16x16xbf16>
    %c0_68 = arith.constant 0 : index
    %c0_69 = arith.constant 0 : index
    %185 = vector.load %arg11[%c0_68, %c0_69] : memref<1x16xf32, #tpu.memory_space<vmem>>, vector<1x16xf32>
    %c0_70 = arith.constant 0 : index
    %c0_71 = arith.constant 0 : index
    %186 = vector.load %arg12[%c0_70, %c0_71] : memref<1x16xf32, #tpu.memory_space<vmem>>, vector<1x16xf32>
    %c0_72 = arith.constant 0 : index
    %c0_73 = arith.constant 0 : index
    %187 = vector.load %arg13[%c0_72, %c0_73] : memref<1x1xf32, #tpu.memory_space<vmem>>, vector<1x1xf32>
    %c0_74 = arith.constant 0 : index
    %c0_75 = arith.constant 0 : index
    %188 = vector.load %arg14[%c0_74, %c0_75] : memref<1x16xf32, #tpu.memory_space<vmem>>, vector<1x16xf32>
    %c0_76 = arith.constant 0 : index
    %c0_77 = arith.constant 0 : index
    %189 = vector.load %arg15[%c0_76, %c0_77] : memref<1x1xf32, #tpu.memory_space<vmem>>, vector<1x1xf32>
    %190 = arith.sitofp %176 : i32 to f32
    %cst_78 = arith.constant 1.000000e+00 : f32
    %191 = arith.divf %cst_78, %190 : f32
    %192 = tpu.iota {dimensions = array<i32: 1>} : vector<1x8xi32>
    %193 = vector.broadcast %176 : i32 to vector<1x8xi32>
    %194 = arith.cmpi slt, %192, %193 : vector<1x8xi32>
    %195 = tpu.iota {dimensions = array<i32: 0>} : vector<8x1xi32>
    %196 = vector.broadcast %176 : i32 to vector<8x1xi32>
    %197 = arith.cmpi slt, %195, %196 : vector<8x1xi32>
    %198 = arith.extui %197 : vector<8x1xi1> to vector<8x1xi32>
    %199 = arith.sitofp %198 : vector<8x1xi32> to vector<8x1xf32>
    %200 = vector.shape_cast %177 : vector<128x8xf32> to vector<8x16x8xf32>
    %cst_79 = arith.constant 0.000000e+00 : f32
    %201 = vector.broadcast %cst_79 : f32 to vector<8x16x8xf32>
    %202 = arith.cmpf oge, %200, %201 : vector<8x16x8xf32>
    %cst_80 = arith.constant 1.000000e-01 : f32
    %203 = vector.broadcast %cst_80 : f32 to vector<8x16x8xf32>
    %204 = arith.mulf %203, %200 : vector<8x16x8xf32>
    %205 = arith.select %202, %200, %204 : vector<8x16x8xi1>, vector<8x16x8xf32>
    %206 = arith.extui %194 : vector<1x8xi1> to vector<1x8xi32>
    %207 = arith.sitofp %206 : vector<1x8xi32> to vector<1x8xf32>
    %208 = vector.shape_cast %207 : vector<1x8xf32> to vector<1x1x8xf32>
    %209 = vector.broadcast %208 : vector<1x1x8xf32> to vector<8x16x8xf32>
    %210 = arith.mulf %205, %209 : vector<8x16x8xf32>
    %211 = arith.mulf %210, %210 : vector<8x16x8xf32>
    %cst_81 = arith.constant dense<0.000000e+00> : vector<8x16xf32>
    %212 = vector.multi_reduction <add>, %211, %cst_81 [2] : vector<8x16x8xf32> to vector<8x16xf32>
    %213 = vector.shape_cast %212 : vector<8x16xf32> to vector<8x16x1xf32>
    %cst_82 = arith.constant 9.99999993E-9 : f32
    %214 = vector.broadcast %cst_82 : f32 to vector<8x16x1xf32>
    %215 = arith.addf %213, %214 : vector<8x16x1xf32>
    %216 = math.rsqrt %215 : vector<8x16x1xf32>
    %217 = vector.broadcast %216 : vector<8x16x1xf32> to vector<8x16x8xf32>
    %218 = arith.mulf %210, %217 : vector<8x16x8xf32>
    %219 = tpu.transpose %218, [0, 2, 1] : vector<8x16x8xf32> -> vector<8x8x16xf32>
    %cst_83 = arith.constant 9.000000e+00 : f32
    %220 = vector.broadcast %cst_83 : f32 to vector<8x8x16xf32>
    %221 = arith.mulf %219, %220 : vector<8x8x16xf32>
    %cst_84 = arith.constant dense<0xFF800000> : vector<8x8xf32>
    %222 = vector.multi_reduction <maximumf>, %221, %cst_84 [2] : vector<8x8x16xf32> to vector<8x8xf32>
    %223 = vector.shape_cast %222 : vector<8x8xf32> to vector<8x8x1xf32>
    %224 = vector.broadcast %223 : vector<8x8x1xf32> to vector<8x8x16xf32>
    %225 = arith.subf %221, %224 : vector<8x8x16xf32>
    %226 = math.exp %225 : vector<8x8x16xf32>
    %cst_85 = arith.constant dense<0.000000e+00> : vector<8x8xf32>
    %227 = vector.multi_reduction <add>, %226, %cst_85 [2] : vector<8x8x16xf32> to vector<8x8xf32>
    %228 = vector.shape_cast %227 : vector<8x8xf32> to vector<8x8x1xf32>
    %229 = tpu.reciprocal %228 {approx = true} : vector<8x8x1xf32> -> vector<8x8x1xf32>
    %230 = vector.broadcast %229 : vector<8x8x1xf32> to vector<8x8x16xf32>
    %231 = arith.mulf %226, %230 : vector<8x8x16xf32>
    %232 = arith.truncf %231 : vector<8x8x16xf32> to vector<8x8x16xbf16>
    "tpu.trace_start"() <{level = 10 : i32, message = "nwr,nrd->nwd"}> : () -> ()
    %cst_86 = arith.constant dense<0.000000e+00> : vector<8x8x32xf32>
    %233 = tpu.matmul %232, %0, %cst_86 {dimension_numbers = #tpu.dot_dimension_numbers<[2], [1], [1], [2], [0, 0, 0, 1, 1, 2], [0], [0]>} : vector<8x8x16xbf16>, vector<8x16x32xbf16>, vector<8x8x32xf32> -> vector<8x8x32xf32>
    "tpu.trace_stop"() : () -> ()
    %234 = arith.mulf %233, %233 : vector<8x8x32xf32>
    %cst_87 = arith.constant dense<0.000000e+00> : vector<8x8xf32>
    %235 = vector.multi_reduction <add>, %234, %cst_87 [2] : vector<8x8x32xf32> to vector<8x8xf32>
    %236 = vector.shape_cast %235 : vector<8x8xf32> to vector<8x8x1xf32>
    %cst_88 = arith.constant 9.99999993E-9 : f32
    %237 = vector.broadcast %cst_88 : f32 to vector<8x8x1xf32>
    %238 = arith.addf %236, %237 : vector<8x8x1xf32>
    %239 = math.rsqrt %238 : vector<8x8x1xf32>
    %240 = vector.broadcast %239 : vector<8x8x1xf32> to vector<8x8x32xf32>
    %241 = arith.mulf %233, %240 : vector<8x8x32xf32>
    %242 = vector.shape_cast %179 : vector<8x32xf32> to vector<1x8x32xf32>
    %243 = vector.broadcast %242 : vector<1x8x32xf32> to vector<8x8x32xf32>
    %244 = arith.subf %243, %241 : vector<8x8x32xf32>
    %245 = arith.mulf %244, %244 : vector<8x8x32xf32>
    %246 = vector.shape_cast %245 : vector<8x8x32xf32> to vector<64x32xf32>
    %247 = arith.truncf %246 : vector<64x32xf32> to vector<64x32xbf16>
    %cst_89 = arith.constant dense<0.000000e+00> : vector<64x16xf32>
    %248 = tpu.matmul %247, %180, %cst_89 {dimension_numbers = #tpu.dot_dimension_numbers<[1], [1], [0], [0], [0, 0, 1, 0], [], []>} : vector<64x32xbf16>, vector<16x32xbf16>, vector<64x16xf32> -> vector<64x16xf32>
    %249 = vector.shape_cast %248 : vector<64x16xf32> to vector<8x8x16xf32>
    %250 = vector.shape_cast %181 : vector<1x16xf32> to vector<1x1x16xf32>
    %251 = vector.broadcast %250 : vector<1x1x16xf32> to vector<8x8x16xf32>
    %252 = arith.addf %249, %251 : vector<8x8x16xf32>
    %253 = arith.mulf %252, %252 : vector<8x8x16xf32>
    %cst_90 = arith.constant dense<0.000000e+00> : vector<8x8xf32>
    %254 = vector.multi_reduction <add>, %253, %cst_90 [2] : vector<8x8x16xf32> to vector<8x8xf32>
    %255 = vector.shape_cast %254 : vector<8x8xf32> to vector<8x8x1xf32>
    %cst_91 = arith.constant 9.99999993E-9 : f32
    %256 = vector.broadcast %cst_91 : f32 to vector<8x8x1xf32>
    %257 = arith.addf %255, %256 : vector<8x8x1xf32>
    %258 = math.rsqrt %257 : vector<8x8x1xf32>
    %259 = vector.broadcast %258 : vector<8x8x1xf32> to vector<8x8x16xf32>
    %260 = arith.mulf %252, %259 : vector<8x8x16xf32>
    %261 = vector.shape_cast %199 : vector<8x1xf32> to vector<1x8x1xf32>
    %262 = vector.broadcast %261 : vector<1x8x1xf32> to vector<8x8x16xf32>
    %263 = arith.mulf %260, %262 : vector<8x8x16xf32>
    %cst_92 = arith.constant dense<0.000000e+00> : vector<8x16xf32>
    %264 = vector.multi_reduction <add>, %263, %cst_92 [1] : vector<8x8x16xf32> to vector<8x16xf32>
    %265 = vector.broadcast %191 : f32 to vector<8x16xf32>
    %266 = arith.mulf %264, %265 : vector<8x16xf32>
    %267 = vector.shape_cast %260 : vector<8x8x16xf32> to vector<64x16xf32>
    %268 = arith.truncf %267 : vector<64x16xf32> to vector<64x16xbf16>
    %cst_93 = arith.constant dense<0.000000e+00> : vector<64x16xf32>
    %269 = tpu.matmul %268, %182, %cst_93 {dimension_numbers = #tpu.dot_dimension_numbers<[1], [1], [0], [0], [0, 0, 1, 0], [], []>} : vector<64x16xbf16>, vector<16x16xbf16>, vector<64x16xf32> -> vector<64x16xf32>
    %270 = vector.shape_cast %269 : vector<64x16xf32> to vector<8x8x16xf32>
    %271 = vector.shape_cast %183 : vector<1x16xf32> to vector<1x1x16xf32>
    %272 = vector.broadcast %271 : vector<1x1x16xf32> to vector<8x8x16xf32>
    %273 = arith.addf %270, %272 : vector<8x8x16xf32>
    %274 = math.tanh %273 : vector<8x8x16xf32>
    %275 = arith.truncf %266 : vector<8x16xf32> to vector<8x16xbf16>
    %cst_94 = arith.constant dense<0.000000e+00> : vector<8x16xf32>
    %276 = tpu.matmul %275, %184, %cst_94 {dimension_numbers = #tpu.dot_dimension_numbers<[1], [1], [0], [0], [0, 0, 1, 0], [], []>} : vector<8x16xbf16>, vector<16x16xbf16>, vector<8x16xf32> -> vector<8x16xf32>
    %277 = vector.broadcast %185 : vector<1x16xf32> to vector<8x16xf32>
    %278 = arith.addf %276, %277 : vector<8x16xf32>
    %279 = math.tanh %278 : vector<8x16xf32>
    %280 = vector.shape_cast %279 : vector<8x16xf32> to vector<8x1x16xf32>
    %281 = vector.broadcast %280 : vector<8x1x16xf32> to vector<8x8x16xf32>
    %282 = arith.mulf %274, %281 : vector<8x8x16xf32>
    %283 = vector.shape_cast %186 : vector<1x16xf32> to vector<1x1x16xf32>
    %284 = vector.broadcast %283 : vector<1x1x16xf32> to vector<8x8x16xf32>
    %285 = arith.mulf %282, %284 : vector<8x8x16xf32>
    %cst_95 = arith.constant dense<0.000000e+00> : vector<8x8xf32>
    %286 = vector.multi_reduction <add>, %285, %cst_95 [2] : vector<8x8x16xf32> to vector<8x8xf32>
    %287 = vector.extract %187[0, 0] : f32 from vector<1x1xf32>
    %288 = vector.broadcast %287 : f32 to vector<8x8xf32>
    %289 = arith.addf %286, %288 : vector<8x8xf32>
    %cst_96 = arith.constant -1.000000e+30 : f32
    %290 = vector.shape_cast %194 : vector<1x8xi1> to vector<1x8xi1>
    %291 = vector.broadcast %290 : vector<1x8xi1> to vector<8x8xi1>
    %292 = vector.broadcast %cst_96 : f32 to vector<8x8xf32>
    %293 = arith.select %291, %289, %292 : vector<8x8xi1>, vector<8x8xf32>
    %cst_97 = arith.constant dense<0xFF800000> : vector<8xf32>
    %294 = vector.multi_reduction <maximumf>, %293, %cst_97 [1] : vector<8x8xf32> to vector<8xf32>
    %295 = vector.shape_cast %294 : vector<8xf32> to vector<8x1xf32>
    %296 = vector.broadcast %295 : vector<8x1xf32> to vector<8x8xf32>
    %297 = arith.subf %293, %296 : vector<8x8xf32>
    %298 = math.exp %297 : vector<8x8xf32>
    %299 = arith.extui %194 : vector<1x8xi1> to vector<1x8xi32>
    %300 = arith.sitofp %299 : vector<1x8xi32> to vector<1x8xf32>
    %301 = vector.broadcast %300 : vector<1x8xf32> to vector<8x8xf32>
    %302 = arith.mulf %298, %301 : vector<8x8xf32>
    %cst_98 = arith.constant dense<0.000000e+00> : vector<8xf32>
    %303 = vector.multi_reduction <add>, %302, %cst_98 [1] : vector<8x8xf32> to vector<8xf32>
    %304 = vector.shape_cast %303 : vector<8xf32> to vector<8x1xf32>
    %305 = tpu.reciprocal %304 {approx = true} : vector<8x1xf32> -> vector<8x1xf32>
    %306 = vector.broadcast %305 : vector<8x1xf32> to vector<8x8xf32>
    %307 = arith.mulf %302, %306 : vector<8x8xf32>
    %308 = vector.shape_cast %307 : vector<8x8xf32> to vector<8x8x1xf32>
    %309 = vector.broadcast %308 : vector<8x8x1xf32> to vector<8x8x16xf32>
    %310 = arith.mulf %309, %260 : vector<8x8x16xf32>
    %cst_99 = arith.constant dense<0.000000e+00> : vector<8x16xf32>
    %311 = vector.multi_reduction <add>, %310, %cst_99 [1] : vector<8x8x16xf32> to vector<8x16xf32>
    %312 = arith.mulf %311, %311 : vector<8x16xf32>
    %cst_100 = arith.constant dense<0.000000e+00> : vector<8xf32>
    %313 = vector.multi_reduction <add>, %312, %cst_100 [1] : vector<8x16xf32> to vector<8xf32>
    %314 = vector.shape_cast %313 : vector<8xf32> to vector<8x1xf32>
    %cst_101 = arith.constant 9.99999993E-9 : f32
    %315 = vector.broadcast %cst_101 : f32 to vector<8x1xf32>
    %316 = arith.addf %314, %315 : vector<8x1xf32>
    %317 = math.rsqrt %316 : vector<8x1xf32>
    %318 = vector.broadcast %317 : vector<8x1xf32> to vector<8x16xf32>
    %319 = arith.mulf %311, %318 : vector<8x16xf32>
    %320 = vector.broadcast %188 : vector<1x16xf32> to vector<8x16xf32>
    %321 = arith.mulf %319, %320 : vector<8x16xf32>
    %cst_102 = arith.constant dense<0.000000e+00> : vector<8xf32>
    %322 = vector.multi_reduction <add>, %321, %cst_102 [1] : vector<8x16xf32> to vector<8xf32>
    %323 = vector.extract %189[0, 0] : f32 from vector<1x1xf32>
    %324 = vector.broadcast %323 : f32 to vector<8xf32>
    %325 = arith.addf %322, %324 : vector<8xf32>
    %cst_103 = arith.constant 0.000000e+00 : f32
    %326 = vector.broadcast %cst_103 : f32 to vector<8xf32>
    %327 = arith.subf %326, %325 : vector<8xf32>
    %328 = math.exp %327 : vector<8xf32>
    %cst_104 = arith.constant 1.000000e+00 : f32
    %329 = vector.broadcast %cst_104 : f32 to vector<8xf32>
    %330 = arith.addf %329, %328 : vector<8xf32>
    %cst_105 = arith.constant 1.000000e+00 : f32
    %331 = vector.broadcast %cst_105 : f32 to vector<8xf32>
    %332 = arith.divf %331, %330 : vector<8xf32>
    %333 = vector.shape_cast %332 : vector<8xf32> to vector<1x8xf32>
    %334 = tpu.concatenate %171, %333 in 0 : vector<1x8xf32>, vector<1x8xf32> -> vector<2x8xf32>
    %335 = vector.shape_cast %334 : vector<2x8xf32> to vector<1x1x2x8xf32>
    %c0_106 = arith.constant 0 : index
    %c0_107 = arith.constant 0 : index
    %c0_108 = arith.constant 0 : index
    %c0_109 = arith.constant 0 : index
    %336 = vector.load %arg16[%c0_106, %c0_107, %c0_108, %c0_109] : memref<1x1x2x8xf32, #tpu.memory_space<vmem>>, vector<1x1x2x8xf32>
    tpu.vector_store %arg16[%c0_106, %c0_107, %c0_108, %c0_109], %335 {strides = array<i32>} : memref<1x1x2x8xf32, #tpu.memory_space<vmem>>, vector<1x1x2x8xf32>,
    return
  }
  func.func @transform_0(%arg0: i32, %arg1: i32, %arg2: memref<4xi32, #tpu.memory_space<smem>>) -> (i32, i32, i32) {
    %c0_i32 = arith.constant 0 : i32
    %c0_i32_0 = arith.constant 0 : i32
    %c0_i32_1 = arith.constant 0 : i32
    return %arg1, %c0_i32, %c0_i32_0 : i32, i32, i32
  }
  func.func @transform_1(%arg0: i32, %arg1: i32, %arg2: memref<4xi32, #tpu.memory_space<smem>>) -> (i32, i32, i32) {
    %c0_i32 = arith.constant 0 : i32
    %c0_i32_0 = arith.constant 0 : i32
    %c0_i32_1 = arith.constant 0 : i32
    return %arg0, %c0_i32, %c0_i32_0 : i32, i32, i32
  }
  func.func @transform_2(%arg0: i32, %arg1: i32, %arg2: memref<4xi32, #tpu.memory_space<smem>>) -> (i32, i32) {
    %c0_i32 = arith.constant 0 : i32
    %c0_i32_0 = arith.constant 0 : i32
    %c0_i32_1 = arith.constant 0 : i32
    return %c0_i32, %c0_i32_0 : i32, i32
  }
  func.func @transform_3(%arg0: i32, %arg1: i32, %arg2: memref<4xi32, #tpu.memory_space<smem>>) -> (i32, i32) {
    %c0_i32 = arith.constant 0 : i32
    %c0_i32_0 = arith.constant 0 : i32
    %c0_i32_1 = arith.constant 0 : i32
    return %c0_i32, %c0_i32_0 : i32, i32
  }
  func.func @transform_4(%arg0: i32, %arg1: i32, %arg2: memref<4xi32, #tpu.memory_space<smem>>) -> (i32, i32) {
    %c0_i32 = arith.constant 0 : i32
    %c0_i32_0 = arith.constant 0 : i32
    %c0_i32_1 = arith.constant 0 : i32
    return %c0_i32, %c0_i32_0 : i32, i32
  }
  func.func @transform_5(%arg0: i32, %arg1: i32, %arg2: memref<4xi32, #tpu.memory_space<smem>>) -> (i32, i32) {
    %c0_i32 = arith.constant 0 : i32
    %c0_i32_0 = arith.constant 0 : i32
    %c0_i32_1 = arith.constant 0 : i32
    return %c0_i32, %c0_i32_0 : i32, i32
  }
  func.func @transform_6(%arg0: i32, %arg1: i32, %arg2: memref<4xi32, #tpu.memory_space<smem>>) -> (i32, i32) {
    %c0_i32 = arith.constant 0 : i32
    %c0_i32_0 = arith.constant 0 : i32
    %c0_i32_1 = arith.constant 0 : i32
    return %c0_i32, %c0_i32_0 : i32, i32
  }
  func.func @transform_7(%arg0: i32, %arg1: i32, %arg2: memref<4xi32, #tpu.memory_space<smem>>) -> (i32, i32) {
    %c0_i32 = arith.constant 0 : i32
    %c0_i32_0 = arith.constant 0 : i32
    %c0_i32_1 = arith.constant 0 : i32
    return %c0_i32, %c0_i32_0 : i32, i32
  }
  func.func @transform_8(%arg0: i32, %arg1: i32, %arg2: memref<4xi32, #tpu.memory_space<smem>>) -> (i32, i32) {
    %c0_i32 = arith.constant 0 : i32
    %c0_i32_0 = arith.constant 0 : i32
    %c0_i32_1 = arith.constant 0 : i32
    return %c0_i32, %c0_i32_0 : i32, i32
  }
  func.func @transform_9(%arg0: i32, %arg1: i32, %arg2: memref<4xi32, #tpu.memory_space<smem>>) -> (i32, i32) {
    %c0_i32 = arith.constant 0 : i32
    %c0_i32_0 = arith.constant 0 : i32
    %c0_i32_1 = arith.constant 0 : i32
    return %c0_i32, %c0_i32_0 : i32, i32
  }
  func.func @transform_10(%arg0: i32, %arg1: i32, %arg2: memref<4xi32, #tpu.memory_space<smem>>) -> (i32, i32) {
    %c0_i32 = arith.constant 0 : i32
    %c0_i32_0 = arith.constant 0 : i32
    %c0_i32_1 = arith.constant 0 : i32
    return %c0_i32, %c0_i32_0 : i32, i32
  }
  func.func @transform_11(%arg0: i32, %arg1: i32, %arg2: memref<4xi32, #tpu.memory_space<smem>>) -> (i32, i32) {
    %c0_i32 = arith.constant 0 : i32
    %c0_i32_0 = arith.constant 0 : i32
    %c0_i32_1 = arith.constant 0 : i32
    return %c0_i32, %c0_i32_0 : i32, i32
  }
  func.func @transform_12(%arg0: i32, %arg1: i32, %arg2: memref<4xi32, #tpu.memory_space<smem>>) -> (i32, i32) {
    %c0_i32 = arith.constant 0 : i32
    %c0_i32_0 = arith.constant 0 : i32
    %c0_i32_1 = arith.constant 0 : i32
    return %c0_i32, %c0_i32_0 : i32, i32
  }
  func.func @transform_13(%arg0: i32, %arg1: i32, %arg2: memref<4xi32, #tpu.memory_space<smem>>) -> (i32, i32, i32, i32) {
    %c0_i32 = arith.constant 0 : i32
    %c0_i32_0 = arith.constant 0 : i32
    %c0_i32_1 = arith.constant 0 : i32
    return %arg0, %arg1, %c0_i32, %c0_i32_0 : i32, i32, i32, i32
  }
}

</mosaic_0001>

<llo_original>
// kernel: tpu_custom_call.1
$region0: #{tpu_custom_call.1}
  #allocation0 [shape = 'u32[]', space=smem, size = 0x4, offset = 0x4, fixed_abs, tag = 'smem constant byte address 0x4 - core index']
  #allocation1 [shape = 'u32[144,128]{1,0:T(1,128)}', space=vmem, size = 0x12000, scoped, tag = 'internal scratch']
  #allocation2 [shape = 's32[1]{0}', space=sflag, size = 0x4, scoped, tag = 'scoped memory for tpu_custom_call.1']
  #allocation3 [shape = 'u8[512]{0}', space=smem, size = 0x200, scoped, tag = 'prefetched SMEM operand 0']
  #allocation4 [shape = 'f32[1,1]{1,0:T(1,128)S(1)}', space=vmem, size = 0x200, scoped, tag = 'scoped memory for tpu_custom_call.1']
  #allocation5 [shape = 'f32[1,1]{1,0:T(1,128)S(1)}', space=vmem, size = 0x200, scoped, tag = 'scoped memory for tpu_custom_call.1']
  %s0 = inlined_call_operand.vmem [shape: s32[4], index: 0, kind: input, shape index: {}]
  %s1 = inlined_call_operand.hbm [shape: f32[4,8,32], index: 1, kind: input, shape index: {}]
  %s2 = inlined_call_operand.hbm [shape: bf16[16,16,32], index: 2, kind: input, shape index: {}]
  %s3 = inlined_call_operand.vmem [shape: f32[1,32], index: 3, kind: input, shape index: {}]
  %s4 = inlined_call_operand.vmem [shape: bf16[16,32], index: 4, kind: input, shape index: {}]
  %s5 = inlined_call_operand.hbm [shape: f32[1,16], index: 5, kind: input, shape index: {}]
  %s6 = inlined_call_operand.vmem [shape: bf16[16,16], index: 6, kind: input, shape index: {}]
  %s7 = inlined_call_operand.vmem [shape: f32[1,16], index: 7, kind: input, shape index: {}]
  %s8 = inlined_call_operand.vmem [shape: bf16[16,16], index: 8, kind: input, shape index: {}]
  %s9 = inlined_call_operand.vmem [shape: f32[1,16], index: 9, kind: input, shape index: {}]
  %s10 = inlined_call_operand.vmem [shape: f32[1,16], index: 10, kind: input, shape index: {}]
  %s11 = inlined_call_operand.<no memory space> [shape: f32[1,1], index: 11, kind: input, shape index: {}]
  %s12 = inlined_call_operand.vmem [shape: f32[1,16], index: 12, kind: input, shape index: {}]
  %s13 = inlined_call_operand.<no memory space> [shape: f32[1,1], index: 13, kind: input, shape index: {}]
  %s14 = inlined_call_operand.hbm [shape: f32[2,2,2,8], index: 14, kind: output, shape index: {}]
  %s15 = sld [smem:[#allocation0]]
  $region97: #{tpu_custom_call.1} parent=0
    _
  %s17 = ssub.s32 1, %s15
  %s18 = scalar_select 0, %s17, %s15
  %s19 = sshll.u32 %s0, 4
  %s20 = int_to_ptr.vmem [resolvable:$true] %s19
  %22 = dma.vmem_to_smem %s20, 16, [#allocation3], [#allocation2]
  %v23 = vstv %s11
  %24 = vst [vmem:[#allocation4] sm:$0x1] %v23
  %v25 = vstv %s13
  %26 = vst [vmem:[#allocation5] sm:$0x1] %v25
  %27 = dma.done [#allocation2], 16
  %28 = sfence
  $region1: #{tpu_custom_call.1} parent=0
    #allocation6 [shape = 'u8[16384]{0}', space=vmem, size = 0x4000, scoped, tag = 'input window, operand 1']
    #allocation7 [shape = 's32[2]{0}', space=sflag, size = 0x8, scoped, tag = 'scoped memory for tpu_custom_call.1']
    #allocation8 [shape = 's32[2]{0}', space=sflag, size = 0x8, scoped, tag = 'scoped memory for tpu_custom_call.1']
    #allocation9 [shape = 'u8[65536]{0}', space=vmem, size = 0x10000, scoped, tag = 'input window, operand 2']
    #allocation10 [shape = 's32[2]{0}', space=sflag, size = 0x8, scoped, tag = 'scoped memory for tpu_custom_call.1']
    #allocation11 [shape = 'u8[512]{0}', space=vmem, size = 0x400, scoped, tag = 'input window, operand 5, single buffered']
    #allocation12 [shape = 'u8[2048]{0}', space=vmem, size = 0x800, scoped, tag = 'output window, operand 0']
    %29 = vsyncpa [#allocation7], 0
    %s30 = scalar_lea.sflag [#allocation7], 1
    %31 = vsyncpa %s30, 0
    %32 = vsyncpa [#allocation10], 0
    %s33 = scalar_lea.sflag [#allocation10], 1
    %34 = vsyncpa %s33, 0
    %35 = vsyncpa [#allocation8], 0
    %s36 = scalar_lea.sflag [#allocation8], 1
    %37 = vsyncpa %s36, 0
    loop: start=0, step=1, limit=6
    $region2: #{tpu_custom_call.1} parent=1 // loop_pre_header
      _
    $region3: #{tpu_custom_call.1} parent=1 // loop_header
      %s39 = sphi 0, %s43
      %p40 = scmp.ge.s32.totalorder %s39, 6
      %s46 = sphi 0, %s58
      %s47 = sphi 0, %s54
      %s48 = sphi 0, %s46
      %s49 = sphi 0, %s47
      %s50 = sphi 0, %s48
      %s51 = sphi 0, %s49
      %s61 = sphi 0, %s63
      %s64 = sphi 0, %s61
      %s65 = sphi 0, %s64
      %s81 = sphi 0, %s65
      %s87 = sphi 0, %s89
      %s90 = sphi 0, %s87
      %s91 = sphi 0, %s90
      %s107 = sphi 0, %s91
      %s111 = sphi 0, %s111
      %s113 = sphi 0, %s111
      %s114 = sphi 0, %s113
      %s128 = sphi 0, %s114
      %s132 = sphi 0, %s132
      %s134 = sphi 0, %s132
      %s135 = sphi 0, %s134
      %s149 = sphi 0, %s135
      %s153 = sphi 0, %s153
      %s155 = sphi 0, %s153
      %s156 = sphi 0, %s155
      %s170 = sphi 0, %s156
      %s174 = sphi 0, %s174
      %s176 = sphi 0, %s174
      %s177 = sphi 0, %s176
      %s191 = sphi 0, %s177
      %s195 = sphi 0, %s195
      %s197 = sphi 0, %s195
      %s198 = sphi 0, %s197
      %s212 = sphi 0, %s198
      %s216 = sphi 0, %s216
      %s218 = sphi 0, %s216
      %s219 = sphi 0, %s218
      %s233 = sphi 0, %s219
      %s237 = sphi 0, %s237
      %s239 = sphi 0, %s237
      %s240 = sphi 0, %s239
      %s254 = sphi 0, %s240
      %s258 = sphi 0, %s258
      %s260 = sphi 0, %s258
      %s261 = sphi 0, %s260
      %s275 = sphi 0, %s261
      %s279 = sphi 0, %s279
      %s281 = sphi 0, %s279
      %s282 = sphi 0, %s281
      %s296 = sphi 0, %s282
      %s300 = sphi 0, %s300
      %s302 = sphi 0, %s300
      %s303 = sphi 0, %s302
      %s317 = sphi 0, %s303
      %s321 = sphi 0, %s321
      %s323 = sphi 0, %s321
      %s324 = sphi 0, %s323
      %s338 = sphi 0, %s324
      %s346 = sphi 0, %s348
      %s349 = sphi 0, %s346
      %s350 = sphi 0, %s349
      %s366 = sphi 0, %s350
    $region4: #{tpu_custom_call.1} parent=1 // loop_header_branch
      %42 = sbr.rel (%p40) target = $region8
    $region5: #{tpu_custom_call.1} parent=1 // loop_body
      %s44 = ssub.s32 %s39, 1
      %s45 = ssub.s32 %s39, 2
      %s52 = sadd.s32 1, %s47
      %p53 = scmp.ge.s32.totalorder %s52, 2
      %s54 = scalar_select %p53, 0, %s52
      %s55 = sadd.s32 1, %s46
      %s56 = scalar_select %p53, %s55, %s46
      %p57 = scmp.ge.s32.totalorder %s56, 2
      %s58 = scalar_select %p57, 0, %s56
      %s59 = ssub.s32 %s47, %s54
      %p60 = scmp.eq.s32.totalorder %s59, 0
      %s62 = sadd.s32 %s61, 1
      %s63 = scalar_select %p60, %s61, %s62
      %p66 = pneg %p60
      %p67 = scmp.eq.s32.totalorder %s39, 3
      %p68 = por %p66, %p67
      %p69 = scmp.ne.s32.totalorder %s61, %s64
      %p70 = scmp.eq.s32.totalorder %s39, 0
      %p71 = por %p69, %p70
      %p72 = scmp.ne.s32.totalorder %s61, %s64
      %p73 = scmp.eq.s32.totalorder %s44, 3
      %p74 = por %p72, %p73
      %p75 = scmp.ne.s32.totalorder %s64, %s65
      %p76 = scmp.eq.s32.totalorder %s44, 0
      %p77 = por %p75, %p76
      %p78 = scmp.ne.s32.totalorder %s64, %s65
      %p79 = scmp.eq.s32.totalorder %s45, 3
      %p80 = por %p78, %p79
      %p82 = scmp.ne.s32.totalorder %s65, %s81
      %p83 = scmp.eq.s32.totalorder %s45, 0
      %p84 = por %p82, %p83
      %s85 = ssub.s32 %s46, %s58
      %p86 = scmp.eq.s32.totalorder %s85, 0
      %s88 = sadd.s32 %s87, 1
      %s89 = scalar_select %p86, %s87, %s88
      %p92 = pneg %p86
      %p93 = scmp.eq.s32.totalorder %s39, 3
      %p94 = por %p92, %p93
      %p95 = scmp.ne.s32.totalorder %s87, %s90
      %p96 = scmp.eq.s32.totalorder %s39, 0
      %p97 = por %p95, %p96
      %p98 = scmp.ne.s32.totalorder %s87, %s90
      %p99 = scmp.eq.s32.totalorder %s44, 3
      %p100 = por %p98, %p99
      %p101 = scmp.ne.s32.totalorder %s90, %s91
      %p102 = scmp.eq.s32.totalorder %s44, 0
      %p103 = por %p101, %p102
      %p104 = scmp.ne.s32.totalorder %s90, %s91
      %p105 = scmp.eq.s32.totalorder %s45, 3
      %p106 = por %p104, %p105
      %p108 = scmp.ne.s32.totalorder %s91, %s107
      %p109 = scmp.eq.s32.totalorder %s45, 0
      %p110 = por %p108, %p109
      %s112 = sadd.s32 %s111, 1
      %p115 = scmp.eq.s32.totalorder %s39, 3
      %p116 = scmp.ne.s32.totalorder %s111, %s113
      %p117 = scmp.eq.s32.totalorder %s39, 0
      %p118 = por %p116, %p117
      %p119 = scmp.ne.s32.totalorder %s111, %s113
      %p120 = scmp.eq.s32.totalorder %s44, 3
      %p121 = por %p119, %p120
      %p122 = scmp.ne.s32.totalorder %s113, %s114
      %p123 = scmp.eq.s32.totalorder %s44, 0
      %p124 = por %p122, %p123
      %p125 = scmp.ne.s32.totalorder %s113, %s114
      %p126 = scmp.eq.s32.totalorder %s45, 3
      %p127 = por %p125, %p126
      %p129 = scmp.ne.s32.totalorder %s114, %s128
      %p130 = scmp.eq.s32.totalorder %s45, 0
      %p131 = por %p129, %p130
      %s133 = sadd.s32 %s132, 1
      %p136 = scmp.eq.s32.totalorder %s39, 3
      %p137 = scmp.ne.s32.totalorder %s132, %s134
      %p138 = scmp.eq.s32.totalorder %s39, 0
      %p139 = por %p137, %p138
      %p140 = scmp.ne.s32.totalorder %s132, %s134
      %p141 = scmp.eq.s32.totalorder %s44, 3
      %p142 = por %p140, %p141
      %p143 = scmp.ne.s32.totalorder %s134, %s135
      %p144 = scmp.eq.s32.totalorder %s44, 0
      %p145 = por %p143, %p144
      %p146 = scmp.ne.s32.totalorder %s134, %s135
      %p147 = scmp.eq.s32.totalorder %s45, 3
      %p148 = por %p146, %p147
      %p150 = scmp.ne.s32.totalorder %s135, %s149
      %p151 = scmp.eq.s32.totalorder %s45, 0
      %p152 = por %p150, %p151
      %s154 = sadd.s32 %s153, 1
      %p157 = scmp.eq.s32.totalorder %s39, 3
      %p158 = scmp.ne.s32.totalorder %s153, %s155
      %p159 = scmp.eq.s32.totalorder %s39, 0
      %p160 = por %p158, %p159
      %p161 = scmp.ne.s32.totalorder %s153, %s155
      %p162 = scmp.eq.s32.totalorder %s44, 3
      %p163 = por %p161, %p162
      %p164 = scmp.ne.s32.totalorder %s155, %s156
      %p165 = scmp.eq.s32.totalorder %s44, 0
      %p166 = por %p164, %p165
      %p167 = scmp.ne.s32.totalorder %s155, %s156
      %p168 = scmp.eq.s32.totalorder %s45, 3
      %p169 = por %p167, %p168
      %p171 = scmp.ne.s32.totalorder %s156, %s170
      %p172 = scmp.eq.s32.totalorder %s45, 0
      %p173 = por %p171, %p172
      %s175 = sadd.s32 %s174, 1
      %p178 = scmp.eq.s32.totalorder %s39, 3
      %p179 = scmp.ne.s32.totalorder %s174, %s176
      %p180 = scmp.eq.s32.totalorder %s39, 0
      %p181 = por %p179, %p180
      %p182 = scmp.ne.s32.totalorder %s174, %s176
      %p183 = scmp.eq.s32.totalorder %s44, 3
      %p184 = por %p182, %p183
      %p185 = scmp.ne.s32.totalorder %s176, %s177
      %p186 = scmp.eq.s32.totalorder %s44, 0
      %p187 = por %p185, %p186
      %p188 = scmp.ne.s32.totalorder %s176, %s177
      %p189 = scmp.eq.s32.totalorder %s45, 3
      %p190 = por %p188, %p189
      %p192 = scmp.ne.s32.totalorder %s177, %s191
      %p193 = scmp.eq.s32.totalorder %s45, 0
      %p194 = por %p192, %p193
      %s196 = sadd.s32 %s195, 1
      %p199 = scmp.eq.s32.totalorder %s39, 3
      %p200 = scmp.ne.s32.totalorder %s195, %s197
      %p201 = scmp.eq.s32.totalorder %s39, 0
      %p202 = por %p200, %p201
      %p203 = scmp.ne.s32.totalorder %s195, %s197
      %p204 = scmp.eq.s32.totalorder %s44, 3
      %p205 = por %p203, %p204
      %p206 = scmp.ne.s32.totalorder %s197, %s198
      %p207 = scmp.eq.s32.totalorder %s44, 0
      %p208 = por %p206, %p207
      %p209 = scmp.ne.s32.totalorder %s197, %s198
      %p210 = scmp.eq.s32.totalorder %s45, 3
      %p211 = por %p209, %p210
      %p213 = scmp.ne.s32.totalorder %s198, %s212
      %p214 = scmp.eq.s32.totalorder %s45, 0
      %p215 = por %p213, %p214
      %s217 = sadd.s32 %s216, 1
      %p220 = scmp.eq.s32.totalorder %s39, 3
      %p221 = scmp.ne.s32.totalorder %s216, %s218
      %p222 = scmp.eq.s32.totalorder %s39, 0
      %p223 = por %p221, %p222
      %p224 = scmp.ne.s32.totalorder %s216, %s218
      %p225 = scmp.eq.s32.totalorder %s44, 3
      %p226 = por %p224, %p225
      %p227 = scmp.ne.s32.totalorder %s218, %s219
      %p228 = scmp.eq.s32.totalorder %s44, 0
      %p229 = por %p227, %p228
      %p230 = scmp.ne.s32.totalorder %s218, %s219
      %p231 = scmp.eq.s32.totalorder %s45, 3
      %p232 = por %p230, %p231
      %p234 = scmp.ne.s32.totalorder %s219, %s233
      %p235 = scmp.eq.s32.totalorder %s45, 0
      %p236 = por %p234, %p235
      %s238 = sadd.s32 %s237, 1
      %p241 = scmp.eq.s32.totalorder %s39, 3
      %p242 = scmp.ne.s32.totalorder %s237, %s239
      %p243 = scmp.eq.s32.totalorder %s39, 0
      %p244 = por %p242, %p243
      %p245 = scmp.ne.s32.totalorder %s237, %s239
      %p246 = scmp.eq.s32.totalorder %s44, 3
      %p247 = por %p245, %p246
      %p248 = scmp.ne.s32.totalorder %s239, %s240
      %p249 = scmp.eq.s32.totalorder %s44, 0
      %p250 = por %p248, %p249
      %p251 = scmp.ne.s32.totalorder %s239, %s240
      %p252 = scmp.eq.s32.totalorder %s45, 3
      %p253 = por %p251, %p252
      %p255 = scmp.ne.s32.totalorder %s240, %s254
      %p256 = scmp.eq.s32.totalorder %s45, 0
      %p257 = por %p255, %p256
      %s259 = sadd.s32 %s258, 1
      %p262 = scmp.eq.s32.totalorder %s39, 3
      %p263 = scmp.ne.s32.totalorder %s258, %s260
      %p264 = scmp.eq.s32.totalorder %s39, 0
      %p265 = por %p263, %p264
      %p266 = scmp.ne.s32.totalorder %s258, %s260
      %p267 = scmp.eq.s32.totalorder %s44, 3
      %p268 = por %p266, %p267
      %p269 = scmp.ne.s32.totalorder %s260, %s261
      %p270 = scmp.eq.s32.totalorder %s44, 0
      %p271 = por %p269, %p270
      %p272 = scmp.ne.s32.totalorder %s260, %s261
      %p273 = scmp.eq.s32.totalorder %s45, 3
      %p274 = por %p272, %p273
      %p276 = scmp.ne.s32.totalorder %s261, %s275
      %p277 = scmp.eq.s32.totalorder %s45, 0
      %p278 = por %p276, %p277
      %s280 = sadd.s32 %s279, 1
      %p283 = scmp.eq.s32.totalorder %s39, 3
      %p284 = scmp.ne.s32.totalorder %s279, %s281
      %p285 = scmp.eq.s32.totalorder %s39, 0
      %p286 = por %p284, %p285
      %p287 = scmp.ne.s32.totalorder %s279, %s281
      %p288 = scmp.eq.s32.totalorder %s44, 3
      %p289 = por %p287, %p288
      %p290 = scmp.ne.s32.totalorder %s281, %s282
      %p291 = scmp.eq.s32.totalorder %s44, 0
      %p292 = por %p290, %p291
      %p293 = scmp.ne.s32.totalorder %s281, %s282
      %p294 = scmp.eq.s32.totalorder %s45, 3
      %p295 = por %p293, %p294
      %p297 = scmp.ne.s32.totalorder %s282, %s296
      %p298 = scmp.eq.s32.totalorder %s45, 0
      %p299 = por %p297, %p298
      %s301 = sadd.s32 %s300, 1
      %p304 = scmp.eq.s32.totalorder %s39, 3
      %p305 = scmp.ne.s32.totalorder %s300, %s302
      %p306 = scmp.eq.s32.totalorder %s39, 0
      %p307 = por %p305, %p306
      %p308 = scmp.ne.s32.totalorder %s300, %s302
      %p309 = scmp.eq.s32.totalorder %s44, 3
      %p310 = por %p308, %p309
      %p311 = scmp.ne.s32.totalorder %s302, %s303
      %p312 = scmp.eq.s32.totalorder %s44, 0
      %p313 = por %p311, %p312
      %p314 = scmp.ne.s32.totalorder %s302, %s303
      %p315 = scmp.eq.s32.totalorder %s45, 3
      %p316 = por %p314, %p315
      %p318 = scmp.ne.s32.totalorder %s303, %s317
      %p319 = scmp.eq.s32.totalorder %s45, 0
      %p320 = por %p318, %p319
      %s322 = sadd.s32 %s321, 1
      %p325 = scmp.eq.s32.totalorder %s39, 3
      %p326 = scmp.ne.s32.totalorder %s321, %s323
      %p327 = scmp.eq.s32.totalorder %s39, 0
      %p328 = por %p326, %p327
      %p329 = scmp.ne.s32.totalorder %s321, %s323
      %p330 = scmp.eq.s32.totalorder %s44, 3
      %p331 = por %p329, %p330
      %p332 = scmp.ne.s32.totalorder %s323, %s324
      %p333 = scmp.eq.s32.totalorder %s44, 0
      %p334 = por %p332, %p333
      %p335 = scmp.ne.s32.totalorder %s323, %s324
      %p336 = scmp.eq.s32.totalorder %s45, 3
      %p337 = por %p335, %p336
      %p339 = scmp.ne.s32.totalorder %s324, %s338
      %p340 = scmp.eq.s32.totalorder %s45, 0
      %p341 = por %p339, %p340
      %s342 = ssub.s32 %s46, %s58
      %s343 = ssub.s32 %s47, %s54
      %s344 = sor.u32 %s342, %s343
      %p345 = scmp.eq.s32.totalorder %s344, 0
      %s347 = sadd.s32 %s346, 1
      %s348 = scalar_select %p345, %s346, %s347
      %p351 = pneg %p345
      %p352 = scmp.eq.s32.totalorder %s39, 3
      %p353 = por %p351, %p352
      %p354 = scmp.ne.s32.totalorder %s346, %s349
      %p355 = scmp.eq.s32.totalorder %s39, 0
      %p356 = por %p354, %p355
      %p357 = scmp.ne.s32.totalorder %s346, %s349
      %p358 = scmp.eq.s32.totalorder %s44, 3
      %p359 = por %p357, %p358
      %p360 = scmp.ne.s32.totalorder %s349, %s350
      %p361 = scmp.eq.s32.totalorder %s44, 0
      %p362 = por %p360, %p361
      %p363 = scmp.ne.s32.totalorder %s349, %s350
      %p364 = scmp.eq.s32.totalorder %s45, 3
      %p365 = por %p363, %p364
      %p367 = scmp.ne.s32.totalorder %s350, %s366
      %p368 = scmp.eq.s32.totalorder %s45, 0
      %p369 = por %p367, %p368
      %p370 = scmp.le.s32.totalorder 1, %s39
      %p371 = scmp.lt.s32.totalorder %s39, 5
      %p372 = pnand %p370, %p371
      %p373 = pneg %p372
      // Predicated region
      $region9: #{tpu_custom_call.1} parent=5 // pred_check
        _
      $region10: #{tpu_custom_call.1} parent=5 // pred_check_branch
        %375 = sbr.rel (%p372) target = $region12
      $region11: #{tpu_custom_call.1} parent=5 // pred_region
        %s376 = ssub.s32 %s39, 1
        // Predicated region
        $region13: #{tpu_custom_call.1} parent=11 // pred_check
          %p377 = pneg %p124
        $region14: #{tpu_custom_call.1} parent=11 // pred_check_branch
          %379 = sbr.rel (%p377) target = $region16
        $region15: #{tpu_custom_call.1} parent=11 // pred_region
          _
        $region16: #{tpu_custom_call.1} parent=11 // pred_fallthru
          _
        // Predicated region
        $region17: #{tpu_custom_call.1} parent=11 // pred_check
          %p380 = pneg %p145
        $region18: #{tpu_custom_call.1} parent=11 // pred_check_branch
          %382 = sbr.rel (%p380) target = $region20
        $region19: #{tpu_custom_call.1} parent=11 // pred_region
          _
        $region20: #{tpu_custom_call.1} parent=11 // pred_fallthru
          _
        // Predicated region
        $region21: #{tpu_custom_call.1} parent=11 // pred_check
          %p383 = pneg %p166
        $region22: #{tpu_custom_call.1} parent=11 // pred_check_branch
          %385 = sbr.rel (%p383) target = $region24
        $region23: #{tpu_custom_call.1} parent=11 // pred_region
          %s387 = ssub.s32 16, 16
          %388 = vsyncadd [#allocation10], %s387
          %s390 = sshll.u32 [#allocation11], 4
          %s391 = int_to_ptr.vmem [resolvable:$true] %s390
          %393 = dma.hbm_to_vmem [thread:$0]  %s5, 16, %s391, [#allocation10]
        $region24: #{tpu_custom_call.1} parent=11 // pred_fallthru
          _
        // Predicated region
        $region25: #{tpu_custom_call.1} parent=11 // pred_check
          %p394 = pneg %p187
        $region26: #{tpu_custom_call.1} parent=11 // pred_check_branch
          %396 = sbr.rel (%p394) target = $region28
        $region27: #{tpu_custom_call.1} parent=11 // pred_region
          _
        $region28: #{tpu_custom_call.1} parent=11 // pred_fallthru
          _
        // Predicated region
        $region29: #{tpu_custom_call.1} parent=11 // pred_check
          %p397 = pneg %p208
        $region30: #{tpu_custom_call.1} parent=11 // pred_check_branch
          %399 = sbr.rel (%p397) target = $region32
        $region31: #{tpu_custom_call.1} parent=11 // pred_region
          _
        $region32: #{tpu_custom_call.1} parent=11 // pred_fallthru
          _
        // Predicated region
        $region33: #{tpu_custom_call.1} parent=11 // pred_check
          %p400 = pneg %p229
        $region34: #{tpu_custom_call.1} parent=11 // pred_check_branch
          %402 = sbr.rel (%p400) target = $region36
        $region35: #{tpu_custom_call.1} parent=11 // pred_region
          _
        $region36: #{tpu_custom_call.1} parent=11 // pred_fallthru
          _
        // Predicated region
        $region37: #{tpu_custom_call.1} parent=11 // pred_check
          %p403 = pneg %p250
        $region38: #{tpu_custom_call.1} parent=11 // pred_check_branch
          %405 = sbr.rel (%p403) target = $region40
        $region39: #{tpu_custom_call.1} parent=11 // pred_region
          _
        $region40: #{tpu_custom_call.1} parent=11 // pred_fallthru
          _
        // Predicated region
        $region41: #{tpu_custom_call.1} parent=11 // pred_check
          %p406 = pneg %p271
        $region42: #{tpu_custom_call.1} parent=11 // pred_check_branch
          %408 = sbr.rel (%p406) target = $region44
        $region43: #{tpu_custom_call.1} parent=11 // pred_region
          _
        $region44: #{tpu_custom_call.1} parent=11 // pred_fallthru
          _
        // Predicated region
        $region45: #{tpu_custom_call.1} parent=11 // pred_check
          %p409 = pneg %p292
        $region46: #{tpu_custom_call.1} parent=11 // pred_check_branch
          %411 = sbr.rel (%p409) target = $region48
        $region47: #{tpu_custom_call.1} parent=11 // pred_region
          _
        $region48: #{tpu_custom_call.1} parent=11 // pred_fallthru
          _
        // Predicated region
        $region49: #{tpu_custom_call.1} parent=11 // pred_check
          %p412 = pneg %p313
        $region50: #{tpu_custom_call.1} parent=11 // pred_check_branch
          %414 = sbr.rel (%p412) target = $region52
        $region51: #{tpu_custom_call.1} parent=11 // pred_region
          _
        $region52: #{tpu_custom_call.1} parent=11 // pred_fallthru
          _
        // Predicated region
        $region53: #{tpu_custom_call.1} parent=11 // pred_check
          %p415 = pneg %p334
        $region54: #{tpu_custom_call.1} parent=11 // pred_check_branch
          %417 = sbr.rel (%p415) target = $region56
        $region55: #{tpu_custom_call.1} parent=11 // pred_region
          _
        $region56: #{tpu_custom_call.1} parent=11 // pred_fallthru
          _
      $region12: #{tpu_custom_call.1} parent=5 // pred_fallthru
        _
      %p418 = scmp.lt.s32.totalorder %s39, 4
      // Predicated region
      $region57: #{tpu_custom_call.1} parent=5 // pred_check
        %p419 = pneg %p418
      $region58: #{tpu_custom_call.1} parent=5 // pred_check_branch
        %421 = sbr.rel (%p419) target = $region60
      $region59: #{tpu_custom_call.1} parent=5 // pred_region
        // Predicated region
        $region61: #{tpu_custom_call.1} parent=59 // pred_check
          %p422 = pneg %p71
        $region62: #{tpu_custom_call.1} parent=59 // pred_check_branch
          %424 = sbr.rel (%p422) target = $region64
        $region63: #{tpu_custom_call.1} parent=59 // pred_region
          %s425 = sand.u32 %s61, 1
          %s426 = scalar_lea.sflag [#allocation7], %s425
          %s427 = sand.u32 %s61, 1
          %s428 = smul.addr %s427, 16
          %s429 = scalar_lea.vmem [#allocation6], %s428
          %s430 = smul.u32 2, %s47
          %s432 = ssub.s32 256, 256
          %433 = vsyncadd %s426, %s432
          %s434 = smul.addr %s430, 128
          %s435 = scalar_lea.hbm %s1, %s434
          %s436 = sshll.u32 %s429, 4
          %s437 = int_to_ptr.vmem [resolvable:$true] %s436
          %442 = dma.hbm_to_vmem [thread:$0]  %s435, 256, %s437, %s426, 128, 128, 8
        $region64: #{tpu_custom_call.1} parent=59 // pred_fallthru
          _
        // Predicated region
        $region65: #{tpu_custom_call.1} parent=59 // pred_check
          %p443 = pneg %p97
        $region66: #{tpu_custom_call.1} parent=59 // pred_check_branch
          %445 = sbr.rel (%p443) target = $region68
        $region67: #{tpu_custom_call.1} parent=59 // pred_region
          %s446 = sand.u32 %s39, 1
          %s447 = scalar_lea.sflag [#allocation10], %s446
          %s448 = sand.u32 %s87, 1
          %s449 = smul.addr %s448, 64
          %s450 = scalar_lea.vmem [#allocation9], %s449
          %s451 = smul.u32 8, %s46
          %s453 = ssub.s32 1024, 1024
          %454 = vsyncadd %s447, %s453
          %s455 = smul.addr %s451, 2
          %s456 = smul.addr %s455, 64
          %s457 = scalar_lea.hbm %s2, %s456
          %s458 = sshll.u32 %s450, 4
          %s459 = int_to_ptr.vmem [resolvable:$true] %s458
          %464 = dma.hbm_to_vmem [thread:$0]  %s457, 1024, %s459, %s447, 64, 64, 4
        $region68: #{tpu_custom_call.1} parent=59 // pred_fallthru
          _
      $region60: #{tpu_custom_call.1} parent=5 // pred_fallthru
        _
      %p465 = scmp.le.s32.totalorder 1, %s39
      %p466 = scmp.lt.s32.totalorder %s39, 5
      %p467 = pnand %p465, %p466
      %p468 = pneg %p467
      // Predicated region
      $region69: #{tpu_custom_call.1} parent=5 // pred_check
        _
      $region70: #{tpu_custom_call.1} parent=5 // pred_check_branch
        %470 = sbr.rel (%p467) target = $region72
      $region71: #{tpu_custom_call.1} parent=5 // pred_region
        %s471 = ssub.s32 %s39, 1
        %s472 = sand.u32 %s64, 1
        %s473 = scalar_lea.sflag [#allocation7], %s472
        %s474 = sand.u32 %s64, 1
        %s475 = smul.addr %s474, 16
        %s476 = scalar_lea.vmem [#allocation6], %s475
        // Predicated region
        $region73: #{tpu_custom_call.1} parent=71 // pred_check
          %p477 = pneg %p77
        $region74: #{tpu_custom_call.1} parent=71 // pred_check_branch
          %479 = sbr.rel (%p477) target = $region76
        $region75: #{tpu_custom_call.1} parent=71 // pred_region
          %480 = dma.done %s473, 256
        $region76: #{tpu_custom_call.1} parent=71 // pred_fallthru
          _
        %s481 = sand.u32 %s44, 1
        %s482 = scalar_lea.sflag [#allocation10], %s481
        %s483 = sand.u32 %s90, 1
        %s484 = smul.addr %s483, 64
        %s485 = scalar_lea.vmem [#allocation9], %s484
        // Predicated region
        $region77: #{tpu_custom_call.1} parent=71 // pred_check
          %p486 = pneg %p103
        $region78: #{tpu_custom_call.1} parent=71 // pred_check_branch
          %488 = sbr.rel (%p486) target = $region80
        $region79: #{tpu_custom_call.1} parent=71 // pred_region
          %489 = dma.done %s482, 1024
        $region80: #{tpu_custom_call.1} parent=71 // pred_fallthru
          _
        // Predicated region
        $region81: #{tpu_custom_call.1} parent=71 // pred_check
          %p490 = pneg %p166
        $region82: #{tpu_custom_call.1} parent=71 // pred_check_branch
          %492 = sbr.rel (%p490) target = $region84
        $region83: #{tpu_custom_call.1} parent=71 // pred_region
          %493 = dma.done [#allocation10], 16
        $region84: #{tpu_custom_call.1} parent=71 // pred_fallthru
          _
        %s494 = sand.u32 %s64, 1
        %s495 = scalar_lea.sflag [#allocation7], %s494
        %s496 = sand.u32 %s64, 1
        %s497 = smul.addr %s496, 16
        %s498 = scalar_lea.vmem [#allocation6], %s497
        %p499 = pneg %p77
        %p500 = pneg %p74
        %s501 = sand.u32 %s44, 1
        %s502 = scalar_lea.sflag [#allocation10], %s501
        %s503 = sand.u32 %s90, 1
        %s504 = smul.addr %s503, 64
        %s505 = scalar_lea.vmem [#allocation9], %s504
        %p506 = pneg %p103
        %p507 = pneg %p100
        %p508 = pneg %p124
        %p509 = pneg %p121
        %p510 = pneg %p145
        %p511 = pneg %p142
        %p512 = pneg %p166
        %p513 = pneg %p163
        %p514 = pneg %p187
        %p515 = pneg %p184
        %p516 = pneg %p208
        %p517 = pneg %p205
        %p518 = pneg %p229
        %p519 = pneg %p226
        %p520 = pneg %p250
        %p521 = pneg %p247
        %p522 = pneg %p271
        %p523 = pneg %p268
        %p524 = pneg %p292
        %p525 = pneg %p289
        %p526 = pneg %p313
        %p527 = pneg %p310
        %p528 = pneg %p334
        %p529 = pneg %p331
        %p530 = pneg %p362
        %p531 = pneg %p359
        %s532 = sand.u32 %s349, 1
        %s533 = scalar_lea.sflag [#allocation8], %s532
        %s534 = sand.u32 %s349, 1
        %s535 = smul.addr %s534, 2
        %s536 = scalar_lea.vmem [#allocation12], %s535
        %s537 = smul.u32 2, %s49
        %s538 = smul.u32 8, %s48
        %v540 = vld [vmem:[%s485] sm:$0xf]
        %v541 = vld [vmem:[%s485 + $0x4] sm:$0xf]
        %v542 = vld [vmem:[%s485 + $0x8] sm:$0xf]
        %v543 = vld [vmem:[%s485 + $0xc] sm:$0xf]
        %v544 = vld [vmem:[%s485 + $0x10] sm:$0xf]
        %v545 = vld [vmem:[%s485 + $0x14] sm:$0xf]
        %v546 = vld [vmem:[%s485 + $0x18] sm:$0xf]
        %v547 = vld [vmem:[%s485 + $0x1c] sm:$0xf]
        %v548 = vld [vmem:[%s485 + $0x20] sm:$0xf]
        %v549 = vld [vmem:[%s485 + $0x24] sm:$0xf]
        %v550 = vld [vmem:[%s485 + $0x28] sm:$0xf]
        %v551 = vld [vmem:[%s485 + $0x2c] sm:$0xf]
        %v552 = vld [vmem:[%s485 + $0x30] sm:$0xf]
        %v553 = vld [vmem:[%s485 + $0x34] sm:$0xf]
        %v554 = vld [vmem:[%s485 + $0x38] sm:$0xf]
        %v555 = vld [vmem:[%s485 + $0x3c] sm:$0xf]
        %v556 = vld [vmem:[%s476] sm:$0xff]
        %v557 = vld [vmem:[%s476 + $0x8] sm:$0xff]
        %v558 = vld [vmem:[%s3] sm:$0x1]
        %v560 = vlaneseq
        %v561 = vshrl.u32 %v560, 7
        %v562 = vsub.s32 0, %v561
        %v563 = vrot.slane %v558, %v562
        %v565 = vmul.f32 %v556, %v563
        %v566 = vmul.f32 %v557, %v563
        %v567 = vpack.c.bf16 %v565, %v565
        %v568 = vpack.c.bf16 %v566, %v566
        %v585 = vunpack.c.l.b16 %v540
        %v586 = vunpack.c.l.b16 %v541
        %v587 = vunpack.c.l.b16 %v542
        %v588 = vunpack.c.l.b16 %v543
        %v589 = vunpack.c.l.b16 %v544
        %v590 = vunpack.c.l.b16 %v545
        %v591 = vunpack.c.l.b16 %v546
        %v592 = vunpack.c.l.b16 %v547
        %v593 = vunpack.c.l.b16 %v548
        %v594 = vunpack.c.l.b16 %v549
        %v595 = vunpack.c.l.b16 %v550
        %v596 = vunpack.c.l.b16 %v551
        %v597 = vunpack.c.l.b16 %v552
        %v598 = vunpack.c.l.b16 %v553
        %v599 = vunpack.c.l.b16 %v554
        %v600 = vunpack.c.l.b16 %v555
        %v601 = vpack.c.b16 %v586, %v585
        %v602 = vpack.c.b16 %v588, %v587
        %v603 = vpack.c.b16 %v590, %v589
        %v604 = vpack.c.b16 %v592, %v591
        %v605 = vpack.c.b16 %v594, %v593
        %v606 = vpack.c.b16 %v596, %v595
        %v607 = vpack.c.b16 %v598, %v597
        %v608 = vpack.c.b16 %v600, %v599
        %v611 = vunpack.c.l.b16 %v567
        %v612 = vunpack.c.l.b16 %v568
        %v613 = vpack.c.b16 %v612, %v611
        %vm614 = vcmask 261120
        %v616 = vsel %vm614, %v601, 0
        %v619 = vsel %vm614, %v602, 0
        %v622 = vsel %vm614, %v603, 0
        %v625 = vsel %vm614, %v604, 0
        %v628 = vsel %vm614, %v605, 0
        %v631 = vsel %vm614, %v606, 0
        %v634 = vsel %vm614, %v607, 0
        %v637 = vsel %vm614, %v608, 0
        %v640 = vsel %vm614, %v613, 0
        %642 = vmatprep.subr.bf16.mxu0 0
        %643 = vmatpush1.bf16.xpose.msra.mxu0 %v640
        %644 = vmatprep.subr.bf16.mxu0 0
        %645 = vmatpush1.bf16.xpose.msra.mxu0 0
        %646 = vmatprep.subr.bf16.mxu0 0
        %647 = vmatpush1.bf16.xpose.msra.mxu0 0
        %648 = vmatprep.subr.bf16.mxu0 0
        %649 = vmatpush1.bf16.xpose.msra.mxu0 0
        %650 = vmatprep.subr.bf16.mxu0 0
        %651 = vmatpush1.bf16.xpose.msra.mxu0 0
        %652 = vmatprep.subr.bf16.mxu0 0
        %653 = vmatpush1.bf16.xpose.msra.mxu0 0
        %654 = vmatprep.subr.bf16.mxu0 0
        %655 = vmatpush1.bf16.xpose.msra.mxu0 0
        %656 = vmatprep.subr.bf16.mxu0 0
        %657 = vmatpush1.bf16.xpose.msra.mxu0 0
        %658 = vmatprep.subr.bf16.mxu0 0
        %659 = vmatpush1.bf16.xpose.msra.mxu0 0
        %660 = vmatprep.subr.bf16.mxu0 0
        %661 = vmatpush1.bf16.xpose.msra.mxu0 0
        %662 = vmatprep.subr.bf16.mxu0 0
        %663 = vmatpush1.bf16.xpose.msra.mxu0 0
        %664 = vmatprep.subr.bf16.mxu0 0
        %665 = vmatpush1.bf16.xpose.msra.mxu0 0
        %666 = vmatprep.subr.bf16.mxu0 0
        %667 = vmatpush1.bf16.xpose.msra.mxu0 0
        %668 = vmatprep.subr.bf16.mxu0 0
        %669 = vmatpush1.bf16.xpose.msra.mxu0 0
        %670 = vmatprep.subr.bf16.mxu0 0
        %671 = vmatpush1.bf16.xpose.msra.mxu0 0
        %672 = vmatprep.subr.bf16.mxu0 0
        %673 = vmatpush1.bf16.xpose.msra.mxu0 0
        %674 = vmatprep.mubr.bf16.mxu0 0
        %675 = vmatmul.mubr.bf16.gmra.mrb[0].mxu0 %v616
        %v676 = vpop.f32.mrb[0].mxu0
        %v677 = vadd.f32 0.0, %v676
        %v678 = vpop.f32.mrb[0].mxu0
        %v679 = vpop.f32.mrb[0].mxu0
        %v680 = vadd.f32 0.0, %v679
        %v681 = vpop.f32.mrb[0].mxu0
        %682 = vmatprep.mubr.bf16.mxu0 0
        %683 = vmatmul.mubr.bf16.gmra.mrb[0].mxu0 %v619
        %v684 = vpop.f32.mrb[0].mxu0
        %v685 = vadd.f32 0.0, %v684
        %v686 = vpop.f32.mrb[0].mxu0
        %v687 = vpop.f32.mrb[0].mxu0
        %v688 = vadd.f32 0.0, %v687
        %v689 = vpop.f32.mrb[0].mxu0
        %690 = vmatprep.mubr.bf16.mxu0 0
        %691 = vmatmul.mubr.bf16.gmra.mrb[0].mxu0 %v622
        %v692 = vpop.f32.mrb[0].mxu0
        %v693 = vadd.f32 0.0, %v692
        %v694 = vpop.f32.mrb[0].mxu0
        %v695 = vpop.f32.mrb[0].mxu0
        %v696 = vadd.f32 0.0, %v695
        %v697 = vpop.f32.mrb[0].mxu0
        %698 = vmatprep.mubr.bf16.mxu0 0
        %699 = vmatmul.mubr.bf16.gmra.mrb[0].mxu0 %v625
        %v700 = vpop.f32.mrb[0].mxu0
        %v701 = vadd.f32 0.0, %v700
        %v702 = vpop.f32.mrb[0].mxu0
        %v703 = vpop.f32.mrb[0].mxu0
        %v704 = vadd.f32 0.0, %v703
        %v705 = vpop.f32.mrb[0].mxu0
        %706 = vmatprep.mubr.bf16.mxu0 0
        %707 = vmatmul.mubr.bf16.gmra.mrb[0].mxu0 %v628
        %v708 = vpop.f32.mrb[0].mxu0
        %v709 = vadd.f32 0.0, %v708
        %v710 = vpop.f32.mrb[0].mxu0
        %v711 = vpop.f32.mrb[0].mxu0
        %v712 = vadd.f32 0.0, %v711
        %v713 = vpop.f32.mrb[0].mxu0
        %714 = vmatprep.mubr.bf16.mxu0 0
        %715 = vmatmul.mubr.bf16.gmra.mrb[0].mxu0 %v631
        %v716 = vpop.f32.mrb[0].mxu0
        %v717 = vadd.f32 0.0, %v716
        %v718 = vpop.f32.mrb[0].mxu0
        %v719 = vpop.f32.mrb[0].mxu0
        %v720 = vadd.f32 0.0, %v719
        %v721 = vpop.f32.mrb[0].mxu0
        %722 = vmatprep.mubr.bf16.mxu0 0
        %723 = vmatmul.mubr.bf16.gmra.mrb[0].mxu0 %v634
        %v724 = vpop.f32.mrb[0].mxu0
        %v725 = vadd.f32 0.0, %v724
        %v726 = vpop.f32.mrb[0].mxu0
        %v727 = vpop.f32.mrb[0].mxu0
        %v728 = vadd.f32 0.0, %v727
        %v729 = vpop.f32.mrb[0].mxu0
        %730 = vmatprep.mubr.bf16.mxu0 0
        %731 = vmatmul.mubr.bf16.gmra.mrb[0].mxu0 %v637
        %v732 = vpop.f32.mrb[0].mxu0
        %v733 = vadd.f32 0.0, %v732
        %v734 = vpop.f32.mrb[0].mxu0
        %v735 = vpop.f32.mrb[0].mxu0
        %v736 = vadd.f32 0.0, %v735
        %v737 = vpop.f32.mrb[0].mxu0
        %738 = vdwg.mxu0
        %s739 = smul.u32 %s49, 2
        %s740 = sld [smem:[#allocation3 + %s739]]
        %p741 = scmp.gt.s32.totalorder %s740, 1
        %s742 = scalar_select %p741, %s740, 1
        %v743 = vld [vmem:[%s4] sm:$0xf]
        %v744 = vld [vmem:[%s4 + $0x4] sm:$0xf]
        %v745 = vld [vmem:[#allocation11] sm:$0x1]
        %v746 = vld [vmem:[%s6] sm:$0xf]
        %v747 = vld [vmem:[%s6 + $0x4] sm:$0xf]
        %v748 = vld [vmem:[%s7] sm:$0x1]
        %v749 = vld [vmem:[%s8] sm:$0xf]
        %v750 = vld [vmem:[%s8 + $0x4] sm:$0xf]
        %v751 = vld [vmem:[%s9] sm:$0x1]
        %v752 = vld [vmem:[%s10] sm:$0x1]
        %v753 = vld [vmem:[#allocation4] sm:$0x1]
        %v754 = vld [vmem:[%s12] sm:$0x1]
        %v755 = vld [vmem:[#allocation5] sm:$0x1]
        %s756 = scvt.s32.f32 %s742
        %v757 = vstv %s756
        %v758 = vrcp.pop %v757
        %s759 = vtos %v758
        %v760 = vlaneseq
        %v761 = vand.u32 %v760, 127
        %v762 = vstv %s742
        %vm763 = vcmp.lt.s32.totalorder %v761, %v762
        %v764 = vlaneseq
        %v765 = vshrl.u32 %v764, 7
        %vm766 = vcmp.lt.s32.totalorder %v765, %v762
        %v767 = vsel %vm766, 1, 0
        %v768 = vcvt.s32.f32 %v767
        %vm769 = vcmp.ge.f32.partialorder %v677, 0.0
        %vm770 = vcmp.ge.f32.partialorder %v680, 0.0
        %vm771 = vcmp.ge.f32.partialorder %v685, 0.0
        %vm772 = vcmp.ge.f32.partialorder %v688, 0.0
        %vm773 = vcmp.ge.f32.partialorder %v693, 0.0
        %vm774 = vcmp.ge.f32.partialorder %v696, 0.0
        %vm775 = vcmp.ge.f32.partialorder %v701, 0.0
        %vm776 = vcmp.ge.f32.partialorder %v704, 0.0
        %vm777 = vcmp.ge.f32.partialorder %v709, 0.0
        %vm778 = vcmp.ge.f32.partialorder %v712, 0.0
        %vm779 = vcmp.ge.f32.partialorder %v717, 0.0
        %vm780 = vcmp.ge.f32.partialorder %v720, 0.0
        %vm781 = vcmp.ge.f32.partialorder %v725, 0.0
        %vm782 = vcmp.ge.f32.partialorder %v728, 0.0
        %vm783 = vcmp.ge.f32.partialorder %v733, 0.0
        %vm784 = vcmp.ge.f32.partialorder %v736, 0.0
        %v785 = vmul.f32 %v677, 0.1
        %v786 = vmul.f32 %v680, 0.1
        %v787 = vmul.f32 %v685, 0.1
        %v788 = vmul.f32 %v688, 0.1
        %v789 = vmul.f32 %v693, 0.1
        %v790 = vmul.f32 %v696, 0.1
        %v791 = vmul.f32 %v701, 0.1
        %v792 = vmul.f32 %v704, 0.1
        %v793 = vmul.f32 %v709, 0.1
        %v794 = vmul.f32 %v712, 0.1
        %v795 = vmul.f32 %v717, 0.1
        %v796 = vmul.f32 %v720, 0.1
        %v797 = vmul.f32 %v725, 0.1
        %v798 = vmul.f32 %v728, 0.1
        %v799 = vmul.f32 %v733, 0.1
        %v800 = vmul.f32 %v736, 0.1
        %v801 = vsel %vm769, %v677, %v785
        %v802 = vsel %vm770, %v680, %v786
        %v803 = vsel %vm771, %v685, %v787
        %v804 = vsel %vm772, %v688, %v788
        %v805 = vsel %vm773, %v693, %v789
        %v806 = vsel %vm774, %v696, %v790
        %v807 = vsel %vm775, %v701, %v791
        %v808 = vsel %vm776, %v704, %v792
        %v809 = vsel %vm777, %v709, %v793
        %v810 = vsel %vm778, %v712, %v794
        %v811 = vsel %vm779, %v717, %v795
        %v812 = vsel %vm780, %v720, %v796
        %v813 = vsel %vm781, %v725, %v797
        %v814 = vsel %vm782, %v728, %v798
        %v815 = vsel %vm783, %v733, %v799
        %v816 = vsel %vm784, %v736, %v800
        %v817 = vsel %vm763, 1, 0
        %v818 = vcvt.s32.f32 %v817
        %v819 = vmul.f32 %v801, %v818
        %v820 = vmul.f32 %v802, %v818
        %v821 = vmul.f32 %v803, %v818
        %v822 = vmul.f32 %v804, %v818
        %v823 = vmul.f32 %v805, %v818
        %v824 = vmul.f32 %v806, %v818
        %v825 = vmul.f32 %v807, %v818
        %v826 = vmul.f32 %v808, %v818
        %v827 = vmul.f32 %v809, %v818
        %v828 = vmul.f32 %v810, %v818
        %v829 = vmul.f32 %v811, %v818
        %v830 = vmul.f32 %v812, %v818
        %v831 = vmul.f32 %v813, %v818
        %v832 = vmul.f32 %v814, %v818
        %v833 = vmul.f32 %v815, %v818
        %v834 = vmul.f32 %v816, %v818
        %v835 = vmul.f32 %v819, %v819
        %v836 = vmul.f32 %v820, %v820
        %v837 = vmul.f32 %v821, %v821
        %v838 = vmul.f32 %v822, %v822
        %v839 = vmul.f32 %v823, %v823
        %v840 = vmul.f32 %v824, %v824
        %v841 = vmul.f32 %v825, %v825
        %v842 = vmul.f32 %v826, %v826
        %v843 = vmul.f32 %v827, %v827
        %v844 = vmul.f32 %v828, %v828
        %v845 = vmul.f32 %v829, %v829
        %v846 = vmul.f32 %v830, %v830
        %v847 = vmul.f32 %v831, %v831
        %v848 = vmul.f32 %v832, %v832
        %v849 = vmul.f32 %v833, %v833
        %v850 = vmul.f32 %v834, %v834
        %vm851 = vcmask 64512
        %v852 = vsel %vm851, %v835, 0.0
        %853 = vadd.xlane.f32.xlu0 %v852
        %v854 = vpop.xlane.xlu0 %853
        %v855 = vsel %vm851, %v836, 0.0
        %856 = vadd.xlane.f32.xlu0 %v855
        %v857 = vpop.xlane.xlu0 %856
        %v858 = vsel %vm851, %v837, 0.0
        %859 = vadd.xlane.f32.xlu0 %v858
        %v860 = vpop.xlane.xlu0 %859
        %v861 = vsel %vm851, %v838, 0.0
        %862 = vadd.xlane.f32.xlu0 %v861
        %v863 = vpop.xlane.xlu0 %862
        %v864 = vsel %vm851, %v839, 0.0
        %865 = vadd.xlane.f32.xlu0 %v864
        %v866 = vpop.xlane.xlu0 %865
        %v867 = vsel %vm851, %v840, 0.0
        %868 = vadd.xlane.f32.xlu0 %v867
        %v869 = vpop.xlane.xlu0 %868
        %v870 = vsel %vm851, %v841, 0.0
        %871 = vadd.xlane.f32.xlu0 %v870
        %v872 = vpop.xlane.xlu0 %871
        %v873 = vsel %vm851, %v842, 0.0
        %874 = vadd.xlane.f32.xlu0 %v873
        %v875 = vpop.xlane.xlu0 %874
        %v876 = vsel %vm851, %v843, 0.0
        %877 = vadd.xlane.f32.xlu0 %v876
        %v878 = vpop.xlane.xlu0 %877
        %v879 = vsel %vm851, %v844, 0.0
        %880 = vadd.xlane.f32.xlu0 %v879
        %v881 = vpop.xlane.xlu0 %880
        %v882 = vsel %vm851, %v845, 0.0
        %883 = vadd.xlane.f32.xlu0 %v882
        %v884 = vpop.xlane.xlu0 %883
        %v885 = vsel %vm851, %v846, 0.0
        %886 = vadd.xlane.f32.xlu0 %v885
        %v887 = vpop.xlane.xlu0 %886
        %v888 = vsel %vm851, %v847, 0.0
        %889 = vadd.xlane.f32.xlu0 %v888
        %v890 = vpop.xlane.xlu0 %889
        %v891 = vsel %vm851, %v848, 0.0
        %892 = vadd.xlane.f32.xlu0 %v891
        %v893 = vpop.xlane.xlu0 %892
        %v894 = vsel %vm851, %v849, 0.0
        %895 = vadd.xlane.f32.xlu0 %v894
        %v896 = vpop.xlane.xlu0 %895
        %v897 = vsel %vm851, %v850, 0.0
        %898 = vadd.xlane.f32.xlu0 %v897
        %v899 = vpop.xlane.xlu0 %898
        %v900 = vadd.f32 %v854, 1e-08
        %v901 = vadd.f32 %v857, 1e-08
        %v902 = vadd.f32 %v860, 1e-08
        %v903 = vadd.f32 %v863, 1e-08
        %v904 = vadd.f32 %v866, 1e-08
        %v905 = vadd.f32 %v869, 1e-08
        %v906 = vadd.f32 %v872, 1e-08
        %v907 = vadd.f32 %v875, 1e-08
        %v908 = vadd.f32 %v878, 1e-08
        %v909 = vadd.f32 %v881, 1e-08
        %v910 = vadd.f32 %v884, 1e-08
        %v911 = vadd.f32 %v887, 1e-08
        %v912 = vadd.f32 %v890, 1e-08
        %v913 = vadd.f32 %v893, 1e-08
        %v914 = vadd.f32 %v896, 1e-08
        %v915 = vadd.f32 %v899, 1e-08
        %v916 = vrsqrt.pop %v900
        %v917 = vrsqrt.pop %v901
        %v918 = vrsqrt.pop %v902
        %v919 = vrsqrt.pop %v903
        %v920 = vrsqrt.pop %v904
        %v921 = vrsqrt.pop %v905
        %v922 = vrsqrt.pop %v906
        %v923 = vrsqrt.pop %v907
        %v924 = vrsqrt.pop %v908
        %v925 = vrsqrt.pop %v909
        %v926 = vrsqrt.pop %v910
        %v927 = vrsqrt.pop %v911
        %v928 = vrsqrt.pop %v912
        %v929 = vrsqrt.pop %v913
        %v930 = vrsqrt.pop %v914
        %v931 = vrsqrt.pop %v915
        %v932 = vmul.f32 %v819, %v916
        %v933 = vmul.f32 %v820, %v917
        %v934 = vmul.f32 %v821, %v918
        %v935 = vmul.f32 %v822, %v919
        %v936 = vmul.f32 %v823, %v920
        %v937 = vmul.f32 %v824, %v921
        %v938 = vmul.f32 %v825, %v922
        %v939 = vmul.f32 %v826, %v923
        %v940 = vmul.f32 %v827, %v924
        %v941 = vmul.f32 %v828, %v925
        %v942 = vmul.f32 %v829, %v926
        %v943 = vmul.f32 %v830, %v927
        %v944 = vmul.f32 %v831, %v928
        %v945 = vmul.f32 %v832, %v929
        %v946 = vmul.f32 %v833, %v930
        %v947 = vmul.f32 %v834, %v931
        %948 = vxpose.xlu0.b32.start [1/16] %v932, 128
        %949 = vxpose.xlu0.b32.cont [2/16] %v933, 128
        %950 = vxpose.xlu0.b32.cont [3/16] 0.0, 128
        %951 = vxpose.xlu0.b32.cont [4/16] 0.0, 128
        %952 = vxpose.xlu0.b32.cont [5/16] 0.0, 128
        %953 = vxpose.xlu0.b32.cont [6/16] 0.0, 128
        %954 = vxpose.xlu0.b32.cont [7/16] 0.0, 128
        %955 = vxpose.xlu0.b32.cont [8/16] 0.0, 128
        %956 = vxpose.xlu0.b32.cont [9/16] 0.0, 128
        %957 = vxpose.xlu0.b32.cont [10/16] 0.0, 128
        %958 = vxpose.xlu0.b32.cont [11/16] 0.0, 128
        %959 = vxpose.xlu0.b32.cont [12/16] 0.0, 128
        %960 = vxpose.xlu0.b32.cont [13/16] 0.0, 128
        %961 = vxpose.xlu0.b32.cont [14/16] 0.0, 128
        %962 = vxpose.xlu0.b32.cont [15/16] 0.0, 128
        %963 = vxpose.xlu0.b32.end [16/16] 0.0, 128
        %v964 = vpop.trf.xlu0
        %v965 = vpop.trf.xlu0
        %v966 = vpop.trf.xlu0
        %v967 = vpop.trf.xlu0
        %v968 = vpop.trf.xlu0
        %v969 = vpop.trf.xlu0
        %v970 = vpop.trf.xlu0
        %v971 = vpop.trf.xlu0
        %v972 = vpop.trf.xlu0
        %v973 = vpop.trf.xlu0
        %v974 = vpop.trf.xlu0
        %v975 = vpop.trf.xlu0
        %v976 = vpop.trf.xlu0
        %v977 = vpop.trf.xlu0
        %v978 = vpop.trf.xlu0
        %v979 = vpop.trf.xlu0
        %980 = vxpose.xlu0.b32.start [1/16] %v934, 128
        %981 = vxpose.xlu0.b32.cont [2/16] %v935, 128
        %982 = vxpose.xlu0.b32.cont [3/16] 0.0, 128
        %983 = vxpose.xlu0.b32.cont [4/16] 0.0, 128
        %984 = vxpose.xlu0.b32.cont [5/16] 0.0, 128
        %985 = vxpose.xlu0.b32.cont [6/16] 0.0, 128
        %986 = vxpose.xlu0.b32.cont [7/16] 0.0, 128
        %987 = vxpose.xlu0.b32.cont [8/16] 0.0, 128
        %988 = vxpose.xlu0.b32.cont [9/16] 0.0, 128
        %989 = vxpose.xlu0.b32.cont [10/16] 0.0, 128
        %990 = vxpose.xlu0.b32.cont [11/16] 0.0, 128
        %991 = vxpose.xlu0.b32.cont [12/16] 0.0, 128
        %992 = vxpose.xlu0.b32.cont [13/16] 0.0, 128
        %993 = vxpose.xlu0.b32.cont [14/16] 0.0, 128
        %994 = vxpose.xlu0.b32.cont [15/16] 0.0, 128
        %995 = vxpose.xlu0.b32.end [16/16] 0.0, 128
        %v996 = vpop.trf.xlu0
        %v997 = vpop.trf.xlu0
        %v998 = vpop.trf.xlu0
        %v999 = vpop.trf.xlu0
        %v1000 = vpop.trf.xlu0
        %v1001 = vpop.trf.xlu0
        %v1002 = vpop.trf.xlu0
        %v1003 = vpop.trf.xlu0
        %v1004 = vpop.trf.xlu0
        %v1005 = vpop.trf.xlu0
        %v1006 = vpop.trf.xlu0
        %v1007 = vpop.trf.xlu0
        %v1008 = vpop.trf.xlu0
        %v1009 = vpop.trf.xlu0
        %v1010 = vpop.trf.xlu0
        %v1011 = vpop.trf.xlu0
        %1012 = vxpose.xlu0.b32.start [1/16] %v936, 128
        %1013 = vxpose.xlu0.b32.cont [2/16] %v937, 128
        %1014 = vxpose.xlu0.b32.cont [3/16] 0.0, 128
        %1015 = vxpose.xlu0.b32.cont [4/16] 0.0, 128
        %1016 = vxpose.xlu0.b32.cont [5/16] 0.0, 128
        %1017 = vxpose.xlu0.b32.cont [6/16] 0.0, 128
        %1018 = vxpose.xlu0.b32.cont [7/16] 0.0, 128
        %1019 = vxpose.xlu0.b32.cont [8/16] 0.0, 128
        %1020 = vxpose.xlu0.b32.cont [9/16] 0.0, 128
        %1021 = vxpose.xlu0.b32.cont [10/16] 0.0, 128
        %1022 = vxpose.xlu0.b32.cont [11/16] 0.0, 128
        %1023 = vxpose.xlu0.b32.cont [12/16] 0.0, 128
        %1024 = vxpose.xlu0.b32.cont [13/16] 0.0, 128
        %1025 = vxpose.xlu0.b32.cont [14/16] 0.0, 128
        %1026 = vxpose.xlu0.b32.cont [15/16] 0.0, 128
        %1027 = vxpose.xlu0.b32.end [16/16] 0.0, 128
        %v1028 = vpop.trf.xlu0
        %v1029 = vpop.trf.xlu0
        %v1030 = vpop.trf.xlu0
        %v1031 = vpop.trf.xlu0
        %v1032 = vpop.trf.xlu0
        %v1033 = vpop.trf.xlu0
        %v1034 = vpop.trf.xlu0
        %v1035 = vpop.trf.xlu0
        %v1036 = vpop.trf.xlu0
        %v1037 = vpop.trf.xlu0
        %v1038 = vpop.trf.xlu0
        %v1039 = vpop.trf.xlu0
        %v1040 = vpop.trf.xlu0
        %v1041 = vpop.trf.xlu0
        %v1042 = vpop.trf.xlu0
        %v1043 = vpop.trf.xlu0
        %1044 = vxpose.xlu0.b32.start [1/16] %v938, 128
        %1045 = vxpose.xlu0.b32.cont [2/16] %v939, 128
        %1046 = vxpose.xlu0.b32.cont [3/16] 0.0, 128
        %1047 = vxpose.xlu0.b32.cont [4/16] 0.0, 128
        %1048 = vxpose.xlu0.b32.cont [5/16] 0.0, 128
        %1049 = vxpose.xlu0.b32.cont [6/16] 0.0, 128
        %1050 = vxpose.xlu0.b32.cont [7/16] 0.0, 128
        %1051 = vxpose.xlu0.b32.cont [8/16] 0.0, 128
        %1052 = vxpose.xlu0.b32.cont [9/16] 0.0, 128
        %1053 = vxpose.xlu0.b32.cont [10/16] 0.0, 128
        %1054 = vxpose.xlu0.b32.cont [11/16] 0.0, 128
        %1055 = vxpose.xlu0.b32.cont [12/16] 0.0, 128
        %1056 = vxpose.xlu0.b32.cont [13/16] 0.0, 128
        %1057 = vxpose.xlu0.b32.cont [14/16] 0.0, 128
        %1058 = vxpose.xlu0.b32.cont [15/16] 0.0, 128
        %1059 = vxpose.xlu0.b32.end [16/16] 0.0, 128
        %v1060 = vpop.trf.xlu0
        %v1061 = vpop.trf.xlu0
        %v1062 = vpop.trf.xlu0
        %v1063 = vpop.trf.xlu0
        %v1064 = vpop.trf.xlu0
        %v1065 = vpop.trf.xlu0
        %v1066 = vpop.trf.xlu0
        %v1067 = vpop.trf.xlu0
        %v1068 = vpop.trf.xlu0
        %v1069 = vpop.trf.xlu0
        %v1070 = vpop.trf.xlu0
        %v1071 = vpop.trf.xlu0
        %v1072 = vpop.trf.xlu0
        %v1073 = vpop.trf.xlu0
        %v1074 = vpop.trf.xlu0
        %v1075 = vpop.trf.xlu0
        %1076 = vxpose.xlu0.b32.start [1/16] %v940, 128
        %1077 = vxpose.xlu0.b32.cont [2/16] %v941, 128
        %1078 = vxpose.xlu0.b32.cont [3/16] 0.0, 128
        %1079 = vxpose.xlu0.b32.cont [4/16] 0.0, 128
        %1080 = vxpose.xlu0.b32.cont [5/16] 0.0, 128
        %1081 = vxpose.xlu0.b32.cont [6/16] 0.0, 128
        %1082 = vxpose.xlu0.b32.cont [7/16] 0.0, 128
        %1083 = vxpose.xlu0.b32.cont [8/16] 0.0, 128
        %1084 = vxpose.xlu0.b32.cont [9/16] 0.0, 128
        %1085 = vxpose.xlu0.b32.cont [10/16] 0.0, 128
        %1086 = vxpose.xlu0.b32.cont [11/16] 0.0, 128
        %1087 = vxpose.xlu0.b32.cont [12/16] 0.0, 128
        %1088 = vxpose.xlu0.b32.cont [13/16] 0.0, 128
        %1089 = vxpose.xlu0.b32.cont [14/16] 0.0, 128
        %1090 = vxpose.xlu0.b32.cont [15/16] 0.0, 128
        %1091 = vxpose.xlu0.b32.end [16/16] 0.0, 128
        %v1092 = vpop.trf.xlu0
        %v1093 = vpop.trf.xlu0
        %v1094 = vpop.trf.xlu0
        %v1095 = vpop.trf.xlu0
        %v1096 = vpop.trf.xlu0
        %v1097 = vpop.trf.xlu0
        %v1098 = vpop.trf.xlu0
        %v1099 = vpop.trf.xlu0
        %v1100 = vpop.trf.xlu0
        %v1101 = vpop.trf.xlu0
        %v1102 = vpop.trf.xlu0
        %v1103 = vpop.trf.xlu0
        %v1104 = vpop.trf.xlu0
        %v1105 = vpop.trf.xlu0
        %v1106 = vpop.trf.xlu0
        %v1107 = vpop.trf.xlu0
        %1108 = vxpose.xlu0.b32.start [1/16] %v942, 128
        %1109 = vxpose.xlu0.b32.cont [2/16] %v943, 128
        %1110 = vxpose.xlu0.b32.cont [3/16] 0.0, 128
        %1111 = vxpose.xlu0.b32.cont [4/16] 0.0, 128
        %1112 = vxpose.xlu0.b32.cont [5/16] 0.0, 128
        %1113 = vxpose.xlu0.b32.cont [6/16] 0.0, 128
        %1114 = vxpose.xlu0.b32.cont [7/16] 0.0, 128
        %1115 = vxpose.xlu0.b32.cont [8/16] 0.0, 128
        %1116 = vxpose.xlu0.b32.cont [9/16] 0.0, 128
        %1117 = vxpose.xlu0.b32.cont [10/16] 0.0, 128
        %1118 = vxpose.xlu0.b32.cont [11/16] 0.0, 128
        %1119 = vxpose.xlu0.b32.cont [12/16] 0.0, 128
        %1120 = vxpose.xlu0.b32.cont [13/16] 0.0, 128
        %1121 = vxpose.xlu0.b32.cont [14/16] 0.0, 128
        %1122 = vxpose.xlu0.b32.cont [15/16] 0.0, 128
        %1123 = vxpose.xlu0.b32.end [16/16] 0.0, 128
        %v1124 = vpop.trf.xlu0
        %v1125 = vpop.trf.xlu0
        %v1126 = vpop.trf.xlu0
        %v1127 = vpop.trf.xlu0
        %v1128 = vpop.trf.xlu0
        %v1129 = vpop.trf.xlu0
        %v1130 = vpop.trf.xlu0
        %v1131 = vpop.trf.xlu0
        %v1132 = vpop.trf.xlu0
        %v1133 = vpop.trf.xlu0
        %v1134 = vpop.trf.xlu0
        %v1135 = vpop.trf.xlu0
        %v1136 = vpop.trf.xlu0
        %v1137 = vpop.trf.xlu0
        %v1138 = vpop.trf.xlu0
        %v1139 = vpop.trf.xlu0
        %1140 = vxpose.xlu0.b32.start [1/16] %v944, 128
        %1141 = vxpose.xlu0.b32.cont [2/16] %v945, 128
        %1142 = vxpose.xlu0.b32.cont [3/16] 0.0, 128
        %1143 = vxpose.xlu0.b32.cont [4/16] 0.0, 128
        %1144 = vxpose.xlu0.b32.cont [5/16] 0.0, 128
        %1145 = vxpose.xlu0.b32.cont [6/16] 0.0, 128
        %1146 = vxpose.xlu0.b32.cont [7/16] 0.0, 128
        %1147 = vxpose.xlu0.b32.cont [8/16] 0.0, 128
        %1148 = vxpose.xlu0.b32.cont [9/16] 0.0, 128
        %1149 = vxpose.xlu0.b32.cont [10/16] 0.0, 128
        %1150 = vxpose.xlu0.b32.cont [11/16] 0.0, 128
        %1151 = vxpose.xlu0.b32.cont [12/16] 0.0, 128
        %1152 = vxpose.xlu0.b32.cont [13/16] 0.0, 128
        %1153 = vxpose.xlu0.b32.cont [14/16] 0.0, 128
        %1154 = vxpose.xlu0.b32.cont [15/16] 0.0, 128
        %1155 = vxpose.xlu0.b32.end [16/16] 0.0, 128
        %v1156 = vpop.trf.xlu0
        %v1157 = vpop.trf.xlu0
        %v1158 = vpop.trf.xlu0
        %v1159 = vpop.trf.xlu0
        %v1160 = vpop.trf.xlu0
        %v1161 = vpop.trf.xlu0
        %v1162 = vpop.trf.xlu0
        %v1163 = vpop.trf.xlu0
        %v1164 = vpop.trf.xlu0
        %v1165 = vpop.trf.xlu0
        %v1166 = vpop.trf.xlu0
        %v1167 = vpop.trf.xlu0
        %v1168 = vpop.trf.xlu0
        %v1169 = vpop.trf.xlu0
        %v1170 = vpop.trf.xlu0
        %v1171 = vpop.trf.xlu0
        %1172 = vxpose.xlu0.b32.start [1/16] %v946, 128
        %1173 = vxpose.xlu0.b32.cont [2/16] %v947, 128
        %1174 = vxpose.xlu0.b32.cont [3/16] 0.0, 128
        %1175 = vxpose.xlu0.b32.cont [4/16] 0.0, 128
        %1176 = vxpose.xlu0.b32.cont [5/16] 0.0, 128
        %1177 = vxpose.xlu0.b32.cont [6/16] 0.0, 128
        %1178 = vxpose.xlu0.b32.cont [7/16] 0.0, 128
        %1179 = vxpose.xlu0.b32.cont [8/16] 0.0, 128
        %1180 = vxpose.xlu0.b32.cont [9/16] 0.0, 128
        %1181 = vxpose.xlu0.b32.cont [10/16] 0.0, 128
        %1182 = vxpose.xlu0.b32.cont [11/16] 0.0, 128
        %1183 = vxpose.xlu0.b32.cont [12/16] 0.0, 128
        %1184 = vxpose.xlu0.b32.cont [13/16] 0.0, 128
        %1185 = vxpose.xlu0.b32.cont [14/16] 0.0, 128
        %1186 = vxpose.xlu0.b32.cont [15/16] 0.0, 128
        %1187 = vxpose.xlu0.b32.end [16/16] 0.0, 128
        %v1188 = vpop.trf.xlu0
        %v1189 = vpop.trf.xlu0
        %v1190 = vpop.trf.xlu0
        %v1191 = vpop.trf.xlu0
        %v1192 = vpop.trf.xlu0
        %v1193 = vpop.trf.xlu0
        %v1194 = vpop.trf.xlu0
        %v1195 = vpop.trf.xlu0
        %v1196 = vpop.trf.xlu0
        %v1197 = vpop.trf.xlu0
        %v1198 = vpop.trf.xlu0
        %v1199 = vpop.trf.xlu0
        %v1200 = vpop.trf.xlu0
        %v1201 = vpop.trf.xlu0
        %v1202 = vpop.trf.xlu0
        %v1203 = vpop.trf.xlu0
        %v1204 = vmul.f32 %v964, 9.0
        %v1205 = vmul.f32 %v996, 9.0
        %v1206 = vmul.f32 %v1028, 9.0
        %v1207 = vmul.f32 %v1060, 9.0
        %v1208 = vmul.f32 %v1092, 9.0
        %v1209 = vmul.f32 %v1124, 9.0
        %v1210 = vmul.f32 %v1156, 9.0
        %v1211 = vmul.f32 %v1188, 9.0
        %vm1212 = vcmask 130048
        %v1213 = vsel %vm1212, %v1204, -inf
        %1214 = vmax.xlane.f32.xlu0 %v1213
        %v1215 = vpop.xlane.xlu0 %1214
        %v1216 = vsel %vm1212, %v1205, -inf
        %1217 = vmax.xlane.f32.xlu0 %v1216
        %v1218 = vpop.xlane.xlu0 %1217
        %v1219 = vsel %vm1212, %v1206, -inf
        %1220 = vmax.xlane.f32.xlu0 %v1219
        %v1221 = vpop.xlane.xlu0 %1220
        %v1222 = vsel %vm1212, %v1207, -inf
        %1223 = vmax.xlane.f32.xlu0 %v1222
        %v1224 = vpop.xlane.xlu0 %1223
        %v1225 = vsel %vm1212, %v1208, -inf
        %1226 = vmax.xlane.f32.xlu0 %v1225
        %v1227 = vpop.xlane.xlu0 %1226
        %v1228 = vsel %vm1212, %v1209, -inf
        %1229 = vmax.xlane.f32.xlu0 %v1228
        %v1230 = vpop.xlane.xlu0 %1229
        %v1231 = vsel %vm1212, %v1210, -inf
        %1232 = vmax.xlane.f32.xlu0 %v1231
        %v1233 = vpop.xlane.xlu0 %1232
        %v1234 = vsel %vm1212, %v1211, -inf
        %1235 = vmax.xlane.f32.xlu0 %v1234
        %v1236 = vpop.xlane.xlu0 %1235
        %v1237 = vsub.f32 %v1204, %v1215
        %v1238 = vsub.f32 %v1205, %v1218
        %v1239 = vsub.f32 %v1206, %v1221
        %v1240 = vsub.f32 %v1207, %v1224
        %v1241 = vsub.f32 %v1208, %v1227
        %v1242 = vsub.f32 %v1209, %v1230
        %v1243 = vsub.f32 %v1210, %v1233
        %v1244 = vsub.f32 %v1211, %v1236
        %v1245 = vmul.f32 %v1237, 1.442695
        %v1246 = vpow.pop %v1245
        %v1247 = vmul.f32 %v1238, 1.442695
        %v1248 = vpow.pop %v1247
        %v1249 = vmul.f32 %v1239, 1.442695
        %v1250 = vpow.pop %v1249
        %v1251 = vmul.f32 %v1240, 1.442695
        %v1252 = vpow.pop %v1251
        %v1253 = vmul.f32 %v1241, 1.442695
        %v1254 = vpow.pop %v1253
        %v1255 = vmul.f32 %v1242, 1.442695
        %v1256 = vpow.pop %v1255
        %v1257 = vmul.f32 %v1243, 1.442695
        %v1258 = vpow.pop %v1257
        %v1259 = vmul.f32 %v1244, 1.442695
        %v1260 = vpow.pop %v1259
        %v1261 = vsel %vm1212, %v1246, 0.0
        %1262 = vadd.xlane.f32.xlu0 %v1261
        %v1263 = vpop.xlane.xlu0 %1262
        %v1264 = vsel %vm1212, %v1248, 0.0
        %1265 = vadd.xlane.f32.xlu0 %v1264
        %v1266 = vpop.xlane.xlu0 %1265
        %v1267 = vsel %vm1212, %v1250, 0.0
        %1268 = vadd.xlane.f32.xlu0 %v1267
        %v1269 = vpop.xlane.xlu0 %1268
        %v1270 = vsel %vm1212, %v1252, 0.0
        %1271 = vadd.xlane.f32.xlu0 %v1270
        %v1272 = vpop.xlane.xlu0 %1271
        %v1273 = vsel %vm1212, %v1254, 0.0
        %1274 = vadd.xlane.f32.xlu0 %v1273
        %v1275 = vpop.xlane.xlu0 %1274
        %v1276 = vsel %vm1212, %v1256, 0.0
        %1277 = vadd.xlane.f32.xlu0 %v1276
        %v1278 = vpop.xlane.xlu0 %1277
        %v1279 = vsel %vm1212, %v1258, 0.0
        %1280 = vadd.xlane.f32.xlu0 %v1279
        %v1281 = vpop.xlane.xlu0 %1280
        %v1282 = vsel %vm1212, %v1260, 0.0
        %1283 = vadd.xlane.f32.xlu0 %v1282
        %v1284 = vpop.xlane.xlu0 %1283
        %v1285 = vrcp.pop %v1263
        %v1286 = vrcp.pop %v1266
        %v1287 = vrcp.pop %v1269
        %v1288 = vrcp.pop %v1272
        %v1289 = vrcp.pop %v1275
        %v1290 = vrcp.pop %v1278
        %v1291 = vrcp.pop %v1281
        %v1292 = vrcp.pop %v1284
        %v1293 = vmul.f32 %v1246, %v1285
        %v1294 = vmul.f32 %v1248, %v1286
        %v1295 = vmul.f32 %v1250, %v1287
        %v1296 = vmul.f32 %v1252, %v1288
        %v1297 = vmul.f32 %v1254, %v1289
        %v1298 = vmul.f32 %v1256, %v1290
        %v1299 = vmul.f32 %v1258, %v1291
        %v1300 = vmul.f32 %v1260, %v1292
        %v1301 = vpack.c.bf16 %v1293, %v1293
        %v1302 = vpack.c.bf16 %v1294, %v1294
        %v1303 = vpack.c.bf16 %v1295, %v1295
        %v1304 = vpack.c.bf16 %v1296, %v1296
        %v1305 = vpack.c.bf16 %v1297, %v1297
        %v1306 = vpack.c.bf16 %v1298, %v1298
        %v1307 = vpack.c.bf16 %v1299, %v1299
        %v1308 = vpack.c.bf16 %v1300, %v1300
        %v1311 = vsel %vm1212, %v1301, 0
        %1313 = vmatprep.subr.bf16.mxu0 0
        %1314 = vmatpush1.bf16.msra.mxu0 %v601
        %1315 = vmatprep.subr.bf16.mxu0 0
        %1316 = vmatpush1.bf16.msra.mxu0 0
        %1317 = vmatprep.subr.bf16.mxu0 0
        %1318 = vmatpush1.bf16.msra.mxu0 0
        %1319 = vmatprep.subr.bf16.mxu0 0
        %1320 = vmatpush1.bf16.msra.mxu0 0
        %1321 = vmatprep.subr.bf16.mxu0 0
        %1322 = vmatpush1.bf16.msra.mxu0 0
        %1323 = vmatprep.subr.bf16.mxu0 0
        %1324 = vmatpush1.bf16.msra.mxu0 0
        %1325 = vmatprep.subr.bf16.mxu0 0
        %1326 = vmatpush1.bf16.msra.mxu0 0
        %1327 = vmatprep.subr.bf16.mxu0 0
        %1328 = vmatpush1.bf16.msra.mxu0 0
        %1329 = vmatprep.subr.bf16.mxu0 0
        %1330 = vmatpush1.bf16.msra.mxu0 0
        %1331 = vmatprep.subr.bf16.mxu0 0
        %1332 = vmatpush1.bf16.msra.mxu0 0
        %1333 = vmatprep.subr.bf16.mxu0 0
        %1334 = vmatpush1.bf16.msra.mxu0 0
        %1335 = vmatprep.subr.bf16.mxu0 0
        %1336 = vmatpush1.bf16.msra.mxu0 0
        %1337 = vmatprep.subr.bf16.mxu0 0
        %1338 = vmatpush1.bf16.msra.mxu0 0
        %1339 = vmatprep.subr.bf16.mxu0 0
        %1340 = vmatpush1.bf16.msra.mxu0 0
        %1341 = vmatprep.subr.bf16.mxu0 0
        %1342 = vmatpush1.bf16.msra.mxu0 0
        %1343 = vmatprep.subr.bf16.mxu0 0
        %1344 = vmatpush1.bf16.msra.mxu0 0
        %1345 = vmatprep.mubr.bf16.mxu0 0
        %1346 = vmatmul.mubr.bf16.gmra.mrb[0].mxu0 %v1311
        %v1347 = vpop.f32.mrb[0].mxu0
        %v1348 = vadd.f32 0.0, %v1347
        %v1349 = vpop.f32.mrb[0].mxu0
        %v1350 = vpop.f32.mrb[0].mxu0
        %v1351 = vpop.f32.mrb[0].mxu0
        %1352 = vdwg.mxu0
        %v1355 = vsel %vm1212, %v1302, 0
        %1357 = vmatprep.subr.bf16.mxu0 0
        %1358 = vmatpush1.bf16.msra.mxu0 %v602
        %1359 = vmatprep.subr.bf16.mxu0 0
        %1360 = vmatpush1.bf16.msra.mxu0 0
        %1361 = vmatprep.subr.bf16.mxu0 0
        %1362 = vmatpush1.bf16.msra.mxu0 0
        %1363 = vmatprep.subr.bf16.mxu0 0
        %1364 = vmatpush1.bf16.msra.mxu0 0
        %1365 = vmatprep.subr.bf16.mxu0 0
        %1366 = vmatpush1.bf16.msra.mxu0 0
        %1367 = vmatprep.subr.bf16.mxu0 0
        %1368 = vmatpush1.bf16.msra.mxu0 0
        %1369 = vmatprep.subr.bf16.mxu0 0
        %1370 = vmatpush1.bf16.msra.mxu0 0
        %1371 = vmatprep.subr.bf16.mxu0 0
        %1372 = vmatpush1.bf16.msra.mxu0 0
        %1373 = vmatprep.subr.bf16.mxu0 0
        %1374 = vmatpush1.bf16.msra.mxu0 0
        %1375 = vmatprep.subr.bf16.mxu0 0
        %1376 = vmatpush1.bf16.msra.mxu0 0
        %1377 = vmatprep.subr.bf16.mxu0 0
        %1378 = vmatpush1.bf16.msra.mxu0 0
        %1379 = vmatprep.subr.bf16.mxu0 0
        %1380 = vmatpush1.bf16.msra.mxu0 0
        %1381 = vmatprep.subr.bf16.mxu0 0
        %1382 = vmatpush1.bf16.msra.mxu0 0
        %1383 = vmatprep.subr.bf16.mxu0 0
        %1384 = vmatpush1.bf16.msra.mxu0 0
        %1385 = vmatprep.subr.bf16.mxu0 0
        %1386 = vmatpush1.bf16.msra.mxu0 0
        %1387 = vmatprep.subr.bf16.mxu0 0
        %1388 = vmatpush1.bf16.msra.mxu0 0
        %1389 = vmatprep.mubr.bf16.mxu0 0
        %1390 = vmatmul.mubr.bf16.gmra.mrb[0].mxu0 %v1355
        %v1391 = vpop.f32.mrb[0].mxu0
        %v1392 = vadd.f32 0.0, %v1391
        %v1393 = vpop.f32.mrb[0].mxu0
        %v1394 = vpop.f32.mrb[0].mxu0
        %v1395 = vpop.f32.mrb[0].mxu0
        %1396 = vdwg.mxu0
        %v1399 = vsel %vm1212, %v1303, 0
        %1401 = vmatprep.subr.bf16.mxu0 0
        %1402 = vmatpush1.bf16.msra.mxu0 %v603
        %1403 = vmatprep.subr.bf16.mxu0 0
        %1404 = vmatpush1.bf16.msra.mxu0 0
        %1405 = vmatprep.subr.bf16.mxu0 0
        %1406 = vmatpush1.bf16.msra.mxu0 0
        %1407 = vmatprep.subr.bf16.mxu0 0
        %1408 = vmatpush1.bf16.msra.mxu0 0
        %1409 = vmatprep.subr.bf16.mxu0 0
        %1410 = vmatpush1.bf16.msra.mxu0 0
        %1411 = vmatprep.subr.bf16.mxu0 0
        %1412 = vmatpush1.bf16.msra.mxu0 0
        %1413 = vmatprep.subr.bf16.mxu0 0
        %1414 = vmatpush1.bf16.msra.mxu0 0
        %1415 = vmatprep.subr.bf16.mxu0 0
        %1416 = vmatpush1.bf16.msra.mxu0 0
        %1417 = vmatprep.subr.bf16.mxu0 0
        %1418 = vmatpush1.bf16.msra.mxu0 0
        %1419 = vmatprep.subr.bf16.mxu0 0
        %1420 = vmatpush1.bf16.msra.mxu0 0
        %1421 = vmatprep.subr.bf16.mxu0 0
        %1422 = vmatpush1.bf16.msra.mxu0 0
        %1423 = vmatprep.subr.bf16.mxu0 0
        %1424 = vmatpush1.bf16.msra.mxu0 0
        %1425 = vmatprep.subr.bf16.mxu0 0
        %1426 = vmatpush1.bf16.msra.mxu0 0
        %1427 = vmatprep.subr.bf16.mxu0 0
        %1428 = vmatpush1.bf16.msra.mxu0 0
        %1429 = vmatprep.subr.bf16.mxu0 0
        %1430 = vmatpush1.bf16.msra.mxu0 0
        %1431 = vmatprep.subr.bf16.mxu0 0
        %1432 = vmatpush1.bf16.msra.mxu0 0
        %1433 = vmatprep.mubr.bf16.mxu0 0
        %1434 = vmatmul.mubr.bf16.gmra.mrb[0].mxu0 %v1399
        %v1435 = vpop.f32.mrb[0].mxu0
        %v1436 = vadd.f32 0.0, %v1435
        %v1437 = vpop.f32.mrb[0].mxu0
        %v1438 = vpop.f32.mrb[0].mxu0
        %v1439 = vpop.f32.mrb[0].mxu0
        %1440 = vdwg.mxu0
        %v1443 = vsel %vm1212, %v1304, 0
        %1445 = vmatprep.subr.bf16.mxu0 0
        %1446 = vmatpush1.bf16.msra.mxu0 %v604
        %1447 = vmatprep.subr.bf16.mxu0 0
        %1448 = vmatpush1.bf16.msra.mxu0 0
        %1449 = vmatprep.subr.bf16.mxu0 0
        %1450 = vmatpush1.bf16.msra.mxu0 0
        %1451 = vmatprep.subr.bf16.mxu0 0
        %1452 = vmatpush1.bf16.msra.mxu0 0
        %1453 = vmatprep.subr.bf16.mxu0 0
        %1454 = vmatpush1.bf16.msra.mxu0 0
        %1455 = vmatprep.subr.bf16.mxu0 0
        %1456 = vmatpush1.bf16.msra.mxu0 0
        %1457 = vmatprep.subr.bf16.mxu0 0
        %1458 = vmatpush1.bf16.msra.mxu0 0
        %1459 = vmatprep.subr.bf16.mxu0 0
        %1460 = vmatpush1.bf16.msra.mxu0 0
        %1461 = vmatprep.subr.bf16.mxu0 0
        %1462 = vmatpush1.bf16.msra.mxu0 0
        %1463 = vmatprep.subr.bf16.mxu0 0
        %1464 = vmatpush1.bf16.msra.mxu0 0
        %1465 = vmatprep.subr.bf16.mxu0 0
        %1466 = vmatpush1.bf16.msra.mxu0 0
        %1467 = vmatprep.subr.bf16.mxu0 0
        %1468 = vmatpush1.bf16.msra.mxu0 0
        %1469 = vmatprep.subr.bf16.mxu0 0
        %1470 = vmatpush1.bf16.msra.mxu0 0
        %1471 = vmatprep.subr.bf16.mxu0 0
        %1472 = vmatpush1.bf16.msra.mxu0 0
        %1473 = vmatprep.subr.bf16.mxu0 0
        %1474 = vmatpush1.bf16.msra.mxu0 0
        %1475 = vmatprep.subr.bf16.mxu0 0
        %1476 = vmatpush1.bf16.msra.mxu0 0
        %1477 = vmatprep.mubr.bf16.mxu0 0
        %1478 = vmatmul.mubr.bf16.gmra.mrb[0].mxu0 %v1443
        %v1479 = vpop.f32.mrb[0].mxu0
        %v1480 = vadd.f32 0.0, %v1479
        %v1481 = vpop.f32.mrb[0].mxu0
        %v1482 = vpop.f32.mrb[0].mxu0
        %v1483 = vpop.f32.mrb[0].mxu0
        %1484 = vdwg.mxu0
        %v1487 = vsel %vm1212, %v1305, 0
        %1489 = vmatprep.subr.bf16.mxu0 0
        %1490 = vmatpush1.bf16.msra.mxu0 %v605
        %1491 = vmatprep.subr.bf16.mxu0 0
        %1492 = vmatpush1.bf16.msra.mxu0 0
        %1493 = vmatprep.subr.bf16.mxu0 0
        %1494 = vmatpush1.bf16.msra.mxu0 0
        %1495 = vmatprep.subr.bf16.mxu0 0
        %1496 = vmatpush1.bf16.msra.mxu0 0
        %1497 = vmatprep.subr.bf16.mxu0 0
        %1498 = vmatpush1.bf16.msra.mxu0 0
        %1499 = vmatprep.subr.bf16.mxu0 0
        %1500 = vmatpush1.bf16.msra.mxu0 0
        %1501 = vmatprep.subr.bf16.mxu0 0
        %1502 = vmatpush1.bf16.msra.mxu0 0
        %1503 = vmatprep.subr.bf16.mxu0 0
        %1504 = vmatpush1.bf16.msra.mxu0 0
        %1505 = vmatprep.subr.bf16.mxu0 0
        %1506 = vmatpush1.bf16.msra.mxu0 0
        %1507 = vmatprep.subr.bf16.mxu0 0
        %1508 = vmatpush1.bf16.msra.mxu0 0
        %1509 = vmatprep.subr.bf16.mxu0 0
        %1510 = vmatpush1.bf16.msra.mxu0 0
        %1511 = vmatprep.subr.bf16.mxu0 0
        %1512 = vmatpush1.bf16.msra.mxu0 0
        %1513 = vmatprep.subr.bf16.mxu0 0
        %1514 = vmatpush1.bf16.msra.mxu0 0
        %1515 = vmatprep.subr.bf16.mxu0 0
        %1516 = vmatpush1.bf16.msra.mxu0 0
        %1517 = vmatprep.subr.bf16.mxu0 0
        %1518 = vmatpush1.bf16.msra.mxu0 0
        %1519 = vmatprep.subr.bf16.mxu0 0
        %1520 = vmatpush1.bf16.msra.mxu0 0
        %1521 = vmatprep.mubr.bf16.mxu0 0
        %1522 = vmatmul.mubr.bf16.gmra.mrb[0].mxu0 %v1487
        %v1523 = vpop.f32.mrb[0].mxu0
        %v1524 = vadd.f32 0.0, %v1523
        %v1525 = vpop.f32.mrb[0].mxu0
        %v1526 = vpop.f32.mrb[0].mxu0
        %v1527 = vpop.f32.mrb[0].mxu0
        %1528 = vdwg.mxu0
        %v1531 = vsel %vm1212, %v1306, 0
        %1533 = vmatprep.subr.bf16.mxu0 0
        %1534 = vmatpush1.bf16.msra.mxu0 %v606
        %1535 = vmatprep.subr.bf16.mxu0 0
        %1536 = vmatpush1.bf16.msra.mxu0 0
        %1537 = vmatprep.subr.bf16.mxu0 0
        %1538 = vmatpush1.bf16.msra.mxu0 0
        %1539 = vmatprep.subr.bf16.mxu0 0
        %1540 = vmatpush1.bf16.msra.mxu0 0
        %1541 = vmatprep.subr.bf16.mxu0 0
        %1542 = vmatpush1.bf16.msra.mxu0 0
        %1543 = vmatprep.subr.bf16.mxu0 0
        %1544 = vmatpush1.bf16.msra.mxu0 0
        %1545 = vmatprep.subr.bf16.mxu0 0
        %1546 = vmatpush1.bf16.msra.mxu0 0
        %1547 = vmatprep.subr.bf16.mxu0 0
        %1548 = vmatpush1.bf16.msra.mxu0 0
        %1549 = vmatprep.subr.bf16.mxu0 0
        %1550 = vmatpush1.bf16.msra.mxu0 0
        %1551 = vmatprep.subr.bf16.mxu0 0
        %1552 = vmatpush1.bf16.msra.mxu0 0
        %1553 = vmatprep.subr.bf16.mxu0 0
        %1554 = vmatpush1.bf16.msra.mxu0 0
        %1555 = vmatprep.subr.bf16.mxu0 0
        %1556 = vmatpush1.bf16.msra.mxu0 0
        %1557 = vmatprep.subr.bf16.mxu0 0
        %1558 = vmatpush1.bf16.msra.mxu0 0
        %1559 = vmatprep.subr.bf16.mxu0 0
        %1560 = vmatpush1.bf16.msra.mxu0 0
        %1561 = vmatprep.subr.bf16.mxu0 0
        %1562 = vmatpush1.bf16.msra.mxu0 0
        %1563 = vmatprep.subr.bf16.mxu0 0
        %1564 = vmatpush1.bf16.msra.mxu0 0
        %1565 = vmatprep.mubr.bf16.mxu0 0
        %1566 = vmatmul.mubr.bf16.gmra.mrb[0].mxu0 %v1531
        %v1567 = vpop.f32.mrb[0].mxu0
        %v1568 = vadd.f32 0.0, %v1567
        %v1569 = vpop.f32.mrb[0].mxu0
        %v1570 = vpop.f32.mrb[0].mxu0
        %v1571 = vpop.f32.mrb[0].mxu0
        %1572 = vdwg.mxu0
        %v1575 = vsel %vm1212, %v1307, 0
        %1577 = vmatprep.subr.bf16.mxu0 0
        %1578 = vmatpush1.bf16.msra.mxu0 %v607
        %1579 = vmatprep.subr.bf16.mxu0 0
        %1580 = vmatpush1.bf16.msra.mxu0 0
        %1581 = vmatprep.subr.bf16.mxu0 0
        %1582 = vmatpush1.bf16.msra.mxu0 0
        %1583 = vmatprep.subr.bf16.mxu0 0
        %1584 = vmatpush1.bf16.msra.mxu0 0
        %1585 = vmatprep.subr.bf16.mxu0 0
        %1586 = vmatpush1.bf16.msra.mxu0 0
        %1587 = vmatprep.subr.bf16.mxu0 0
        %1588 = vmatpush1.bf16.msra.mxu0 0
        %1589 = vmatprep.subr.bf16.mxu0 0
        %1590 = vmatpush1.bf16.msra.mxu0 0
        %1591 = vmatprep.subr.bf16.mxu0 0
        %1592 = vmatpush1.bf16.msra.mxu0 0
        %1593 = vmatprep.subr.bf16.mxu0 0
        %1594 = vmatpush1.bf16.msra.mxu0 0
        %1595 = vmatprep.subr.bf16.mxu0 0
        %1596 = vmatpush1.bf16.msra.mxu0 0
        %1597 = vmatprep.subr.bf16.mxu0 0
        %1598 = vmatpush1.bf16.msra.mxu0 0
        %1599 = vmatprep.subr.bf16.mxu0 0
        %1600 = vmatpush1.bf16.msra.mxu0 0
        %1601 = vmatprep.subr.bf16.mxu0 0
        %1602 = vmatpush1.bf16.msra.mxu0 0
        %1603 = vmatprep.subr.bf16.mxu0 0
        %1604 = vmatpush1.bf16.msra.mxu0 0
        %1605 = vmatprep.subr.bf16.mxu0 0
        %1606 = vmatpush1.bf16.msra.mxu0 0
        %1607 = vmatprep.subr.bf16.mxu0 0
        %1608 = vmatpush1.bf16.msra.mxu0 0
        %1609 = vmatprep.mubr.bf16.mxu0 0
        %1610 = vmatmul.mubr.bf16.gmra.mrb[0].mxu0 %v1575
        %v1611 = vpop.f32.mrb[0].mxu0
        %v1612 = vadd.f32 0.0, %v1611
        %v1613 = vpop.f32.mrb[0].mxu0
        %v1614 = vpop.f32.mrb[0].mxu0
        %v1615 = vpop.f32.mrb[0].mxu0
        %1616 = vdwg.mxu0
        %v1619 = vsel %vm1212, %v1308, 0
        %1621 = vmatprep.subr.bf16.mxu0 0
        %1622 = vmatpush1.bf16.msra.mxu0 %v608
        %1623 = vmatprep.subr.bf16.mxu0 0
        %1624 = vmatpush1.bf16.msra.mxu0 0
        %1625 = vmatprep.subr.bf16.mxu0 0
        %1626 = vmatpush1.bf16.msra.mxu0 0
        %1627 = vmatprep.subr.bf16.mxu0 0
        %1628 = vmatpush1.bf16.msra.mxu0 0
        %1629 = vmatprep.subr.bf16.mxu0 0
        %1630 = vmatpush1.bf16.msra.mxu0 0
        %1631 = vmatprep.subr.bf16.mxu0 0
        %1632 = vmatpush1.bf16.msra.mxu0 0
        %1633 = vmatprep.subr.bf16.mxu0 0
        %1634 = vmatpush1.bf16.msra.mxu0 0
        %1635 = vmatprep.subr.bf16.mxu0 0
        %1636 = vmatpush1.bf16.msra.mxu0 0
        %1637 = vmatprep.subr.bf16.mxu0 0
        %1638 = vmatpush1.bf16.msra.mxu0 0
        %1639 = vmatprep.subr.bf16.mxu0 0
        %1640 = vmatpush1.bf16.msra.mxu0 0
        %1641 = vmatprep.subr.bf16.mxu0 0
        %1642 = vmatpush1.bf16.msra.mxu0 0
        %1643 = vmatprep.subr.bf16.mxu0 0
        %1644 = vmatpush1.bf16.msra.mxu0 0
        %1645 = vmatprep.subr.bf16.mxu0 0
        %1646 = vmatpush1.bf16.msra.mxu0 0
        %1647 = vmatprep.subr.bf16.mxu0 0
        %1648 = vmatpush1.bf16.msra.mxu0 0
        %1649 = vmatprep.subr.bf16.mxu0 0
        %1650 = vmatpush1.bf16.msra.mxu0 0
        %1651 = vmatprep.subr.bf16.mxu0 0
        %1652 = vmatpush1.bf16.msra.mxu0 0
        %1653 = vmatprep.mubr.bf16.mxu0 0
        %1654 = vmatmul.mubr.bf16.gmra.mrb[0].mxu0 %v1619
        %v1655 = vpop.f32.mrb[0].mxu0
        %v1656 = vadd.f32 0.0, %v1655
        %v1657 = vpop.f32.mrb[0].mxu0
        %v1658 = vpop.f32.mrb[0].mxu0
        %v1659 = vpop.f32.mrb[0].mxu0
        %1660 = vdwg.mxu0
        %v1661 = vmul.f32 %v1348, %v1348
        %v1662 = vmul.f32 %v1392, %v1392
        %v1663 = vmul.f32 %v1436, %v1436
        %v1664 = vmul.f32 %v1480, %v1480
        %v1665 = vmul.f32 %v1524, %v1524
        %v1666 = vmul.f32 %v1568, %v1568
        %v1667 = vmul.f32 %v1612, %v1612
        %v1668 = vmul.f32 %v1656, %v1656
        %v1669 = vsel %vm614, %v1661, 0.0
        %1670 = vadd.xlane.f32.xlu0 %v1669
        %v1671 = vpop.xlane.xlu0 %1670
        %v1672 = vsel %vm614, %v1662, 0.0
        %1673 = vadd.xlane.f32.xlu0 %v1672
        %v1674 = vpop.xlane.xlu0 %1673
        %v1675 = vsel %vm614, %v1663, 0.0
        %1676 = vadd.xlane.f32.xlu0 %v1675
        %v1677 = vpop.xlane.xlu0 %1676
        %v1678 = vsel %vm614, %v1664, 0.0
        %1679 = vadd.xlane.f32.xlu0 %v1678
        %v1680 = vpop.xlane.xlu0 %1679
        %v1681 = vsel %vm614, %v1665, 0.0
        %1682 = vadd.xlane.f32.xlu0 %v1681
        %v1683 = vpop.xlane.xlu0 %1682
        %v1684 = vsel %vm614, %v1666, 0.0
        %1685 = vadd.xlane.f32.xlu0 %v1684
        %v1686 = vpop.xlane.xlu0 %1685
        %v1687 = vsel %vm614, %v1667, 0.0
        %1688 = vadd.xlane.f32.xlu0 %v1687
        %v1689 = vpop.xlane.xlu0 %1688
        %v1690 = vsel %vm614, %v1668, 0.0
        %1691 = vadd.xlane.f32.xlu0 %v1690
        %v1692 = vpop.xlane.xlu0 %1691
        %v1693 = vadd.f32 %v1671, 1e-08
        %v1694 = vadd.f32 %v1674, 1e-08
        %v1695 = vadd.f32 %v1677, 1e-08
        %v1696 = vadd.f32 %v1680, 1e-08
        %v1697 = vadd.f32 %v1683, 1e-08
        %v1698 = vadd.f32 %v1686, 1e-08
        %v1699 = vadd.f32 %v1689, 1e-08
        %v1700 = vadd.f32 %v1692, 1e-08
        %v1701 = vrsqrt.pop %v1693
        %v1702 = vrsqrt.pop %v1694
        %v1703 = vrsqrt.pop %v1695
        %v1704 = vrsqrt.pop %v1696
        %v1705 = vrsqrt.pop %v1697
        %v1706 = vrsqrt.pop %v1698
        %v1707 = vrsqrt.pop %v1699
        %v1708 = vrsqrt.pop %v1700
        %v1709 = vmul.f32 %v1348, %v1701
        %v1710 = vmul.f32 %v1392, %v1702
        %v1711 = vmul.f32 %v1436, %v1703
        %v1712 = vmul.f32 %v1480, %v1704
        %v1713 = vmul.f32 %v1524, %v1705
        %v1714 = vmul.f32 %v1568, %v1706
        %v1715 = vmul.f32 %v1612, %v1707
        %v1716 = vmul.f32 %v1656, %v1708
        %v1717 = vsub.f32 %v556, %v1709
        %v1718 = vsub.f32 %v556, %v1710
        %v1719 = vsub.f32 %v556, %v1711
        %v1720 = vsub.f32 %v556, %v1712
        %v1721 = vsub.f32 %v556, %v1713
        %v1722 = vsub.f32 %v556, %v1714
        %v1723 = vsub.f32 %v556, %v1715
        %v1724 = vsub.f32 %v556, %v1716
        %v1725 = vmul.f32 %v1717, %v1717
        %v1726 = vmul.f32 %v1718, %v1718
        %v1727 = vmul.f32 %v1719, %v1719
        %v1728 = vmul.f32 %v1720, %v1720
        %v1729 = vmul.f32 %v1721, %v1721
        %v1730 = vmul.f32 %v1722, %v1722
        %v1731 = vmul.f32 %v1723, %v1723
        %v1732 = vmul.f32 %v1724, %v1724
        %v1733 = vpack.c.bf16 %v1726, %v1725
        %v1734 = vpack.c.bf16 %v1728, %v1727
        %v1735 = vpack.c.bf16 %v1730, %v1729
        %v1736 = vpack.c.bf16 %v1732, %v1731
        %v1739 = vunpack.c.l.b16 %v743
        %v1740 = vunpack.c.l.b16 %v744
        %v1741 = vpack.c.b16 %v1740, %v1739
        %v1743 = vsel %vm614, %v1733, 0
        %v1746 = vsel %vm614, %v1734, 0
        %v1749 = vsel %vm614, %v1735, 0
        %v1752 = vsel %vm614, %v1736, 0
        %v1755 = vsel %vm614, %v1741, 0
        %1757 = vmatprep.subr.bf16.mxu0 0
        %1758 = vmatpush1.bf16.xpose.msra.mxu0 %v1755
        %1759 = vmatprep.subr.bf16.mxu0 0
        %1760 = vmatpush1.bf16.xpose.msra.mxu0 0
        %1761 = vmatprep.subr.bf16.mxu0 0
        %1762 = vmatpush1.bf16.xpose.msra.mxu0 0
        %1763 = vmatprep.subr.bf16.mxu0 0
        %1764 = vmatpush1.bf16.xpose.msra.mxu0 0
        %1765 = vmatprep.subr.bf16.mxu0 0
        %1766 = vmatpush1.bf16.xpose.msra.mxu0 0
        %1767 = vmatprep.subr.bf16.mxu0 0
        %1768 = vmatpush1.bf16.xpose.msra.mxu0 0
        %1769 = vmatprep.subr.bf16.mxu0 0
        %1770 = vmatpush1.bf16.xpose.msra.mxu0 0
        %1771 = vmatprep.subr.bf16.mxu0 0
        %1772 = vmatpush1.bf16.xpose.msra.mxu0 0
        %1773 = vmatprep.subr.bf16.mxu0 0
        %1774 = vmatpush1.bf16.xpose.msra.mxu0 0
        %1775 = vmatprep.subr.bf16.mxu0 0
        %1776 = vmatpush1.bf16.xpose.msra.mxu0 0
        %1777 = vmatprep.subr.bf16.mxu0 0
        %1778 = vmatpush1.bf16.xpose.msra.mxu0 0
        %1779 = vmatprep.subr.bf16.mxu0 0
        %1780 = vmatpush1.bf16.xpose.msra.mxu0 0
        %1781 = vmatprep.subr.bf16.mxu0 0
        %1782 = vmatpush1.bf16.xpose.msra.mxu0 0
        %1783 = vmatprep.subr.bf16.mxu0 0
        %1784 = vmatpush1.bf16.xpose.msra.mxu0 0
        %1785 = vmatprep.subr.bf16.mxu0 0
        %1786 = vmatpush1.bf16.xpose.msra.mxu0 0
        %1787 = vmatprep.subr.bf16.mxu0 0
        %1788 = vmatpush1.bf16.xpose.msra.mxu0 0
        %1789 = vmatprep.mubr.bf16.mxu0 0
        %1790 = vmatmul.mubr.bf16.gmra.mrb[0].mxu0 %v1743
        %v1791 = vpop.f32.mrb[0].mxu0
        %v1792 = vadd.f32 0.0, %v1791
        %v1793 = vpop.f32.mrb[0].mxu0
        %v1794 = vpop.f32.mrb[0].mxu0
        %v1795 = vadd.f32 0.0, %v1794
        %v1796 = vpop.f32.mrb[0].mxu0
        %1797 = vmatprep.mubr.bf16.mxu0 0
        %1798 = vmatmul.mubr.bf16.gmra.mrb[0].mxu0 %v1746
        %v1799 = vpop.f32.mrb[0].mxu0
        %v1800 = vadd.f32 0.0, %v1799
        %v1801 = vpop.f32.mrb[0].mxu0
        %v1802 = vpop.f32.mrb[0].mxu0
        %v1803 = vadd.f32 0.0, %v1802
        %v1804 = vpop.f32.mrb[0].mxu0
        %1805 = vmatprep.mubr.bf16.mxu0 0
        %1806 = vmatmul.mubr.bf16.gmra.mrb[0].mxu0 %v1749
        %v1807 = vpop.f32.mrb[0].mxu0
        %v1808 = vadd.f32 0.0, %v1807
        %v1809 = vpop.f32.mrb[0].mxu0
        %v1810 = vpop.f32.mrb[0].mxu0
        %v1811 = vadd.f32 0.0, %v1810
        %v1812 = vpop.f32.mrb[0].mxu0
        %1813 = vmatprep.mubr.bf16.mxu0 0
        %1814 = vmatmul.mubr.bf16.gmra.mrb[0].mxu0 %v1752
        %v1815 = vpop.f32.mrb[0].mxu0
        %v1816 = vadd.f32 0.0, %v1815
        %v1817 = vpop.f32.mrb[0].mxu0
        %v1818 = vpop.f32.mrb[0].mxu0
        %v1819 = vadd.f32 0.0, %v1818
        %v1820 = vpop.f32.mrb[0].mxu0
        %1821 = vdwg.mxu0
        %v1823 = vlaneseq
        %v1824 = vshrl.u32 %v1823, 7
        %v1825 = vsub.s32 0, %v1824
        %v1826 = vrot.slane %v745, %v1825
        %v1828 = vadd.f32 %v1792, %v1826
        %v1829 = vadd.f32 %v1795, %v1826
        %v1830 = vadd.f32 %v1800, %v1826
        %v1831 = vadd.f32 %v1803, %v1826
        %v1832 = vadd.f32 %v1808, %v1826
        %v1833 = vadd.f32 %v1811, %v1826
        %v1834 = vadd.f32 %v1816, %v1826
        %v1835 = vadd.f32 %v1819, %v1826
        %v1836 = vmul.f32 %v1828, %v1828
        %v1837 = vmul.f32 %v1829, %v1829
        %v1838 = vmul.f32 %v1830, %v1830
        %v1839 = vmul.f32 %v1831, %v1831
        %v1840 = vmul.f32 %v1832, %v1832
        %v1841 = vmul.f32 %v1833, %v1833
        %v1842 = vmul.f32 %v1834, %v1834
        %v1843 = vmul.f32 %v1835, %v1835
        %v1844 = vsel %vm1212, %v1836, 0.0
        %1845 = vadd.xlane.f32.xlu0 %v1844
        %v1846 = vpop.xlane.xlu0 %1845
        %v1847 = vsel %vm1212, %v1837, 0.0
        %1848 = vadd.xlane.f32.xlu0 %v1847
        %v1849 = vpop.xlane.xlu0 %1848
        %v1850 = vsel %vm1212, %v1838, 0.0
        %1851 = vadd.xlane.f32.xlu0 %v1850
        %v1852 = vpop.xlane.xlu0 %1851
        %v1853 = vsel %vm1212, %v1839, 0.0
        %1854 = vadd.xlane.f32.xlu0 %v1853
        %v1855 = vpop.xlane.xlu0 %1854
        %v1856 = vsel %vm1212, %v1840, 0.0
        %1857 = vadd.xlane.f32.xlu0 %v1856
        %v1858 = vpop.xlane.xlu0 %1857
        %v1859 = vsel %vm1212, %v1841, 0.0
        %1860 = vadd.xlane.f32.xlu0 %v1859
        %v1861 = vpop.xlane.xlu0 %1860
        %v1862 = vsel %vm1212, %v1842, 0.0
        %1863 = vadd.xlane.f32.xlu0 %v1862
        %v1864 = vpop.xlane.xlu0 %1863
        %v1865 = vsel %vm1212, %v1843, 0.0
        %1866 = vadd.xlane.f32.xlu0 %v1865
        %v1867 = vpop.xlane.xlu0 %1866
        %v1868 = vadd.f32 %v1846, 1e-08
        %v1869 = vadd.f32 %v1849, 1e-08
        %v1870 = vadd.f32 %v1852, 1e-08
        %v1871 = vadd.f32 %v1855, 1e-08
        %v1872 = vadd.f32 %v1858, 1e-08
        %v1873 = vadd.f32 %v1861, 1e-08
        %v1874 = vadd.f32 %v1864, 1e-08
        %v1875 = vadd.f32 %v1867, 1e-08
        %v1876 = vrsqrt.pop %v1868
        %v1877 = vrsqrt.pop %v1869
        %v1878 = vrsqrt.pop %v1870
        %v1879 = vrsqrt.pop %v1871
        %v1880 = vrsqrt.pop %v1872
        %v1881 = vrsqrt.pop %v1873
        %v1882 = vrsqrt.pop %v1874
        %v1883 = vrsqrt.pop %v1875
        %v1884 = vmul.f32 %v1828, %v1876
        %v1885 = vmul.f32 %v1829, %v1877
        %v1886 = vmul.f32 %v1830, %v1878
        %v1887 = vmul.f32 %v1831, %v1879
        %v1888 = vmul.f32 %v1832, %v1880
        %v1889 = vmul.f32 %v1833, %v1881
        %v1890 = vmul.f32 %v1834, %v1882
        %v1891 = vmul.f32 %v1835, %v1883
        %v1892 = vmul.f32 %v1884, %v768
        %v1893 = vmul.f32 %v1885, %v768
        %v1894 = vmul.f32 %v1886, %v768
        %v1895 = vmul.f32 %v1887, %v768
        %v1896 = vmul.f32 %v1888, %v768
        %v1897 = vmul.f32 %v1889, %v768
        %v1898 = vmul.f32 %v1890, %v768
        %v1899 = vmul.f32 %v1891, %v768
        %v1900 = vsel %vm1212, %v1892, 0.0
        %v1901 = vrot.slane %v1900, 4
        %v1902 = vadd.f32 %v1900, %v1901
        %v1903 = vrot.slane %v1902, 2
        %v1904 = vadd.f32 %v1902, %v1903
        %v1905 = vrot.slane %v1904, 1
        %v1906 = vadd.f32 %v1904, %v1905
        %v1907 = vsel %vm1212, %v1893, 0.0
        %v1908 = vrot.slane %v1907, 4
        %v1909 = vadd.f32 %v1907, %v1908
        %v1910 = vrot.slane %v1909, 2
        %v1911 = vadd.f32 %v1909, %v1910
        %v1912 = vrot.slane %v1911, 1
        %v1913 = vadd.f32 %v1911, %v1912
        %v1914 = vsel %vm1212, %v1894, 0.0
        %v1915 = vrot.slane %v1914, 4
        %v1916 = vadd.f32 %v1914, %v1915
        %v1917 = vrot.slane %v1916, 2
        %v1918 = vadd.f32 %v1916, %v1917
        %v1919 = vrot.slane %v1918, 1
        %v1920 = vadd.f32 %v1918, %v1919
        %v1921 = vsel %vm1212, %v1895, 0.0
        %v1922 = vrot.slane %v1921, 4
        %v1923 = vadd.f32 %v1921, %v1922
        %v1924 = vrot.slane %v1923, 2
        %v1925 = vadd.f32 %v1923, %v1924
        %v1926 = vrot.slane %v1925, 1
        %v1927 = vadd.f32 %v1925, %v1926
        %v1928 = vsel %vm1212, %v1896, 0.0
        %v1929 = vrot.slane %v1928, 4
        %v1930 = vadd.f32 %v1928, %v1929
        %v1931 = vrot.slane %v1930, 2
        %v1932 = vadd.f32 %v1930, %v1931
        %v1933 = vrot.slane %v1932, 1
        %v1934 = vadd.f32 %v1932, %v1933
        %v1935 = vsel %vm1212, %v1897, 0.0
        %v1936 = vrot.slane %v1935, 4
        %v1937 = vadd.f32 %v1935, %v1936
        %v1938 = vrot.slane %v1937, 2
        %v1939 = vadd.f32 %v1937, %v1938
        %v1940 = vrot.slane %v1939, 1
        %v1941 = vadd.f32 %v1939, %v1940
        %v1942 = vsel %vm1212, %v1898, 0.0
        %v1943 = vrot.slane %v1942, 4
        %v1944 = vadd.f32 %v1942, %v1943
        %v1945 = vrot.slane %v1944, 2
        %v1946 = vadd.f32 %v1944, %v1945
        %v1947 = vrot.slane %v1946, 1
        %v1948 = vadd.f32 %v1946, %v1947
        %v1949 = vsel %vm1212, %v1899, 0.0
        %v1950 = vrot.slane %v1949, 4
        %v1951 = vadd.f32 %v1949, %v1950
        %v1952 = vrot.slane %v1951, 2
        %v1953 = vadd.f32 %v1951, %v1952
        %v1954 = vrot.slane %v1953, 1
        %v1955 = vadd.f32 %v1953, %v1954
        %v1956 = vstv %s759
        %v1957 = vmul.f32 %v1906, %v1956
        %v1958 = vmul.f32 %v1913, %v1956
        %v1959 = vmul.f32 %v1920, %v1956
        %v1960 = vmul.f32 %v1927, %v1956
        %v1961 = vmul.f32 %v1934, %v1956
        %v1962 = vmul.f32 %v1941, %v1956
        %v1963 = vmul.f32 %v1948, %v1956
        %v1964 = vmul.f32 %v1955, %v1956
        %v1965 = vpack.c.bf16 %v1885, %v1884
        %v1966 = vpack.c.bf16 %v1887, %v1886
        %v1967 = vpack.c.bf16 %v1889, %v1888
        %v1968 = vpack.c.bf16 %v1891, %v1890
        %v1971 = vunpack.c.l.b16 %v746
        %v1972 = vunpack.c.l.b16 %v747
        %v1973 = vpack.c.b16 %v1972, %v1971
        %v1975 = vsel %vm1212, %v1965, 0
        %v1978 = vsel %vm1212, %v1966, 0
        %v1981 = vsel %vm1212, %v1967, 0
        %v1984 = vsel %vm1212, %v1968, 0
        %v1987 = vsel %vm1212, %v1973, 0
        %1989 = vmatprep.subr.bf16.mxu0 0
        %1990 = vmatpush1.bf16.xpose.msra.mxu0 %v1987
        %1991 = vmatprep.subr.bf16.mxu0 0
        %1992 = vmatpush1.bf16.xpose.msra.mxu0 0
        %1993 = vmatprep.subr.bf16.mxu0 0
        %1994 = vmatpush1.bf16.xpose.msra.mxu0 0
        %1995 = vmatprep.subr.bf16.mxu0 0
        %1996 = vmatpush1.bf16.xpose.msra.mxu0 0
        %1997 = vmatprep.subr.bf16.mxu0 0
        %1998 = vmatpush1.bf16.xpose.msra.mxu0 0
        %1999 = vmatprep.subr.bf16.mxu0 0
        %2000 = vmatpush1.bf16.xpose.msra.mxu0 0
        %2001 = vmatprep.subr.bf16.mxu0 0
        %2002 = vmatpush1.bf16.xpose.msra.mxu0 0
        %2003 = vmatprep.subr.bf16.mxu0 0
        %2004 = vmatpush1.bf16.xpose.msra.mxu0 0
        %2005 = vmatprep.subr.bf16.mxu0 0
        %2006 = vmatpush1.bf16.xpose.msra.mxu0 0
        %2007 = vmatprep.subr.bf16.mxu0 0
        %2008 = vmatpush1.bf16.xpose.msra.mxu0 0
        %2009 = vmatprep.subr.bf16.mxu0 0
        %2010 = vmatpush1.bf16.xpose.msra.mxu0 0
        %2011 = vmatprep.subr.bf16.mxu0 0
        %2012 = vmatpush1.bf16.xpose.msra.mxu0 0
        %2013 = vmatprep.subr.bf16.mxu0 0
        %2014 = vmatpush1.bf16.xpose.msra.mxu0 0
        %2015 = vmatprep.subr.bf16.mxu0 0
        %2016 = vmatpush1.bf16.xpose.msra.mxu0 0
        %2017 = vmatprep.subr.bf16.mxu0 0
        %2018 = vmatpush1.bf16.xpose.msra.mxu0 0
        %2019 = vmatprep.subr.bf16.mxu0 0
        %2020 = vmatpush1.bf16.xpose.msra.mxu0 0
        %2021 = vmatprep.mubr.bf16.mxu0 0
        %2022 = vmatmul.mubr.bf16.gmra.mrb[0].mxu0 %v1975
        %v2023 = vpop.f32.mrb[0].mxu0
        %v2024 = vadd.f32 0.0, %v2023
        %v2025 = vpop.f32.mrb[0].mxu0
        %v2026 = vpop.f32.mrb[0].mxu0
        %v2027 = vadd.f32 0.0, %v2026
        %v2028 = vpop.f32.mrb[0].mxu0
        %2029 = vmatprep.mubr.bf16.mxu0 0
        %2030 = vmatmul.mubr.bf16.gmra.mrb[0].mxu0 %v1978
        %v2031 = vpop.f32.mrb[0].mxu0
        %v2032 = vadd.f32 0.0, %v2031
        %v2033 = vpop.f32.mrb[0].mxu0
        %v2034 = vpop.f32.mrb[0].mxu0
        %v2035 = vadd.f32 0.0, %v2034
        %v2036 = vpop.f32.mrb[0].mxu0
        %2037 = vmatprep.mubr.bf16.mxu0 0
        %2038 = vmatmul.mubr.bf16.gmra.mrb[0].mxu0 %v1981
        %v2039 = vpop.f32.mrb[0].mxu0
        %v2040 = vadd.f32 0.0, %v2039
        %v2041 = vpop.f32.mrb[0].mxu0
        %v2042 = vpop.f32.mrb[0].mxu0
        %v2043 = vadd.f32 0.0, %v2042
        %v2044 = vpop.f32.mrb[0].mxu0
        %2045 = vmatprep.mubr.bf16.mxu0 0
        %2046 = vmatmul.mubr.bf16.gmra.mrb[0].mxu0 %v1984
        %v2047 = vpop.f32.mrb[0].mxu0
        %v2048 = vadd.f32 0.0, %v2047
        %v2049 = vpop.f32.mrb[0].mxu0
        %v2050 = vpop.f32.mrb[0].mxu0
        %v2051 = vadd.f32 0.0, %v2050
        %v2052 = vpop.f32.mrb[0].mxu0
        %2053 = vdwg.mxu0
        %v2055 = vlaneseq
        %v2056 = vshrl.u32 %v2055, 7
        %v2057 = vsub.s32 0, %v2056
        %v2058 = vrot.slane %v748, %v2057
        %v2060 = vadd.f32 %v2024, %v2058
        %v2061 = vadd.f32 %v2027, %v2058
        %v2062 = vadd.f32 %v2032, %v2058
        %v2063 = vadd.f32 %v2035, %v2058
        %v2064 = vadd.f32 %v2040, %v2058
        %v2065 = vadd.f32 %v2043, %v2058
        %v2066 = vadd.f32 %v2048, %v2058
        %v2067 = vadd.f32 %v2051, %v2058
        %v2068 = vtanh.pop %v2060
        %v2069 = vtanh.pop %v2061
        %v2070 = vtanh.pop %v2062
        %v2071 = vtanh.pop %v2063
        %v2072 = vtanh.pop %v2064
        %v2073 = vtanh.pop %v2065
        %v2074 = vtanh.pop %v2066
        %v2075 = vtanh.pop %v2067
        %v2076 = vpack.c.bf16 %v1957, %v1957
        %v2077 = vpack.c.bf16 %v1958, %v1958
        %v2078 = vpack.c.bf16 %v1959, %v1959
        %v2079 = vpack.c.bf16 %v1960, %v1960
        %v2080 = vpack.c.bf16 %v1961, %v1961
        %v2081 = vpack.c.bf16 %v1962, %v1962
        %v2082 = vpack.c.bf16 %v1963, %v1963
        %v2083 = vpack.c.bf16 %v1964, %v1964
        %v2085 = vlaneseq
        %v2086 = vshrl.u32 %v2085, 7
        %v2087 = vsub.s32 0, %v2086
        %v2088 = vrot.slane %v751, %v2087
        %v2098 = vunpack.c.l.b16 %v2076
        %v2099 = vunpack.c.l.b16 %v2077
        %v2100 = vunpack.c.l.b16 %v2078
        %v2101 = vunpack.c.l.b16 %v2079
        %v2102 = vunpack.c.l.b16 %v2080
        %v2103 = vunpack.c.l.b16 %v2081
        %v2104 = vunpack.c.l.b16 %v2082
        %v2105 = vunpack.c.l.b16 %v2083
        %vm2106 = vcmask 1041409
        %v2107 = vsel %vm2106, %v2099, %v2098
        %vm2108 = vcmask 1042434
        %v2109 = vsel %vm2108, %v2100, %v2107
        %vm2110 = vcmask 1043459
        %v2111 = vsel %vm2110, %v2101, %v2109
        %vm2112 = vcmask 1044484
        %v2113 = vsel %vm2112, %v2102, %v2111
        %vm2114 = vcmask 1045509
        %v2115 = vsel %vm2114, %v2103, %v2113
        %vm2116 = vcmask 1046534
        %v2117 = vsel %vm2116, %v2104, %v2115
        %vm2118 = vcmask 1047559
        %v2119 = vsel %vm2118, %v2105, %v2117
        %v2120 = vpack.c.b16 %v2119, %v2119
        %v2123 = vunpack.c.l.b16 %v749
        %v2124 = vunpack.c.l.b16 %v750
        %v2125 = vpack.c.b16 %v2124, %v2123
        %v2127 = vsel %vm1212, %v2120, 0
        %v2130 = vsel %vm1212, %v2125, 0
        %2132 = vmatprep.subr.bf16.mxu0 0
        %2133 = vmatpush1.bf16.xpose.msra.mxu0 %v2130
        %2134 = vmatprep.subr.bf16.mxu0 0
        %2135 = vmatpush1.bf16.xpose.msra.mxu0 0
        %2136 = vmatprep.subr.bf16.mxu0 0
        %2137 = vmatpush1.bf16.xpose.msra.mxu0 0
        %2138 = vmatprep.subr.bf16.mxu0 0
        %2139 = vmatpush1.bf16.xpose.msra.mxu0 0
        %2140 = vmatprep.subr.bf16.mxu0 0
        %2141 = vmatpush1.bf16.xpose.msra.mxu0 0
        %2142 = vmatprep.subr.bf16.mxu0 0
        %2143 = vmatpush1.bf16.xpose.msra.mxu0 0
        %2144 = vmatprep.subr.bf16.mxu0 0
        %2145 = vmatpush1.bf16.xpose.msra.mxu0 0
        %2146 = vmatprep.subr.bf16.mxu0 0
        %2147 = vmatpush1.bf16.xpose.msra.mxu0 0
        %2148 = vmatprep.subr.bf16.mxu0 0
        %2149 = vmatpush1.bf16.xpose.msra.mxu0 0
        %2150 = vmatprep.subr.bf16.mxu0 0
        %2151 = vmatpush1.bf16.xpose.msra.mxu0 0
        %2152 = vmatprep.subr.bf16.mxu0 0
        %2153 = vmatpush1.bf16.xpose.msra.mxu0 0
        %2154 = vmatprep.subr.bf16.mxu0 0
        %2155 = vmatpush1.bf16.xpose.msra.mxu0 0
        %2156 = vmatprep.subr.bf16.mxu0 0
        %2157 = vmatpush1.bf16.xpose.msra.mxu0 0
        %2158 = vmatprep.subr.bf16.mxu0 0
        %2159 = vmatpush1.bf16.xpose.msra.mxu0 0
        %2160 = vmatprep.subr.bf16.mxu0 0
        %2161 = vmatpush1.bf16.xpose.msra.mxu0 0
        %2162 = vmatprep.subr.bf16.mxu0 0
        %2163 = vmatpush1.bf16.xpose.msra.mxu0 0
        %2164 = vmatprep.mubr.bf16.mxu0 0
        %2165 = vmatmul.mubr.bf16.gmra.mrb[0].mxu0 %v2127
        %v2166 = vpop.f32.mrb[0].mxu0
        %v2167 = vadd.f32 %v2088, %v2166
        %v2168 = vpop.f32.mrb[0].mxu0
        %v2169 = vpop.f32.mrb[0].mxu0
        %v2170 = vpop.f32.mrb[0].mxu0
        %2171 = vdwg.mxu0
        %v2172 = vtanh.pop %v2167
        %v2174 = vcombine.high %v2172, %v2172
        %v2176 = vunpack.c.l.s4 1966171168
        %v2177 = vunpack.c.0.s8 %v2176
        %v2178 = vlaneseq
        %v2179 = vshrl.u32 %v2178, 7
        %v2180 = vsub.s32 %v2177, %v2179
        %v2181 = vrot.slane %v2172, %v2180
        %v2183 = vunpack.c.l.s4 1966171168
        %v2184 = vunpack.c.0.s8 %v2183
        %v2185 = vlaneseq
        %v2186 = vshrl.u32 %v2185, 7
        %v2187 = vsub.s32 %v2184, %v2186
        %v2188 = vrot.slane %v2174, %v2187
        %v2189 = vcombine.high %v2181, %v2181
        %v2190 = vcombine.high %v2188, %v2188
        %v2192 = vunpack.c.l.s4 1966171168
        %v2193 = vunpack.c.0.s8 %v2192
        %v2194 = vlaneseq
        %v2195 = vshrl.u32 %v2194, 7
        %v2196 = vsub.s32 %v2193, %v2195
        %v2197 = vrot.slane %v2181, %v2196
        %v2199 = vunpack.c.l.s4 1966171168
        %v2200 = vunpack.c.0.s8 %v2199
        %v2201 = vlaneseq
        %v2202 = vshrl.u32 %v2201, 7
        %v2203 = vsub.s32 %v2200, %v2202
        %v2204 = vrot.slane %v2188, %v2203
        %v2206 = vunpack.c.l.s4 1966171168
        %v2207 = vunpack.c.0.s8 %v2206
        %v2208 = vlaneseq
        %v2209 = vshrl.u32 %v2208, 7
        %v2210 = vsub.s32 %v2207, %v2209
        %v2211 = vrot.slane %v2189, %v2210
        %v2213 = vunpack.c.l.s4 1966171168
        %v2214 = vunpack.c.0.s8 %v2213
        %v2215 = vlaneseq
        %v2216 = vshrl.u32 %v2215, 7
        %v2217 = vsub.s32 %v2214, %v2216
        %v2218 = vrot.slane %v2190, %v2217
        %v2219 = vcombine.high %v2197, %v2197
        %v2220 = vcombine.high %v2204, %v2204
        %v2221 = vcombine.high %v2211, %v2211
        %v2222 = vcombine.high %v2218, %v2218
        %v2223 = vlaneseq
        %v2224 = vshrl.u32 %v2223, 7
        %v2225 = vsub.s32 0, %v2224
        %v2226 = vrot.slane %v2197, %v2225
        %v2227 = vlaneseq
        %v2228 = vshrl.u32 %v2227, 7
        %v2229 = vsub.s32 0, %v2228
        %v2230 = vrot.slane %v2211, %v2229
        %v2231 = vlaneseq
        %v2232 = vshrl.u32 %v2231, 7
        %v2233 = vsub.s32 0, %v2232
        %v2234 = vrot.slane %v2219, %v2233
        %v2235 = vlaneseq
        %v2236 = vshrl.u32 %v2235, 7
        %v2237 = vsub.s32 0, %v2236
        %v2238 = vrot.slane %v2221, %v2237
        %v2239 = vlaneseq
        %v2240 = vshrl.u32 %v2239, 7
        %v2241 = vsub.s32 0, %v2240
        %v2242 = vrot.slane %v2204, %v2241
        %v2243 = vlaneseq
        %v2244 = vshrl.u32 %v2243, 7
        %v2245 = vsub.s32 0, %v2244
        %v2246 = vrot.slane %v2218, %v2245
        %v2247 = vlaneseq
        %v2248 = vshrl.u32 %v2247, 7
        %v2249 = vsub.s32 0, %v2248
        %v2250 = vrot.slane %v2220, %v2249
        %v2251 = vlaneseq
        %v2252 = vshrl.u32 %v2251, 7
        %v2253 = vsub.s32 0, %v2252
        %v2254 = vrot.slane %v2222, %v2253
        %v2263 = vmul.f32 %v2068, %v2226
        %v2264 = vmul.f32 %v2069, %v2230
        %v2265 = vmul.f32 %v2070, %v2234
        %v2266 = vmul.f32 %v2071, %v2238
        %v2267 = vmul.f32 %v2072, %v2242
        %v2268 = vmul.f32 %v2073, %v2246
        %v2269 = vmul.f32 %v2074, %v2250
        %v2270 = vmul.f32 %v2075, %v2254
        %v2272 = vlaneseq
        %v2273 = vshrl.u32 %v2272, 7
        %v2274 = vsub.s32 0, %v2273
        %v2275 = vrot.slane %v752, %v2274
        %v2277 = vmul.f32 %v2263, %v2275
        %v2278 = vmul.f32 %v2264, %v2275
        %v2279 = vmul.f32 %v2265, %v2275
        %v2280 = vmul.f32 %v2266, %v2275
        %v2281 = vmul.f32 %v2267, %v2275
        %v2282 = vmul.f32 %v2268, %v2275
        %v2283 = vmul.f32 %v2269, %v2275
        %v2284 = vmul.f32 %v2270, %v2275
        %v2285 = vsel %vm1212, %v2277, 0.0
        %2286 = vadd.xlane.f32.xlu0 %v2285
        %v2287 = vpop.xlane.xlu0 %2286
        %v2288 = vsel %vm1212, %v2278, 0.0
        %2289 = vadd.xlane.f32.xlu0 %v2288
        %v2290 = vpop.xlane.xlu0 %2289
        %v2291 = vsel %vm1212, %v2279, 0.0
        %2292 = vadd.xlane.f32.xlu0 %v2291
        %v2293 = vpop.xlane.xlu0 %2292
        %v2294 = vsel %vm1212, %v2280, 0.0
        %2295 = vadd.xlane.f32.xlu0 %v2294
        %v2296 = vpop.xlane.xlu0 %2295
        %v2297 = vsel %vm1212, %v2281, 0.0
        %2298 = vadd.xlane.f32.xlu0 %v2297
        %v2299 = vpop.xlane.xlu0 %2298
        %v2300 = vsel %vm1212, %v2282, 0.0
        %2301 = vadd.xlane.f32.xlu0 %v2300
        %v2302 = vpop.xlane.xlu0 %2301
        %v2303 = vsel %vm1212, %v2283, 0.0
        %2304 = vadd.xlane.f32.xlu0 %v2303
        %v2305 = vpop.xlane.xlu0 %2304
        %v2306 = vsel %vm1212, %v2284, 0.0
        %2307 = vadd.xlane.f32.xlu0 %v2306
        %v2308 = vpop.xlane.xlu0 %2307
        %s2309 = vtos %v753
        %v2310 = vstv %s2309
        %v2311 = vadd.f32 %v2287, %v2310
        %v2312 = vadd.f32 %v2290, %v2310
        %v2313 = vadd.f32 %v2293, %v2310
        %v2314 = vadd.f32 %v2296, %v2310
        %v2315 = vadd.f32 %v2299, %v2310
        %v2316 = vadd.f32 %v2302, %v2310
        %v2317 = vadd.f32 %v2305, %v2310
        %v2318 = vadd.f32 %v2308, %v2310
        %vm2319 = vcmp.eq.s32.totalorder %v817, 1
        %v2328 = vlaneseq
        %v2329 = vshrl.u32 %v2328, 7
        %v2330 = vsub.s32 %v761, %v2329
        %v2331 = vrot.slane %v2311, %v2330
        %v2332 = vlaneseq
        %v2333 = vshrl.u32 %v2332, 7
        %v2334 = vsub.s32 %v761, %v2333
        %v2335 = vrot.slane %v2312, %v2334
        %v2336 = vlaneseq
        %v2337 = vshrl.u32 %v2336, 7
        %v2338 = vsub.s32 %v761, %v2337
        %v2339 = vrot.slane %v2313, %v2338
        %v2340 = vlaneseq
        %v2341 = vshrl.u32 %v2340, 7
        %v2342 = vsub.s32 %v761, %v2341
        %v2343 = vrot.slane %v2314, %v2342
        %v2344 = vlaneseq
        %v2345 = vshrl.u32 %v2344, 7
        %v2346 = vsub.s32 %v761, %v2345
        %v2347 = vrot.slane %v2315, %v2346
        %v2348 = vlaneseq
        %v2349 = vshrl.u32 %v2348, 7
        %v2350 = vsub.s32 %v761, %v2349
        %v2351 = vrot.slane %v2316, %v2350
        %v2352 = vlaneseq
        %v2353 = vshrl.u32 %v2352, 7
        %v2354 = vsub.s32 %v761, %v2353
        %v2355 = vrot.slane %v2317, %v2354
        %v2356 = vlaneseq
        %v2357 = vshrl.u32 %v2356, 7
        %v2358 = vsub.s32 %v761, %v2357
        %v2359 = vrot.slane %v2318, %v2358
        %v2360 = vsel %vm2106, %v2335, %v2331
        %v2361 = vsel %vm2108, %v2339, %v2360
        %v2362 = vsel %vm2110, %v2343, %v2361
        %v2363 = vsel %vm2112, %v2347, %v2362
        %v2364 = vsel %vm2114, %v2351, %v2363
        %v2365 = vsel %vm2116, %v2355, %v2364
        %v2366 = vsel %vm2118, %v2359, %v2365
        %v2368 = vsel %vm2319, %v2366, -1e+30
        %v2369 = vsel %vm851, %v2368, -inf
        %2370 = vmax.xlane.f32.xlu0 %v2369
        %v2371 = vpop.xlane.xlu0 %2370
        %v2372 = vsub.f32 %v2368, %v2371
        %v2373 = vmul.f32 %v2372, 1.442695
        %v2374 = vpow.pop %v2373
        %v2375 = vmul.f32 %v2374, %v818
        %v2376 = vsel %vm851, %v2375, 0.0
        %2377 = vadd.xlane.f32.xlu0 %v2376
        %v2378 = vpop.xlane.xlu0 %2377
        %v2379 = vrcp.pop %v2378
        %v2380 = vmul.f32 %v2375, %v2379
        %v2381 = vlaneseq
        %v2382 = vshrl.u32 %v2381, 7
        %v2383 = vsub.s32 0, %v2382
        %v2384 = vrot.slane %v2380, %v2383
        %2386 = vbcast.lane.b32.xlu0 %v2384, 256
        %v2387 = vpop.permute.xlu0 %2386
        %v2388 = vlaneseq
        %v2389 = vshrl.u32 %v2388, 7
        %v2390 = vsub.s32 1, %v2389
        %v2391 = vrot.slane %v2380, %v2390
        %2393 = vbcast.lane.b32.xlu0 %v2391, 256
        %v2394 = vpop.permute.xlu0 %2393
        %v2395 = vlaneseq
        %v2396 = vshrl.u32 %v2395, 7
        %v2397 = vsub.s32 2, %v2396
        %v2398 = vrot.slane %v2380, %v2397
        %2400 = vbcast.lane.b32.xlu0 %v2398, 256
        %v2401 = vpop.permute.xlu0 %2400
        %v2402 = vlaneseq
        %v2403 = vshrl.u32 %v2402, 7
        %v2404 = vsub.s32 3, %v2403
        %v2405 = vrot.slane %v2380, %v2404
        %2407 = vbcast.lane.b32.xlu0 %v2405, 256
        %v2408 = vpop.permute.xlu0 %2407
        %v2409 = vlaneseq
        %v2410 = vshrl.u32 %v2409, 7
        %v2411 = vsub.s32 4, %v2410
        %v2412 = vrot.slane %v2380, %v2411
        %2414 = vbcast.lane.b32.xlu0 %v2412, 256
        %v2415 = vpop.permute.xlu0 %2414
        %v2416 = vlaneseq
        %v2417 = vshrl.u32 %v2416, 7
        %v2418 = vsub.s32 5, %v2417
        %v2419 = vrot.slane %v2380, %v2418
        %2421 = vbcast.lane.b32.xlu0 %v2419, 256
        %v2422 = vpop.permute.xlu0 %2421
        %v2423 = vlaneseq
        %v2424 = vshrl.u32 %v2423, 7
        %v2425 = vsub.s32 6, %v2424
        %v2426 = vrot.slane %v2380, %v2425
        %2428 = vbcast.lane.b32.xlu0 %v2426, 256
        %v2429 = vpop.permute.xlu0 %2428
        %v2430 = vlaneseq
        %v2431 = vshrl.u32 %v2430, 7
        %v2432 = vsub.s32 7, %v2431
        %v2433 = vrot.slane %v2380, %v2432
        %2435 = vbcast.lane.b32.xlu0 %v2433, 256
        %v2436 = vpop.permute.xlu0 %2435
        %v2437 = vmul.f32 %v2387, %v1884
        %v2438 = vmul.f32 %v2394, %v1885
        %v2439 = vmul.f32 %v2401, %v1886
        %v2440 = vmul.f32 %v2408, %v1887
        %v2441 = vmul.f32 %v2415, %v1888
        %v2442 = vmul.f32 %v2422, %v1889
        %v2443 = vmul.f32 %v2429, %v1890
        %v2444 = vmul.f32 %v2436, %v1891
        %v2445 = vsel %vm1212, %v2437, 0.0
        %v2446 = vrot.slane %v2445, 4
        %v2447 = vadd.f32 %v2445, %v2446
        %v2448 = vrot.slane %v2447, 2
        %v2449 = vadd.f32 %v2447, %v2448
        %v2450 = vrot.slane %v2449, 1
        %v2451 = vadd.f32 %v2449, %v2450
        %v2452 = vsel %vm1212, %v2438, 0.0
        %v2453 = vrot.slane %v2452, 4
        %v2454 = vadd.f32 %v2452, %v2453
        %v2455 = vrot.slane %v2454, 2
        %v2456 = vadd.f32 %v2454, %v2455
        %v2457 = vrot.slane %v2456, 1
        %v2458 = vadd.f32 %v2456, %v2457
        %v2459 = vsel %vm1212, %v2439, 0.0
        %v2460 = vrot.slane %v2459, 4
        %v2461 = vadd.f32 %v2459, %v2460
        %v2462 = vrot.slane %v2461, 2
        %v2463 = vadd.f32 %v2461, %v2462
        %v2464 = vrot.slane %v2463, 1
        %v2465 = vadd.f32 %v2463, %v2464
        %v2466 = vsel %vm1212, %v2440, 0.0
        %v2467 = vrot.slane %v2466, 4
        %v2468 = vadd.f32 %v2466, %v2467
        %v2469 = vrot.slane %v2468, 2
        %v2470 = vadd.f32 %v2468, %v2469
        %v2471 = vrot.slane %v2470, 1
        %v2472 = vadd.f32 %v2470, %v2471
        %v2473 = vsel %vm1212, %v2441, 0.0
        %v2474 = vrot.slane %v2473, 4
        %v2475 = vadd.f32 %v2473, %v2474
        %v2476 = vrot.slane %v2475, 2
        %v2477 = vadd.f32 %v2475, %v2476
        %v2478 = vrot.slane %v2477, 1
        %v2479 = vadd.f32 %v2477, %v2478
        %v2480 = vsel %vm1212, %v2442, 0.0
        %v2481 = vrot.slane %v2480, 4
        %v2482 = vadd.f32 %v2480, %v2481
        %v2483 = vrot.slane %v2482, 2
        %v2484 = vadd.f32 %v2482, %v2483
        %v2485 = vrot.slane %v2484, 1
        %v2486 = vadd.f32 %v2484, %v2485
        %v2487 = vsel %vm1212, %v2443, 0.0
        %v2488 = vrot.slane %v2487, 4
        %v2489 = vadd.f32 %v2487, %v2488
        %v2490 = vrot.slane %v2489, 2
        %v2491 = vadd.f32 %v2489, %v2490
        %v2492 = vrot.slane %v2491, 1
        %v2493 = vadd.f32 %v2491, %v2492
        %v2494 = vsel %vm1212, %v2444, 0.0
        %v2495 = vrot.slane %v2494, 4
        %v2496 = vadd.f32 %v2494, %v2495
        %v2497 = vrot.slane %v2496, 2
        %v2498 = vadd.f32 %v2496, %v2497
        %v2499 = vrot.slane %v2498, 1
        %v2500 = vadd.f32 %v2498, %v2499
        %v2501 = vmul.f32 %v2451, %v2451
        %v2502 = vmul.f32 %v2458, %v2458
        %v2503 = vmul.f32 %v2465, %v2465
        %v2504 = vmul.f32 %v2472, %v2472
        %v2505 = vmul.f32 %v2479, %v2479
        %v2506 = vmul.f32 %v2486, %v2486
        %v2507 = vmul.f32 %v2493, %v2493
        %v2508 = vmul.f32 %v2500, %v2500
        %v2517 = vsel %vm2106, %v2502, %v2501
        %v2518 = vsel %vm2108, %v2503, %v2517
        %v2519 = vsel %vm2110, %v2504, %v2518
        %v2520 = vsel %vm2112, %v2505, %v2519
        %v2521 = vsel %vm2114, %v2506, %v2520
        %v2522 = vsel %vm2116, %v2507, %v2521
        %v2523 = vsel %vm2118, %v2508, %v2522
        %v2525 = vsel %vm1212, %v2523, 0.0
        %2526 = vadd.xlane.f32.xlu0 %v2525
        %v2527 = vpop.xlane.xlu0 %2526
        %v2528 = vadd.f32 %v2527, 1e-08
        %v2529 = vrsqrt.pop %v2528
        %v2531 = vrot.slane %v2529, 1
        %v2532 = vrot.slane %v2529, 2
        %v2533 = vrot.slane %v2529, 3
        %v2534 = vrot.slane %v2529, 4
        %v2535 = vrot.slane %v2529, 5
        %v2536 = vrot.slane %v2529, 6
        %v2537 = vrot.slane %v2529, 7
        %v2546 = vmul.f32 %v2451, %v2529
        %v2547 = vmul.f32 %v2458, %v2531
        %v2548 = vmul.f32 %v2465, %v2532
        %v2549 = vmul.f32 %v2472, %v2533
        %v2550 = vmul.f32 %v2479, %v2534
        %v2551 = vmul.f32 %v2486, %v2535
        %v2552 = vmul.f32 %v2493, %v2536
        %v2553 = vmul.f32 %v2500, %v2537
        %v2555 = vlaneseq
        %v2556 = vshrl.u32 %v2555, 7
        %v2557 = vsub.s32 0, %v2556
        %v2558 = vrot.slane %v754, %v2557
        %v2560 = vmul.f32 %v2546, %v2558
        %v2561 = vmul.f32 %v2547, %v2558
        %v2562 = vmul.f32 %v2548, %v2558
        %v2563 = vmul.f32 %v2549, %v2558
        %v2564 = vmul.f32 %v2550, %v2558
        %v2565 = vmul.f32 %v2551, %v2558
        %v2566 = vmul.f32 %v2552, %v2558
        %v2567 = vmul.f32 %v2553, %v2558
        %v2576 = vrot.slane %v2561, 7
        %v2577 = vsel %vm2106, %v2576, %v2560
        %v2578 = vrot.slane %v2562, 6
        %v2579 = vsel %vm2108, %v2578, %v2577
        %v2580 = vrot.slane %v2563, 5
        %v2581 = vsel %vm2110, %v2580, %v2579
        %v2582 = vrot.slane %v2564, 4
        %v2583 = vsel %vm2112, %v2582, %v2581
        %v2584 = vrot.slane %v2565, 3
        %v2585 = vsel %vm2114, %v2584, %v2583
        %v2586 = vrot.slane %v2566, 2
        %v2587 = vsel %vm2116, %v2586, %v2585
        %v2588 = vrot.slane %v2567, 1
        %v2589 = vsel %vm2118, %v2588, %v2587
        %v2591 = vsel %vm1212, %v2589, 0.0
        %2592 = vadd.xlane.f32.xlu0 %v2591
        %v2593 = vpop.xlane.xlu0 %2592
        %s2594 = vtos %v755
        %v2595 = vstv %s2594
        %v2596 = vadd.f32 %v2593, %v2595
        %v2597 = vsub.f32 0.0, %v2596
        %v2598 = vmul.f32 %v2597, 1.442695
        %v2599 = vpow.pop %v2598
        %v2600 = vadd.f32 %v2599, 1.0
        %v2601 = vrcp.pop %v2600
        %v2602 = vmul.f32 1.0, %v2601
        %s2603 = sadd.s32 %s739, 1
        %s2604 = sld [smem:[#allocation3 + %s2603]]
        %p2605 = scmp.gt.s32.totalorder %s2604, 1
        %s2606 = scalar_select %p2605, %s2604, 1
        %v2607 = vld [vmem:[%s4] sm:$0xf]
        %v2608 = vld [vmem:[%s4 + $0x4] sm:$0xf]
        %v2609 = vld [vmem:[#allocation11] sm:$0x1]
        %v2610 = vld [vmem:[%s6] sm:$0xf]
        %v2611 = vld [vmem:[%s6 + $0x4] sm:$0xf]
        %v2612 = vld [vmem:[%s7] sm:$0x1]
        %v2613 = vld [vmem:[%s8] sm:$0xf]
        %v2614 = vld [vmem:[%s8 + $0x4] sm:$0xf]
        %v2615 = vld [vmem:[%s9] sm:$0x1]
        %v2616 = vld [vmem:[%s10] sm:$0x1]
        %v2617 = vld [vmem:[#allocation4] sm:$0x1]
        %v2618 = vld [vmem:[%s12] sm:$0x1]
        %v2619 = vld [vmem:[#allocation5] sm:$0x1]
        %s2620 = scvt.s32.f32 %s2606
        %v2621 = vstv %s2620
        %v2622 = vrcp.pop %v2621
        %s2623 = vtos %v2622
        %v2624 = vstv %s2606
        %vm2625 = vcmp.lt.s32.totalorder %v761, %v2624
        %vm2626 = vcmp.lt.s32.totalorder %v765, %v2624
        %v2627 = vsel %vm2626, 1, 0
        %v2628 = vcvt.s32.f32 %v2627
        %v2629 = vsel %vm2625, 1, 0
        %v2630 = vcvt.s32.f32 %v2629
        %2632 = vrot.lane.b32.xlu0 %v2630, 8
        %v2633 = vpop.permute.xlu0 %2632
        %v2635 = vmul.f32 %v801, %v2633
        %v2636 = vmul.f32 %v802, %v2633
        %v2637 = vmul.f32 %v803, %v2633
        %v2638 = vmul.f32 %v804, %v2633
        %v2639 = vmul.f32 %v805, %v2633
        %v2640 = vmul.f32 %v806, %v2633
        %v2641 = vmul.f32 %v807, %v2633
        %v2642 = vmul.f32 %v808, %v2633
        %v2643 = vmul.f32 %v809, %v2633
        %v2644 = vmul.f32 %v810, %v2633
        %v2645 = vmul.f32 %v811, %v2633
        %v2646 = vmul.f32 %v812, %v2633
        %v2647 = vmul.f32 %v813, %v2633
        %v2648 = vmul.f32 %v814, %v2633
        %v2649 = vmul.f32 %v815, %v2633
        %v2650 = vmul.f32 %v816, %v2633
        %v2651 = vmul.f32 %v2635, %v2635
        %v2652 = vmul.f32 %v2636, %v2636
        %v2653 = vmul.f32 %v2637, %v2637
        %v2654 = vmul.f32 %v2638, %v2638
        %v2655 = vmul.f32 %v2639, %v2639
        %v2656 = vmul.f32 %v2640, %v2640
        %v2657 = vmul.f32 %v2641, %v2641
        %v2658 = vmul.f32 %v2642, %v2642
        %v2659 = vmul.f32 %v2643, %v2643
        %v2660 = vmul.f32 %v2644, %v2644
        %v2661 = vmul.f32 %v2645, %v2645
        %v2662 = vmul.f32 %v2646, %v2646
        %v2663 = vmul.f32 %v2647, %v2647
        %v2664 = vmul.f32 %v2648, %v2648
        %v2665 = vmul.f32 %v2649, %v2649
        %v2666 = vmul.f32 %v2650, %v2650
        %2683 = vrot.lane.b32.xlu0 %v2651, 120
        %v2684 = vpop.permute.xlu0 %2683
        %2685 = vrot.lane.b32.xlu0 %v2652, 120
        %v2686 = vpop.permute.xlu0 %2685
        %2687 = vrot.lane.b32.xlu0 %v2653, 120
        %v2688 = vpop.permute.xlu0 %2687
        %2689 = vrot.lane.b32.xlu0 %v2654, 120
        %v2690 = vpop.permute.xlu0 %2689
        %2691 = vrot.lane.b32.xlu0 %v2655, 120
        %v2692 = vpop.permute.xlu0 %2691
        %2693 = vrot.lane.b32.xlu0 %v2656, 120
        %v2694 = vpop.permute.xlu0 %2693
        %2695 = vrot.lane.b32.xlu0 %v2657, 120
        %v2696 = vpop.permute.xlu0 %2695
        %2697 = vrot.lane.b32.xlu0 %v2658, 120
        %v2698 = vpop.permute.xlu0 %2697
        %2699 = vrot.lane.b32.xlu0 %v2659, 120
        %v2700 = vpop.permute.xlu0 %2699
        %2701 = vrot.lane.b32.xlu0 %v2660, 120
        %v2702 = vpop.permute.xlu0 %2701
        %2703 = vrot.lane.b32.xlu0 %v2661, 120
        %v2704 = vpop.permute.xlu0 %2703
        %2705 = vrot.lane.b32.xlu0 %v2662, 120
        %v2706 = vpop.permute.xlu0 %2705
        %2707 = vrot.lane.b32.xlu0 %v2663, 120
        %v2708 = vpop.permute.xlu0 %2707
        %2709 = vrot.lane.b32.xlu0 %v2664, 120
        %v2710 = vpop.permute.xlu0 %2709
        %2711 = vrot.lane.b32.xlu0 %v2665, 120
        %v2712 = vpop.permute.xlu0 %2711
        %2713 = vrot.lane.b32.xlu0 %v2666, 120
        %v2714 = vpop.permute.xlu0 %2713
        %v2731 = vsel %vm851, %v2684, 0.0
        %2732 = vadd.xlane.f32.xlu0 %v2731
        %v2733 = vpop.xlane.xlu0 %2732
        %v2734 = vsel %vm851, %v2686, 0.0
        %2735 = vadd.xlane.f32.xlu0 %v2734
        %v2736 = vpop.xlane.xlu0 %2735
        %v2737 = vsel %vm851, %v2688, 0.0
        %2738 = vadd.xlane.f32.xlu0 %v2737
        %v2739 = vpop.xlane.xlu0 %2738
        %v2740 = vsel %vm851, %v2690, 0.0
        %2741 = vadd.xlane.f32.xlu0 %v2740
        %v2742 = vpop.xlane.xlu0 %2741
        %v2743 = vsel %vm851, %v2692, 0.0
        %2744 = vadd.xlane.f32.xlu0 %v2743
        %v2745 = vpop.xlane.xlu0 %2744
        %v2746 = vsel %vm851, %v2694, 0.0
        %2747 = vadd.xlane.f32.xlu0 %v2746
        %v2748 = vpop.xlane.xlu0 %2747
        %v2749 = vsel %vm851, %v2696, 0.0
        %2750 = vadd.xlane.f32.xlu0 %v2749
        %v2751 = vpop.xlane.xlu0 %2750
        %v2752 = vsel %vm851, %v2698, 0.0
        %2753 = vadd.xlane.f32.xlu0 %v2752
        %v2754 = vpop.xlane.xlu0 %2753
        %v2755 = vsel %vm851, %v2700, 0.0
        %2756 = vadd.xlane.f32.xlu0 %v2755
        %v2757 = vpop.xlane.xlu0 %2756
        %v2758 = vsel %vm851, %v2702, 0.0
        %2759 = vadd.xlane.f32.xlu0 %v2758
        %v2760 = vpop.xlane.xlu0 %2759
        %v2761 = vsel %vm851, %v2704, 0.0
        %2762 = vadd.xlane.f32.xlu0 %v2761
        %v2763 = vpop.xlane.xlu0 %2762
        %v2764 = vsel %vm851, %v2706, 0.0
        %2765 = vadd.xlane.f32.xlu0 %v2764
        %v2766 = vpop.xlane.xlu0 %2765
        %v2767 = vsel %vm851, %v2708, 0.0
        %2768 = vadd.xlane.f32.xlu0 %v2767
        %v2769 = vpop.xlane.xlu0 %2768
        %v2770 = vsel %vm851, %v2710, 0.0
        %2771 = vadd.xlane.f32.xlu0 %v2770
        %v2772 = vpop.xlane.xlu0 %2771
        %v2773 = vsel %vm851, %v2712, 0.0
        %2774 = vadd.xlane.f32.xlu0 %v2773
        %v2775 = vpop.xlane.xlu0 %2774
        %v2776 = vsel %vm851, %v2714, 0.0
        %2777 = vadd.xlane.f32.xlu0 %v2776
        %v2778 = vpop.xlane.xlu0 %2777
        %v2779 = vadd.f32 %v2733, 1e-08
        %v2780 = vadd.f32 %v2736, 1e-08
        %v2781 = vadd.f32 %v2739, 1e-08
        %v2782 = vadd.f32 %v2742, 1e-08
        %v2783 = vadd.f32 %v2745, 1e-08
        %v2784 = vadd.f32 %v2748, 1e-08
        %v2785 = vadd.f32 %v2751, 1e-08
        %v2786 = vadd.f32 %v2754, 1e-08
        %v2787 = vadd.f32 %v2757, 1e-08
        %v2788 = vadd.f32 %v2760, 1e-08
        %v2789 = vadd.f32 %v2763, 1e-08
        %v2790 = vadd.f32 %v2766, 1e-08
        %v2791 = vadd.f32 %v2769, 1e-08
        %v2792 = vadd.f32 %v2772, 1e-08
        %v2793 = vadd.f32 %v2775, 1e-08
        %v2794 = vadd.f32 %v2778, 1e-08
        %v2795 = vrsqrt.pop %v2779
        %v2796 = vrsqrt.pop %v2780
        %v2797 = vrsqrt.pop %v2781
        %v2798 = vrsqrt.pop %v2782
        %v2799 = vrsqrt.pop %v2783
        %v2800 = vrsqrt.pop %v2784
        %v2801 = vrsqrt.pop %v2785
        %v2802 = vrsqrt.pop %v2786
        %v2803 = vrsqrt.pop %v2787
        %v2804 = vrsqrt.pop %v2788
        %v2805 = vrsqrt.pop %v2789
        %v2806 = vrsqrt.pop %v2790
        %v2807 = vrsqrt.pop %v2791
        %v2808 = vrsqrt.pop %v2792
        %v2809 = vrsqrt.pop %v2793
        %v2810 = vrsqrt.pop %v2794
        %v2811 = vmul.f32 %v2635, %v2795
        %v2812 = vmul.f32 %v2636, %v2796
        %v2813 = vmul.f32 %v2637, %v2797
        %v2814 = vmul.f32 %v2638, %v2798
        %v2815 = vmul.f32 %v2639, %v2799
        %v2816 = vmul.f32 %v2640, %v2800
        %v2817 = vmul.f32 %v2641, %v2801
        %v2818 = vmul.f32 %v2642, %v2802
        %v2819 = vmul.f32 %v2643, %v2803
        %v2820 = vmul.f32 %v2644, %v2804
        %v2821 = vmul.f32 %v2645, %v2805
        %v2822 = vmul.f32 %v2646, %v2806
        %v2823 = vmul.f32 %v2647, %v2807
        %v2824 = vmul.f32 %v2648, %v2808
        %v2825 = vmul.f32 %v2649, %v2809
        %v2826 = vmul.f32 %v2650, %v2810
        %2843 = vrot.lane.b32.xlu0 %v2811, 120
        %v2844 = vpop.permute.xlu0 %2843
        %2845 = vrot.lane.b32.xlu0 %v2812, 120
        %v2846 = vpop.permute.xlu0 %2845
        %2847 = vrot.lane.b32.xlu0 %v2813, 120
        %v2848 = vpop.permute.xlu0 %2847
        %2849 = vrot.lane.b32.xlu0 %v2814, 120
        %v2850 = vpop.permute.xlu0 %2849
        %2851 = vrot.lane.b32.xlu0 %v2815, 120
        %v2852 = vpop.permute.xlu0 %2851
        %2853 = vrot.lane.b32.xlu0 %v2816, 120
        %v2854 = vpop.permute.xlu0 %2853
        %2855 = vrot.lane.b32.xlu0 %v2817, 120
        %v2856 = vpop.permute.xlu0 %2855
        %2857 = vrot.lane.b32.xlu0 %v2818, 120
        %v2858 = vpop.permute.xlu0 %2857
        %2859 = vrot.lane.b32.xlu0 %v2819, 120
        %v2860 = vpop.permute.xlu0 %2859
        %2861 = vrot.lane.b32.xlu0 %v2820, 120
        %v2862 = vpop.permute.xlu0 %2861
        %2863 = vrot.lane.b32.xlu0 %v2821, 120
        %v2864 = vpop.permute.xlu0 %2863
        %2865 = vrot.lane.b32.xlu0 %v2822, 120
        %v2866 = vpop.permute.xlu0 %2865
        %2867 = vrot.lane.b32.xlu0 %v2823, 120
        %v2868 = vpop.permute.xlu0 %2867
        %2869 = vrot.lane.b32.xlu0 %v2824, 120
        %v2870 = vpop.permute.xlu0 %2869
        %2871 = vrot.lane.b32.xlu0 %v2825, 120
        %v2872 = vpop.permute.xlu0 %2871
        %2873 = vrot.lane.b32.xlu0 %v2826, 120
        %v2874 = vpop.permute.xlu0 %2873
        %2891 = vxpose.xlu0.b32.start [1/16] %v2844, 128
        %2892 = vxpose.xlu0.b32.cont [2/16] %v2846, 128
        %2893 = vxpose.xlu0.b32.cont [3/16] 0.0, 128
        %2894 = vxpose.xlu0.b32.cont [4/16] 0.0, 128
        %2895 = vxpose.xlu0.b32.cont [5/16] 0.0, 128
        %2896 = vxpose.xlu0.b32.cont [6/16] 0.0, 128
        %2897 = vxpose.xlu0.b32.cont [7/16] 0.0, 128
        %2898 = vxpose.xlu0.b32.cont [8/16] 0.0, 128
        %2899 = vxpose.xlu0.b32.cont [9/16] 0.0, 128
        %2900 = vxpose.xlu0.b32.cont [10/16] 0.0, 128
        %2901 = vxpose.xlu0.b32.cont [11/16] 0.0, 128
        %2902 = vxpose.xlu0.b32.cont [12/16] 0.0, 128
        %2903 = vxpose.xlu0.b32.cont [13/16] 0.0, 128
        %2904 = vxpose.xlu0.b32.cont [14/16] 0.0, 128
        %2905 = vxpose.xlu0.b32.cont [15/16] 0.0, 128
        %2906 = vxpose.xlu0.b32.end [16/16] 0.0, 128
        %v2907 = vpop.trf.xlu0
        %v2908 = vpop.trf.xlu0
        %v2909 = vpop.trf.xlu0
        %v2910 = vpop.trf.xlu0
        %v2911 = vpop.trf.xlu0
        %v2912 = vpop.trf.xlu0
        %v2913 = vpop.trf.xlu0
        %v2914 = vpop.trf.xlu0
        %v2915 = vpop.trf.xlu0
        %v2916 = vpop.trf.xlu0
        %v2917 = vpop.trf.xlu0
        %v2918 = vpop.trf.xlu0
        %v2919 = vpop.trf.xlu0
        %v2920 = vpop.trf.xlu0
        %v2921 = vpop.trf.xlu0
        %v2922 = vpop.trf.xlu0
        %2923 = vxpose.xlu0.b32.start [1/16] %v2848, 128
        %2924 = vxpose.xlu0.b32.cont [2/16] %v2850, 128
        %2925 = vxpose.xlu0.b32.cont [3/16] 0.0, 128
        %2926 = vxpose.xlu0.b32.cont [4/16] 0.0, 128
        %2927 = vxpose.xlu0.b32.cont [5/16] 0.0, 128
        %2928 = vxpose.xlu0.b32.cont [6/16] 0.0, 128
        %2929 = vxpose.xlu0.b32.cont [7/16] 0.0, 128
        %2930 = vxpose.xlu0.b32.cont [8/16] 0.0, 128
        %2931 = vxpose.xlu0.b32.cont [9/16] 0.0, 128
        %2932 = vxpose.xlu0.b32.cont [10/16] 0.0, 128
        %2933 = vxpose.xlu0.b32.cont [11/16] 0.0, 128
        %2934 = vxpose.xlu0.b32.cont [12/16] 0.0, 128
        %2935 = vxpose.xlu0.b32.cont [13/16] 0.0, 128
        %2936 = vxpose.xlu0.b32.cont [14/16] 0.0, 128
        %2937 = vxpose.xlu0.b32.cont [15/16] 0.0, 128
        %2938 = vxpose.xlu0.b32.end [16/16] 0.0, 128
        %v2939 = vpop.trf.xlu0
        %v2940 = vpop.trf.xlu0
        %v2941 = vpop.trf.xlu0
        %v2942 = vpop.trf.xlu0
        %v2943 = vpop.trf.xlu0
        %v2944 = vpop.trf.xlu0
        %v2945 = vpop.trf.xlu0
        %v2946 = vpop.trf.xlu0
        %v2947 = vpop.trf.xlu0
        %v2948 = vpop.trf.xlu0
        %v2949 = vpop.trf.xlu0
        %v2950 = vpop.trf.xlu0
        %v2951 = vpop.trf.xlu0
        %v2952 = vpop.trf.xlu0
        %v2953 = vpop.trf.xlu0
        %v2954 = vpop.trf.xlu0
        %2955 = vxpose.xlu0.b32.start [1/16] %v2852, 128
        %2956 = vxpose.xlu0.b32.cont [2/16] %v2854, 128
        %2957 = vxpose.xlu0.b32.cont [3/16] 0.0, 128
        %2958 = vxpose.xlu0.b32.cont [4/16] 0.0, 128
        %2959 = vxpose.xlu0.b32.cont [5/16] 0.0, 128
        %2960 = vxpose.xlu0.b32.cont [6/16] 0.0, 128
        %2961 = vxpose.xlu0.b32.cont [7/16] 0.0, 128
        %2962 = vxpose.xlu0.b32.cont [8/16] 0.0, 128
        %2963 = vxpose.xlu0.b32.cont [9/16] 0.0, 128
        %2964 = vxpose.xlu0.b32.cont [10/16] 0.0, 128
        %2965 = vxpose.xlu0.b32.cont [11/16] 0.0, 128
        %2966 = vxpose.xlu0.b32.cont [12/16] 0.0, 128
        %2967 = vxpose.xlu0.b32.cont [13/16] 0.0, 128
        %2968 = vxpose.xlu0.b32.cont [14/16] 0.0, 128
        %2969 = vxpose.xlu0.b32.cont [15/16] 0.0, 128
        %2970 = vxpose.xlu0.b32.end [16/16] 0.0, 128
        %v2971 = vpop.trf.xlu0
        %v2972 = vpop.trf.xlu0
        %v2973 = vpop.trf.xlu0
        %v2974 = vpop.trf.xlu0
        %v2975 = vpop.trf.xlu0
        %v2976 = vpop.trf.xlu0
        %v2977 = vpop.trf.xlu0
        %v2978 = vpop.trf.xlu0
        %v2979 = vpop.trf.xlu0
        %v2980 = vpop.trf.xlu0
        %v2981 = vpop.trf.xlu0
        %v2982 = vpop.trf.xlu0
        %v2983 = vpop.trf.xlu0
        %v2984 = vpop.trf.xlu0
        %v2985 = vpop.trf.xlu0
        %v2986 = vpop.trf.xlu0
        %2987 = vxpose.xlu0.b32.start [1/16] %v2856, 128
        %2988 = vxpose.xlu0.b32.cont [2/16] %v2858, 128
        %2989 = vxpose.xlu0.b32.cont [3/16] 0.0, 128
        %2990 = vxpose.xlu0.b32.cont [4/16] 0.0, 128
        %2991 = vxpose.xlu0.b32.cont [5/16] 0.0, 128
        %2992 = vxpose.xlu0.b32.cont [6/16] 0.0, 128
        %2993 = vxpose.xlu0.b32.cont [7/16] 0.0, 128
        %2994 = vxpose.xlu0.b32.cont [8/16] 0.0, 128
        %2995 = vxpose.xlu0.b32.cont [9/16] 0.0, 128
        %2996 = vxpose.xlu0.b32.cont [10/16] 0.0, 128
        %2997 = vxpose.xlu0.b32.cont [11/16] 0.0, 128
        %2998 = vxpose.xlu0.b32.cont [12/16] 0.0, 128
        %2999 = vxpose.xlu0.b32.cont [13/16] 0.0, 128
        %3000 = vxpose.xlu0.b32.cont [14/16] 0.0, 128
        %3001 = vxpose.xlu0.b32.cont [15/16] 0.0, 128
        %3002 = vxpose.xlu0.b32.end [16/16] 0.0, 128
        %v3003 = vpop.trf.xlu0
        %v3004 = vpop.trf.xlu0
        %v3005 = vpop.trf.xlu0
        %v3006 = vpop.trf.xlu0
        %v3007 = vpop.trf.xlu0
        %v3008 = vpop.trf.xlu0
        %v3009 = vpop.trf.xlu0
        %v3010 = vpop.trf.xlu0
        %v3011 = vpop.trf.xlu0
        %v3012 = vpop.trf.xlu0
        %v3013 = vpop.trf.xlu0
        %v3014 = vpop.trf.xlu0
        %v3015 = vpop.trf.xlu0
        %v3016 = vpop.trf.xlu0
        %v3017 = vpop.trf.xlu0
        %v3018 = vpop.trf.xlu0
        %3019 = vxpose.xlu0.b32.start [1/16] %v2860, 128
        %3020 = vxpose.xlu0.b32.cont [2/16] %v2862, 128
        %3021 = vxpose.xlu0.b32.cont [3/16] 0.0, 128
        %3022 = vxpose.xlu0.b32.cont [4/16] 0.0, 128
        %3023 = vxpose.xlu0.b32.cont [5/16] 0.0, 128
        %3024 = vxpose.xlu0.b32.cont [6/16] 0.0, 128
        %3025 = vxpose.xlu0.b32.cont [7/16] 0.0, 128
        %3026 = vxpose.xlu0.b32.cont [8/16] 0.0, 128
        %3027 = vxpose.xlu0.b32.cont [9/16] 0.0, 128
        %3028 = vxpose.xlu0.b32.cont [10/16] 0.0, 128
        %3029 = vxpose.xlu0.b32.cont [11/16] 0.0, 128
        %3030 = vxpose.xlu0.b32.cont [12/16] 0.0, 128
        %3031 = vxpose.xlu0.b32.cont [13/16] 0.0, 128
        %3032 = vxpose.xlu0.b32.cont [14/16] 0.0, 128
        %3033 = vxpose.xlu0.b32.cont [15/16] 0.0, 128
        %3034 = vxpose.xlu0.b32.end [16/16] 0.0, 128
        %v3035 = vpop.trf.xlu0
        %v3036 = vpop.trf.xlu0
        %v3037 = vpop.trf.xlu0
        %v3038 = vpop.trf.xlu0
        %v3039 = vpop.trf.xlu0
        %v3040 = vpop.trf.xlu0
        %v3041 = vpop.trf.xlu0
        %v3042 = vpop.trf.xlu0
        %v3043 = vpop.trf.xlu0
        %v3044 = vpop.trf.xlu0
        %v3045 = vpop.trf.xlu0
        %v3046 = vpop.trf.xlu0
        %v3047 = vpop.trf.xlu0
        %v3048 = vpop.trf.xlu0
        %v3049 = vpop.trf.xlu0
        %v3050 = vpop.trf.xlu0
        %3051 = vxpose.xlu0.b32.start [1/16] %v2864, 128
        %3052 = vxpose.xlu0.b32.cont [2/16] %v2866, 128
        %3053 = vxpose.xlu0.b32.cont [3/16] 0.0, 128
        %3054 = vxpose.xlu0.b32.cont [4/16] 0.0, 128
        %3055 = vxpose.xlu0.b32.cont [5/16] 0.0, 128
        %3056 = vxpose.xlu0.b32.cont [6/16] 0.0, 128
        %3057 = vxpose.xlu0.b32.cont [7/16] 0.0, 128
        %3058 = vxpose.xlu0.b32.cont [8/16] 0.0, 128
        %3059 = vxpose.xlu0.b32.cont [9/16] 0.0, 128
        %3060 = vxpose.xlu0.b32.cont [10/16] 0.0, 128
        %3061 = vxpose.xlu0.b32.cont [11/16] 0.0, 128
        %3062 = vxpose.xlu0.b32.cont [12/16] 0.0, 128
        %3063 = vxpose.xlu0.b32.cont [13/16] 0.0, 128
        %3064 = vxpose.xlu0.b32.cont [14/16] 0.0, 128
        %3065 = vxpose.xlu0.b32.cont [15/16] 0.0, 128
        %3066 = vxpose.xlu0.b32.end [16/16] 0.0, 128
        %v3067 = vpop.trf.xlu0
        %v3068 = vpop.trf.xlu0
        %v3069 = vpop.trf.xlu0
        %v3070 = vpop.trf.xlu0
        %v3071 = vpop.trf.xlu0
        %v3072 = vpop.trf.xlu0
        %v3073 = vpop.trf.xlu0
        %v3074 = vpop.trf.xlu0
        %v3075 = vpop.trf.xlu0
        %v3076 = vpop.trf.xlu0
        %v3077 = vpop.trf.xlu0
        %v3078 = vpop.trf.xlu0
        %v3079 = vpop.trf.xlu0
        %v3080 = vpop.trf.xlu0
        %v3081 = vpop.trf.xlu0
        %v3082 = vpop.trf.xlu0
        %3083 = vxpose.xlu0.b32.start [1/16] %v2868, 128
        %3084 = vxpose.xlu0.b32.cont [2/16] %v2870, 128
        %3085 = vxpose.xlu0.b32.cont [3/16] 0.0, 128
        %3086 = vxpose.xlu0.b32.cont [4/16] 0.0, 128
        %3087 = vxpose.xlu0.b32.cont [5/16] 0.0, 128
        %3088 = vxpose.xlu0.b32.cont [6/16] 0.0, 128
        %3089 = vxpose.xlu0.b32.cont [7/16] 0.0, 128
        %3090 = vxpose.xlu0.b32.cont [8/16] 0.0, 128
        %3091 = vxpose.xlu0.b32.cont [9/16] 0.0, 128
        %3092 = vxpose.xlu0.b32.cont [10/16] 0.0, 128
        %3093 = vxpose.xlu0.b32.cont [11/16] 0.0, 128
        %3094 = vxpose.xlu0.b32.cont [12/16] 0.0, 128
        %3095 = vxpose.xlu0.b32.cont [13/16] 0.0, 128
        %3096 = vxpose.xlu0.b32.cont [14/16] 0.0, 128
        %3097 = vxpose.xlu0.b32.cont [15/16] 0.0, 128
        %3098 = vxpose.xlu0.b32.end [16/16] 0.0, 128
        %v3099 = vpop.trf.xlu0
        %v3100 = vpop.trf.xlu0
        %v3101 = vpop.trf.xlu0
        %v3102 = vpop.trf.xlu0
        %v3103 = vpop.trf.xlu0
        %v3104 = vpop.trf.xlu0
        %v3105 = vpop.trf.xlu0
        %v3106 = vpop.trf.xlu0
        %v3107 = vpop.trf.xlu0
        %v3108 = vpop.trf.xlu0
        %v3109 = vpop.trf.xlu0
        %v3110 = vpop.trf.xlu0
        %v3111 = vpop.trf.xlu0
        %v3112 = vpop.trf.xlu0
        %v3113 = vpop.trf.xlu0
        %v3114 = vpop.trf.xlu0
        %3115 = vxpose.xlu0.b32.start [1/16] %v2872, 128
        %3116 = vxpose.xlu0.b32.cont [2/16] %v2874, 128
        %3117 = vxpose.xlu0.b32.cont [3/16] 0.0, 128
        %3118 = vxpose.xlu0.b32.cont [4/16] 0.0, 128
        %3119 = vxpose.xlu0.b32.cont [5/16] 0.0, 128
        %3120 = vxpose.xlu0.b32.cont [6/16] 0.0, 128
        %3121 = vxpose.xlu0.b32.cont [7/16] 0.0, 128
        %3122 = vxpose.xlu0.b32.cont [8/16] 0.0, 128
        %3123 = vxpose.xlu0.b32.cont [9/16] 0.0, 128
        %3124 = vxpose.xlu0.b32.cont [10/16] 0.0, 128
        %3125 = vxpose.xlu0.b32.cont [11/16] 0.0, 128
        %3126 = vxpose.xlu0.b32.cont [12/16] 0.0, 128
        %3127 = vxpose.xlu0.b32.cont [13/16] 0.0, 128
        %3128 = vxpose.xlu0.b32.cont [14/16] 0.0, 128
        %3129 = vxpose.xlu0.b32.cont [15/16] 0.0, 128
        %3130 = vxpose.xlu0.b32.end [16/16] 0.0, 128
        %v3131 = vpop.trf.xlu0
        %v3132 = vpop.trf.xlu0
        %v3133 = vpop.trf.xlu0
        %v3134 = vpop.trf.xlu0
        %v3135 = vpop.trf.xlu0
        %v3136 = vpop.trf.xlu0
        %v3137 = vpop.trf.xlu0
        %v3138 = vpop.trf.xlu0
        %v3139 = vpop.trf.xlu0
        %v3140 = vpop.trf.xlu0
        %v3141 = vpop.trf.xlu0
        %v3142 = vpop.trf.xlu0
        %v3143 = vpop.trf.xlu0
        %v3144 = vpop.trf.xlu0
        %v3145 = vpop.trf.xlu0
        %v3146 = vpop.trf.xlu0
        %v3147 = vmul.f32 %v2907, 9.0
        %v3148 = vmul.f32 %v2939, 9.0
        %v3149 = vmul.f32 %v2971, 9.0
        %v3150 = vmul.f32 %v3003, 9.0
        %v3151 = vmul.f32 %v3035, 9.0
        %v3152 = vmul.f32 %v3067, 9.0
        %v3153 = vmul.f32 %v3099, 9.0
        %v3154 = vmul.f32 %v3131, 9.0
        %v3155 = vsel %vm1212, %v3147, -inf
        %3156 = vmax.xlane.f32.xlu0 %v3155
        %v3157 = vpop.xlane.xlu0 %3156
        %v3158 = vsel %vm1212, %v3148, -inf
        %3159 = vmax.xlane.f32.xlu0 %v3158
        %v3160 = vpop.xlane.xlu0 %3159
        %v3161 = vsel %vm1212, %v3149, -inf
        %3162 = vmax.xlane.f32.xlu0 %v3161
        %v3163 = vpop.xlane.xlu0 %3162
        %v3164 = vsel %vm1212, %v3150, -inf
        %3165 = vmax.xlane.f32.xlu0 %v3164
        %v3166 = vpop.xlane.xlu0 %3165
        %v3167 = vsel %vm1212, %v3151, -inf
        %3168 = vmax.xlane.f32.xlu0 %v3167
        %v3169 = vpop.xlane.xlu0 %3168
        %v3170 = vsel %vm1212, %v3152, -inf
        %3171 = vmax.xlane.f32.xlu0 %v3170
        %v3172 = vpop.xlane.xlu0 %3171
        %v3173 = vsel %vm1212, %v3153, -inf
        %3174 = vmax.xlane.f32.xlu0 %v3173
        %v3175 = vpop.xlane.xlu0 %3174
        %v3176 = vsel %vm1212, %v3154, -inf
        %3177 = vmax.xlane.f32.xlu0 %v3176
        %v3178 = vpop.xlane.xlu0 %3177
        %v3179 = vsub.f32 %v3147, %v3157
        %v3180 = vsub.f32 %v3148, %v3160
        %v3181 = vsub.f32 %v3149, %v3163
        %v3182 = vsub.f32 %v3150, %v3166
        %v3183 = vsub.f32 %v3151, %v3169
        %v3184 = vsub.f32 %v3152, %v3172
        %v3185 = vsub.f32 %v3153, %v3175
        %v3186 = vsub.f32 %v3154, %v3178
        %v3187 = vmul.f32 %v3179, 1.442695
        %v3188 = vpow.pop %v3187
        %v3189 = vmul.f32 %v3180, 1.442695
        %v3190 = vpow.pop %v3189
        %v3191 = vmul.f32 %v3181, 1.442695
        %v3192 = vpow.pop %v3191
        %v3193 = vmul.f32 %v3182, 1.442695
        %v3194 = vpow.pop %v3193
        %v3195 = vmul.f32 %v3183, 1.442695
        %v3196 = vpow.pop %v3195
        %v3197 = vmul.f32 %v3184, 1.442695
        %v3198 = vpow.pop %v3197
        %v3199 = vmul.f32 %v3185, 1.442695
        %v3200 = vpow.pop %v3199
        %v3201 = vmul.f32 %v3186, 1.442695
        %v3202 = vpow.pop %v3201
        %v3203 = vsel %vm1212, %v3188, 0.0
        %3204 = vadd.xlane.f32.xlu0 %v3203
        %v3205 = vpop.xlane.xlu0 %3204
        %v3206 = vsel %vm1212, %v3190, 0.0
        %3207 = vadd.xlane.f32.xlu0 %v3206
        %v3208 = vpop.xlane.xlu0 %3207
        %v3209 = vsel %vm1212, %v3192, 0.0
        %3210 = vadd.xlane.f32.xlu0 %v3209
        %v3211 = vpop.xlane.xlu0 %3210
        %v3212 = vsel %vm1212, %v3194, 0.0
        %3213 = vadd.xlane.f32.xlu0 %v3212
        %v3214 = vpop.xlane.xlu0 %3213
        %v3215 = vsel %vm1212, %v3196, 0.0
        %3216 = vadd.xlane.f32.xlu0 %v3215
        %v3217 = vpop.xlane.xlu0 %3216
        %v3218 = vsel %vm1212, %v3198, 0.0
        %3219 = vadd.xlane.f32.xlu0 %v3218
        %v3220 = vpop.xlane.xlu0 %3219
        %v3221 = vsel %vm1212, %v3200, 0.0
        %3222 = vadd.xlane.f32.xlu0 %v3221
        %v3223 = vpop.xlane.xlu0 %3222
        %v3224 = vsel %vm1212, %v3202, 0.0
        %3225 = vadd.xlane.f32.xlu0 %v3224
        %v3226 = vpop.xlane.xlu0 %3225
        %v3227 = vrcp.pop %v3205
        %v3228 = vrcp.pop %v3208
        %v3229 = vrcp.pop %v3211
        %v3230 = vrcp.pop %v3214
        %v3231 = vrcp.pop %v3217
        %v3232 = vrcp.pop %v3220
        %v3233 = vrcp.pop %v3223
        %v3234 = vrcp.pop %v3226
        %v3235 = vmul.f32 %v3188, %v3227
        %v3236 = vmul.f32 %v3190, %v3228
        %v3237 = vmul.f32 %v3192, %v3229
        %v3238 = vmul.f32 %v3194, %v3230
        %v3239 = vmul.f32 %v3196, %v3231
        %v3240 = vmul.f32 %v3198, %v3232
        %v3241 = vmul.f32 %v3200, %v3233
        %v3242 = vmul.f32 %v3202, %v3234
        %v3243 = vpack.c.bf16 %v3235, %v3235
        %v3244 = vpack.c.bf16 %v3236, %v3236
        %v3245 = vpack.c.bf16 %v3237, %v3237
        %v3246 = vpack.c.bf16 %v3238, %v3238
        %v3247 = vpack.c.bf16 %v3239, %v3239
        %v3248 = vpack.c.bf16 %v3240, %v3240
        %v3249 = vpack.c.bf16 %v3241, %v3241
        %v3250 = vpack.c.bf16 %v3242, %v3242
        %v3252 = vsel %vm1212, %v3243, 0
        %3254 = vmatprep.subr.bf16.mxu0 0
        %3255 = vmatpush1.bf16.msra.mxu0 %v601
        %3256 = vmatprep.subr.bf16.mxu0 0
        %3257 = vmatpush1.bf16.msra.mxu0 0
        %3258 = vmatprep.subr.bf16.mxu0 0
        %3259 = vmatpush1.bf16.msra.mxu0 0
        %3260 = vmatprep.subr.bf16.mxu0 0
        %3261 = vmatpush1.bf16.msra.mxu0 0
        %3262 = vmatprep.subr.bf16.mxu0 0
        %3263 = vmatpush1.bf16.msra.mxu0 0
        %3264 = vmatprep.subr.bf16.mxu0 0
        %3265 = vmatpush1.bf16.msra.mxu0 0
        %3266 = vmatprep.subr.bf16.mxu0 0
        %3267 = vmatpush1.bf16.msra.mxu0 0
        %3268 = vmatprep.subr.bf16.mxu0 0
        %3269 = vmatpush1.bf16.msra.mxu0 0
        %3270 = vmatprep.subr.bf16.mxu0 0
        %3271 = vmatpush1.bf16.msra.mxu0 0
        %3272 = vmatprep.subr.bf16.mxu0 0
        %3273 = vmatpush1.bf16.msra.mxu0 0
        %3274 = vmatprep.subr.bf16.mxu0 0
        %3275 = vmatpush1.bf16.msra.mxu0 0
        %3276 = vmatprep.subr.bf16.mxu0 0
        %3277 = vmatpush1.bf16.msra.mxu0 0
        %3278 = vmatprep.subr.bf16.mxu0 0
        %3279 = vmatpush1.bf16.msra.mxu0 0
        %3280 = vmatprep.subr.bf16.mxu0 0
        %3281 = vmatpush1.bf16.msra.mxu0 0
        %3282 = vmatprep.subr.bf16.mxu0 0
        %3283 = vmatpush1.bf16.msra.mxu0 0
        %3284 = vmatprep.subr.bf16.mxu0 0
        %3285 = vmatpush1.bf16.msra.mxu0 0
        %3286 = vmatprep.mubr.bf16.mxu0 0
        %3287 = vmatmul.mubr.bf16.gmra.mrb[0].mxu0 %v3252
        %v3288 = vpop.f32.mrb[0].mxu0
        %v3289 = vadd.f32 0.0, %v3288
        %v3290 = vpop.f32.mrb[0].mxu0
        %v3291 = vpop.f32.mrb[0].mxu0
        %v3292 = vpop.f32.mrb[0].mxu0
        %3293 = vdwg.mxu0
        %v3295 = vsel %vm1212, %v3244, 0
        %3297 = vmatprep.subr.bf16.mxu0 0
        %3298 = vmatpush1.bf16.msra.mxu0 %v602
        %3299 = vmatprep.subr.bf16.mxu0 0
        %3300 = vmatpush1.bf16.msra.mxu0 0
        %3301 = vmatprep.subr.bf16.mxu0 0
        %3302 = vmatpush1.bf16.msra.mxu0 0
        %3303 = vmatprep.subr.bf16.mxu0 0
        %3304 = vmatpush1.bf16.msra.mxu0 0
        %3305 = vmatprep.subr.bf16.mxu0 0
        %3306 = vmatpush1.bf16.msra.mxu0 0
        %3307 = vmatprep.subr.bf16.mxu0 0
        %3308 = vmatpush1.bf16.msra.mxu0 0
        %3309 = vmatprep.subr.bf16.mxu0 0
        %3310 = vmatpush1.bf16.msra.mxu0 0
        %3311 = vmatprep.subr.bf16.mxu0 0
        %3312 = vmatpush1.bf16.msra.mxu0 0
        %3313 = vmatprep.subr.bf16.mxu0 0
        %3314 = vmatpush1.bf16.msra.mxu0 0
        %3315 = vmatprep.subr.bf16.mxu0 0
        %3316 = vmatpush1.bf16.msra.mxu0 0
        %3317 = vmatprep.subr.bf16.mxu0 0
        %3318 = vmatpush1.bf16.msra.mxu0 0
        %3319 = vmatprep.subr.bf16.mxu0 0
        %3320 = vmatpush1.bf16.msra.mxu0 0
        %3321 = vmatprep.subr.bf16.mxu0 0
        %3322 = vmatpush1.bf16.msra.mxu0 0
        %3323 = vmatprep.subr.bf16.mxu0 0
        %3324 = vmatpush1.bf16.msra.mxu0 0
        %3325 = vmatprep.subr.bf16.mxu0 0
        %3326 = vmatpush1.bf16.msra.mxu0 0
        %3327 = vmatprep.subr.bf16.mxu0 0
        %3328 = vmatpush1.bf16.msra.mxu0 0
        %3329 = vmatprep.mubr.bf16.mxu0 0
        %3330 = vmatmul.mubr.bf16.gmra.mrb[0].mxu0 %v3295
        %v3331 = vpop.f32.mrb[0].mxu0
        %v3332 = vadd.f32 0.0, %v3331
        %v3333 = vpop.f32.mrb[0].mxu0
        %v3334 = vpop.f32.mrb[0].mxu0
        %v3335 = vpop.f32.mrb[0].mxu0
        %3336 = vdwg.mxu0
        %v3338 = vsel %vm1212, %v3245, 0
        %3340 = vmatprep.subr.bf16.mxu0 0
        %3341 = vmatpush1.bf16.msra.mxu0 %v603
        %3342 = vmatprep.subr.bf16.mxu0 0
        %3343 = vmatpush1.bf16.msra.mxu0 0
        %3344 = vmatprep.subr.bf16.mxu0 0
        %3345 = vmatpush1.bf16.msra.mxu0 0
        %3346 = vmatprep.subr.bf16.mxu0 0
        %3347 = vmatpush1.bf16.msra.mxu0 0
        %3348 = vmatprep.subr.bf16.mxu0 0
        %3349 = vmatpush1.bf16.msra.mxu0 0
        %3350 = vmatprep.subr.bf16.mxu0 0
        %3351 = vmatpush1.bf16.msra.mxu0 0
        %3352 = vmatprep.subr.bf16.mxu0 0
        %3353 = vmatpush1.bf16.msra.mxu0 0
        %3354 = vmatprep.subr.bf16.mxu0 0
        %3355 = vmatpush1.bf16.msra.mxu0 0
        %3356 = vmatprep.subr.bf16.mxu0 0
        %3357 = vmatpush1.bf16.msra.mxu0 0
        %3358 = vmatprep.subr.bf16.mxu0 0
        %3359 = vmatpush1.bf16.msra.mxu0 0
        %3360 = vmatprep.subr.bf16.mxu0 0
        %3361 = vmatpush1.bf16.msra.mxu0 0
        %3362 = vmatprep.subr.bf16.mxu0 0
        %3363 = vmatpush1.bf16.msra.mxu0 0
        %3364 = vmatprep.subr.bf16.mxu0 0
        %3365 = vmatpush1.bf16.msra.mxu0 0
        %3366 = vmatprep.subr.bf16.mxu0 0
        %3367 = vmatpush1.bf16.msra.mxu0 0
        %3368 = vmatprep.subr.bf16.mxu0 0
        %3369 = vmatpush1.bf16.msra.mxu0 0
        %3370 = vmatprep.subr.bf16.mxu0 0
        %3371 = vmatpush1.bf16.msra.mxu0 0
        %3372 = vmatprep.mubr.bf16.mxu0 0
        %3373 = vmatmul.mubr.bf16.gmra.mrb[0].mxu0 %v3338
        %v3374 = vpop.f32.mrb[0].mxu0
        %v3375 = vadd.f32 0.0, %v3374
        %v3376 = vpop.f32.mrb[0].mxu0
        %v3377 = vpop.f32.mrb[0].mxu0
        %v3378 = vpop.f32.mrb[0].mxu0
        %3379 = vdwg.mxu0
        %v3381 = vsel %vm1212, %v3246, 0
        %3383 = vmatprep.subr.bf16.mxu0 0
        %3384 = vmatpush1.bf16.msra.mxu0 %v604
        %3385 = vmatprep.subr.bf16.mxu0 0
        %3386 = vmatpush1.bf16.msra.mxu0 0
        %3387 = vmatprep.subr.bf16.mxu0 0
        %3388 = vmatpush1.bf16.msra.mxu0 0
        %3389 = vmatprep.subr.bf16.mxu0 0
        %3390 = vmatpush1.bf16.msra.mxu0 0
        %3391 = vmatprep.subr.bf16.mxu0 0
        %3392 = vmatpush1.bf16.msra.mxu0 0
        %3393 = vmatprep.subr.bf16.mxu0 0
        %3394 = vmatpush1.bf16.msra.mxu0 0
        %3395 = vmatprep.subr.bf16.mxu0 0
        %3396 = vmatpush1.bf16.msra.mxu0 0
        %3397 = vmatprep.subr.bf16.mxu0 0
        %3398 = vmatpush1.bf16.msra.mxu0 0
        %3399 = vmatprep.subr.bf16.mxu0 0
        %3400 = vmatpush1.bf16.msra.mxu0 0
        %3401 = vmatprep.subr.bf16.mxu0 0
        %3402 = vmatpush1.bf16.msra.mxu0 0
        %3403 = vmatprep.subr.bf16.mxu0 0
        %3404 = vmatpush1.bf16.msra.mxu0 0
        %3405 = vmatprep.subr.bf16.mxu0 0
        %3406 = vmatpush1.bf16.msra.mxu0 0
        %3407 = vmatprep.subr.bf16.mxu0 0
        %3408 = vmatpush1.bf16.msra.mxu0 0
        %3409 = vmatprep.subr.bf16.mxu0 0
        %3410 = vmatpush1.bf16.msra.mxu0 0
        %3411 = vmatprep.subr.bf16.mxu0 0
        %3412 = vmatpush1.bf16.msra.mxu0 0
        %3413 = vmatprep.subr.bf16.mxu0 0
        %3414 = vmatpush1.bf16.msra.mxu0 0
        %3415 = vmatprep.mubr.bf16.mxu0 0
        %3416 = vmatmul.mubr.bf16.gmra.mrb[0].mxu0 %v3381
        %v3417 = vpop.f32.mrb[0].mxu0
        %v3418 = vadd.f32 0.0, %v3417
        %v3419 = vpop.f32.mrb[0].mxu0
        %v3420 = vpop.f32.mrb[0].mxu0
        %v3421 = vpop.f32.mrb[0].mxu0
        %3422 = vdwg.mxu0
        %v3424 = vsel %vm1212, %v3247, 0
        %3426 = vmatprep.subr.bf16.mxu0 0
        %3427 = vmatpush1.bf16.msra.mxu0 %v605
        %3428 = vmatprep.subr.bf16.mxu0 0
        %3429 = vmatpush1.bf16.msra.mxu0 0
        %3430 = vmatprep.subr.bf16.mxu0 0
        %3431 = vmatpush1.bf16.msra.mxu0 0
        %3432 = vmatprep.subr.bf16.mxu0 0
        %3433 = vmatpush1.bf16.msra.mxu0 0
        %3434 = vmatprep.subr.bf16.mxu0 0
        %3435 = vmatpush1.bf16.msra.mxu0 0
        %3436 = vmatprep.subr.bf16.mxu0 0
        %3437 = vmatpush1.bf16.msra.mxu0 0
        %3438 = vmatprep.subr.bf16.mxu0 0
        %3439 = vmatpush1.bf16.msra.mxu0 0
        %3440 = vmatprep.subr.bf16.mxu0 0
        %3441 = vmatpush1.bf16.msra.mxu0 0
        %3442 = vmatprep.subr.bf16.mxu0 0
        %3443 = vmatpush1.bf16.msra.mxu0 0
        %3444 = vmatprep.subr.bf16.mxu0 0
        %3445 = vmatpush1.bf16.msra.mxu0 0
        %3446 = vmatprep.subr.bf16.mxu0 0
        %3447 = vmatpush1.bf16.msra.mxu0 0
        %3448 = vmatprep.subr.bf16.mxu0 0
        %3449 = vmatpush1.bf16.msra.mxu0 0
        %3450 = vmatprep.subr.bf16.mxu0 0
        %3451 = vmatpush1.bf16.msra.mxu0 0
        %3452 = vmatprep.subr.bf16.mxu0 0
        %3453 = vmatpush1.bf16.msra.mxu0 0
        %3454 = vmatprep.subr.bf16.mxu0 0
        %3455 = vmatpush1.bf16.msra.mxu0 0
        %3456 = vmatprep.subr.bf16.mxu0 0
        %3457 = vmatpush1.bf16.msra.mxu0 0
        %3458 = vmatprep.mubr.bf16.mxu0 0
        %3459 = vmatmul.mubr.bf16.gmra.mrb[0].mxu0 %v3424
        %v3460 = vpop.f32.mrb[0].mxu0
        %v3461 = vadd.f32 0.0, %v3460
        %v3462 = vpop.f32.mrb[0].mxu0
        %v3463 = vpop.f32.mrb[0].mxu0
        %v3464 = vpop.f32.mrb[0].mxu0
        %3465 = vdwg.mxu0
        %v3467 = vsel %vm1212, %v3248, 0
        %3469 = vmatprep.subr.bf16.mxu0 0
        %3470 = vmatpush1.bf16.msra.mxu0 %v606
        %3471 = vmatprep.subr.bf16.mxu0 0
        %3472 = vmatpush1.bf16.msra.mxu0 0
        %3473 = vmatprep.subr.bf16.mxu0 0
        %3474 = vmatpush1.bf16.msra.mxu0 0
        %3475 = vmatprep.subr.bf16.mxu0 0
        %3476 = vmatpush1.bf16.msra.mxu0 0
        %3477 = vmatprep.subr.bf16.mxu0 0
        %3478 = vmatpush1.bf16.msra.mxu0 0
        %3479 = vmatprep.subr.bf16.mxu0 0
        %3480 = vmatpush1.bf16.msra.mxu0 0
        %3481 = vmatprep.subr.bf16.mxu0 0
        %3482 = vmatpush1.bf16.msra.mxu0 0
        %3483 = vmatprep.subr.bf16.mxu0 0
        %3484 = vmatpush1.bf16.msra.mxu0 0
        %3485 = vmatprep.subr.bf16.mxu0 0
        %3486 = vmatpush1.bf16.msra.mxu0 0
        %3487 = vmatprep.subr.bf16.mxu0 0
        %3488 = vmatpush1.bf16.msra.mxu0 0
        %3489 = vmatprep.subr.bf16.mxu0 0
        %3490 = vmatpush1.bf16.msra.mxu0 0
        %3491 = vmatprep.subr.bf16.mxu0 0
        %3492 = vmatpush1.bf16.msra.mxu0 0
        %3493 = vmatprep.subr.bf16.mxu0 0
        %3494 = vmatpush1.bf16.msra.mxu0 0
        %3495 = vmatprep.subr.bf16.mxu0 0
        %3496 = vmatpush1.bf16.msra.mxu0 0
        %3497 = vmatprep.subr.bf16.mxu0 0
        %3498 = vmatpush1.bf16.msra.mxu0 0
        %3499 = vmatprep.subr.bf16.mxu0 0
        %3500 = vmatpush1.bf16.msra.mxu0 0
        %3501 = vmatprep.mubr.bf16.mxu0 0
        %3502 = vmatmul.mubr.bf16.gmra.mrb[0].mxu0 %v3467
        %v3503 = vpop.f32.mrb[0].mxu0
        %v3504 = vadd.f32 0.0, %v3503
        %v3505 = vpop.f32.mrb[0].mxu0
        %v3506 = vpop.f32.mrb[0].mxu0
        %v3507 = vpop.f32.mrb[0].mxu0
        %3508 = vdwg.mxu0
        %v3510 = vsel %vm1212, %v3249, 0
        %3512 = vmatprep.subr.bf16.mxu0 0
        %3513 = vmatpush1.bf16.msra.mxu0 %v607
        %3514 = vmatprep.subr.bf16.mxu0 0
        %3515 = vmatpush1.bf16.msra.mxu0 0
        %3516 = vmatprep.subr.bf16.mxu0 0
        %3517 = vmatpush1.bf16.msra.mxu0 0
        %3518 = vmatprep.subr.bf16.mxu0 0
        %3519 = vmatpush1.bf16.msra.mxu0 0
        %3520 = vmatprep.subr.bf16.mxu0 0
        %3521 = vmatpush1.bf16.msra.mxu0 0
        %3522 = vmatprep.subr.bf16.mxu0 0
        %3523 = vmatpush1.bf16.msra.mxu0 0
        %3524 = vmatprep.subr.bf16.mxu0 0
        %3525 = vmatpush1.bf16.msra.mxu0 0
        %3526 = vmatprep.subr.bf16.mxu0 0
        %3527 = vmatpush1.bf16.msra.mxu0 0
        %3528 = vmatprep.subr.bf16.mxu0 0
        %3529 = vmatpush1.bf16.msra.mxu0 0
        %3530 = vmatprep.subr.bf16.mxu0 0
        %3531 = vmatpush1.bf16.msra.mxu0 0
        %3532 = vmatprep.subr.bf16.mxu0 0
        %3533 = vmatpush1.bf16.msra.mxu0 0
        %3534 = vmatprep.subr.bf16.mxu0 0
        %3535 = vmatpush1.bf16.msra.mxu0 0
        %3536 = vmatprep.subr.bf16.mxu0 0
        %3537 = vmatpush1.bf16.msra.mxu0 0
        %3538 = vmatprep.subr.bf16.mxu0 0
        %3539 = vmatpush1.bf16.msra.mxu0 0
        %3540 = vmatprep.subr.bf16.mxu0 0
        %3541 = vmatpush1.bf16.msra.mxu0 0
        %3542 = vmatprep.subr.bf16.mxu0 0
        %3543 = vmatpush1.bf16.msra.mxu0 0
        %3544 = vmatprep.mubr.bf16.mxu0 0
        %3545 = vmatmul.mubr.bf16.gmra.mrb[0].mxu0 %v3510
        %v3546 = vpop.f32.mrb[0].mxu0
        %v3547 = vadd.f32 0.0, %v3546
        %v3548 = vpop.f32.mrb[0].mxu0
        %v3549 = vpop.f32.mrb[0].mxu0
        %v3550 = vpop.f32.mrb[0].mxu0
        %3551 = vdwg.mxu0
        %v3553 = vsel %vm1212, %v3250, 0
        %3555 = vmatprep.subr.bf16.mxu0 0
        %3556 = vmatpush1.bf16.msra.mxu0 %v608
        %3557 = vmatprep.subr.bf16.mxu0 0
        %3558 = vmatpush1.bf16.msra.mxu0 0
        %3559 = vmatprep.subr.bf16.mxu0 0
        %3560 = vmatpush1.bf16.msra.mxu0 0
        %3561 = vmatprep.subr.bf16.mxu0 0
        %3562 = vmatpush1.bf16.msra.mxu0 0
        %3563 = vmatprep.subr.bf16.mxu0 0
        %3564 = vmatpush1.bf16.msra.mxu0 0
        %3565 = vmatprep.subr.bf16.mxu0 0
        %3566 = vmatpush1.bf16.msra.mxu0 0
        %3567 = vmatprep.subr.bf16.mxu0 0
        %3568 = vmatpush1.bf16.msra.mxu0 0
        %3569 = vmatprep.subr.bf16.mxu0 0
        %3570 = vmatpush1.bf16.msra.mxu0 0
        %3571 = vmatprep.subr.bf16.mxu0 0
        %3572 = vmatpush1.bf16.msra.mxu0 0
        %3573 = vmatprep.subr.bf16.mxu0 0
        %3574 = vmatpush1.bf16.msra.mxu0 0
        %3575 = vmatprep.subr.bf16.mxu0 0
        %3576 = vmatpush1.bf16.msra.mxu0 0
        %3577 = vmatprep.subr.bf16.mxu0 0
        %3578 = vmatpush1.bf16.msra.mxu0 0
        %3579 = vmatprep.subr.bf16.mxu0 0
        %3580 = vmatpush1.bf16.msra.mxu0 0
        %3581 = vmatprep.subr.bf16.mxu0 0
        %3582 = vmatpush1.bf16.msra.mxu0 0
        %3583 = vmatprep.subr.bf16.mxu0 0
        %3584 = vmatpush1.bf16.msra.mxu0 0
        %3585 = vmatprep.subr.bf16.mxu0 0
        %3586 = vmatpush1.bf16.msra.mxu0 0
        %3587 = vmatprep.mubr.bf16.mxu0 0
        %3588 = vmatmul.mubr.bf16.gmra.mrb[0].mxu0 %v3553
        %v3589 = vpop.f32.mrb[0].mxu0
        %v3590 = vadd.f32 0.0, %v3589
        %v3591 = vpop.f32.mrb[0].mxu0
        %v3592 = vpop.f32.mrb[0].mxu0
        %v3593 = vpop.f32.mrb[0].mxu0
        %3594 = vdwg.mxu0
        %v3595 = vmul.f32 %v3289, %v3289
        %v3596 = vmul.f32 %v3332, %v3332
        %v3597 = vmul.f32 %v3375, %v3375
        %v3598 = vmul.f32 %v3418, %v3418
        %v3599 = vmul.f32 %v3461, %v3461
        %v3600 = vmul.f32 %v3504, %v3504
        %v3601 = vmul.f32 %v3547, %v3547
        %v3602 = vmul.f32 %v3590, %v3590
        %v3603 = vsel %vm614, %v3595, 0.0
        %3604 = vadd.xlane.f32.xlu0 %v3603
        %v3605 = vpop.xlane.xlu0 %3604
        %v3606 = vsel %vm614, %v3596, 0.0
        %3607 = vadd.xlane.f32.xlu0 %v3606
        %v3608 = vpop.xlane.xlu0 %3607
        %v3609 = vsel %vm614, %v3597, 0.0
        %3610 = vadd.xlane.f32.xlu0 %v3609
        %v3611 = vpop.xlane.xlu0 %3610
        %v3612 = vsel %vm614, %v3598, 0.0
        %3613 = vadd.xlane.f32.xlu0 %v3612
        %v3614 = vpop.xlane.xlu0 %3613
        %v3615 = vsel %vm614, %v3599, 0.0
        %3616 = vadd.xlane.f32.xlu0 %v3615
        %v3617 = vpop.xlane.xlu0 %3616
        %v3618 = vsel %vm614, %v3600, 0.0
        %3619 = vadd.xlane.f32.xlu0 %v3618
        %v3620 = vpop.xlane.xlu0 %3619
        %v3621 = vsel %vm614, %v3601, 0.0
        %3622 = vadd.xlane.f32.xlu0 %v3621
        %v3623 = vpop.xlane.xlu0 %3622
        %v3624 = vsel %vm614, %v3602, 0.0
        %3625 = vadd.xlane.f32.xlu0 %v3624
        %v3626 = vpop.xlane.xlu0 %3625
        %v3627 = vadd.f32 %v3605, 1e-08
        %v3628 = vadd.f32 %v3608, 1e-08
        %v3629 = vadd.f32 %v3611, 1e-08
        %v3630 = vadd.f32 %v3614, 1e-08
        %v3631 = vadd.f32 %v3617, 1e-08
        %v3632 = vadd.f32 %v3620, 1e-08
        %v3633 = vadd.f32 %v3623, 1e-08
        %v3634 = vadd.f32 %v3626, 1e-08
        %v3635 = vrsqrt.pop %v3627
        %v3636 = vrsqrt.pop %v3628
        %v3637 = vrsqrt.pop %v3629
        %v3638 = vrsqrt.pop %v3630
        %v3639 = vrsqrt.pop %v3631
        %v3640 = vrsqrt.pop %v3632
        %v3641 = vrsqrt.pop %v3633
        %v3642 = vrsqrt.pop %v3634
        %v3643 = vmul.f32 %v3289, %v3635
        %v3644 = vmul.f32 %v3332, %v3636
        %v3645 = vmul.f32 %v3375, %v3637
        %v3646 = vmul.f32 %v3418, %v3638
        %v3647 = vmul.f32 %v3461, %v3639
        %v3648 = vmul.f32 %v3504, %v3640
        %v3649 = vmul.f32 %v3547, %v3641
        %v3650 = vmul.f32 %v3590, %v3642
        %v3651 = vsub.f32 %v557, %v3643
        %v3652 = vsub.f32 %v557, %v3644
        %v3653 = vsub.f32 %v557, %v3645
        %v3654 = vsub.f32 %v557, %v3646
        %v3655 = vsub.f32 %v557, %v3647
        %v3656 = vsub.f32 %v557, %v3648
        %v3657 = vsub.f32 %v557, %v3649
        %v3658 = vsub.f32 %v557, %v3650
        %v3659 = vmul.f32 %v3651, %v3651
        %v3660 = vmul.f32 %v3652, %v3652
        %v3661 = vmul.f32 %v3653, %v3653
        %v3662 = vmul.f32 %v3654, %v3654
        %v3663 = vmul.f32 %v3655, %v3655
        %v3664 = vmul.f32 %v3656, %v3656
        %v3665 = vmul.f32 %v3657, %v3657
        %v3666 = vmul.f32 %v3658, %v3658
        %v3667 = vpack.c.bf16 %v3660, %v3659
        %v3668 = vpack.c.bf16 %v3662, %v3661
        %v3669 = vpack.c.bf16 %v3664, %v3663
        %v3670 = vpack.c.bf16 %v3666, %v3665
        %v3673 = vunpack.c.l.b16 %v2607
        %v3674 = vunpack.c.l.b16 %v2608
        %v3675 = vpack.c.b16 %v3674, %v3673
        %v3677 = vsel %vm614, %v3667, 0
        %v3680 = vsel %vm614, %v3668, 0
        %v3683 = vsel %vm614, %v3669, 0
        %v3686 = vsel %vm614, %v3670, 0
        %v3689 = vsel %vm614, %v3675, 0
        %3691 = vmatprep.subr.bf16.mxu0 0
        %3692 = vmatpush1.bf16.xpose.msra.mxu0 %v3689
        %3693 = vmatprep.subr.bf16.mxu0 0
        %3694 = vmatpush1.bf16.xpose.msra.mxu0 0
        %3695 = vmatprep.subr.bf16.mxu0 0
        %3696 = vmatpush1.bf16.xpose.msra.mxu0 0
        %3697 = vmatprep.subr.bf16.mxu0 0
        %3698 = vmatpush1.bf16.xpose.msra.mxu0 0
        %3699 = vmatprep.subr.bf16.mxu0 0
        %3700 = vmatpush1.bf16.xpose.msra.mxu0 0
        %3701 = vmatprep.subr.bf16.mxu0 0
        %3702 = vmatpush1.bf16.xpose.msra.mxu0 0
        %3703 = vmatprep.subr.bf16.mxu0 0
        %3704 = vmatpush1.bf16.xpose.msra.mxu0 0
        %3705 = vmatprep.subr.bf16.mxu0 0
        %3706 = vmatpush1.bf16.xpose.msra.mxu0 0
        %3707 = vmatprep.subr.bf16.mxu0 0
        %3708 = vmatpush1.bf16.xpose.msra.mxu0 0
        %3709 = vmatprep.subr.bf16.mxu0 0
        %3710 = vmatpush1.bf16.xpose.msra.mxu0 0
        %3711 = vmatprep.subr.bf16.mxu0 0
        %3712 = vmatpush1.bf16.xpose.msra.mxu0 0
        %3713 = vmatprep.subr.bf16.mxu0 0
        %3714 = vmatpush1.bf16.xpose.msra.mxu0 0
        %3715 = vmatprep.subr.bf16.mxu0 0
        %3716 = vmatpush1.bf16.xpose.msra.mxu0 0
        %3717 = vmatprep.subr.bf16.mxu0 0
        %3718 = vmatpush1.bf16.xpose.msra.mxu0 0
        %3719 = vmatprep.subr.bf16.mxu0 0
        %3720 = vmatpush1.bf16.xpose.msra.mxu0 0
        %3721 = vmatprep.subr.bf16.mxu0 0
        %3722 = vmatpush1.bf16.xpose.msra.mxu0 0
        %3723 = vmatprep.mubr.bf16.mxu0 0
        %3724 = vmatmul.mubr.bf16.gmra.mrb[0].mxu0 %v3677
        %v3725 = vpop.f32.mrb[0].mxu0
        %v3726 = vadd.f32 0.0, %v3725
        %v3727 = vpop.f32.mrb[0].mxu0
        %v3728 = vpop.f32.mrb[0].mxu0
        %v3729 = vadd.f32 0.0, %v3728
        %v3730 = vpop.f32.mrb[0].mxu0
        %3731 = vmatprep.mubr.bf16.mxu0 0
        %3732 = vmatmul.mubr.bf16.gmra.mrb[0].mxu0 %v3680
        %v3733 = vpop.f32.mrb[0].mxu0
        %v3734 = vadd.f32 0.0, %v3733
        %v3735 = vpop.f32.mrb[0].mxu0
        %v3736 = vpop.f32.mrb[0].mxu0
        %v3737 = vadd.f32 0.0, %v3736
        %v3738 = vpop.f32.mrb[0].mxu0
        %3739 = vmatprep.mubr.bf16.mxu0 0
        %3740 = vmatmul.mubr.bf16.gmra.mrb[0].mxu0 %v3683
        %v3741 = vpop.f32.mrb[0].mxu0
        %v3742 = vadd.f32 0.0, %v3741
        %v3743 = vpop.f32.mrb[0].mxu0
        %v3744 = vpop.f32.mrb[0].mxu0
        %v3745 = vadd.f32 0.0, %v3744
        %v3746 = vpop.f32.mrb[0].mxu0
        %3747 = vmatprep.mubr.bf16.mxu0 0
        %3748 = vmatmul.mubr.bf16.gmra.mrb[0].mxu0 %v3686
        %v3749 = vpop.f32.mrb[0].mxu0
        %v3750 = vadd.f32 0.0, %v3749
        %v3751 = vpop.f32.mrb[0].mxu0
        %v3752 = vpop.f32.mrb[0].mxu0
        %v3753 = vadd.f32 0.0, %v3752
        %v3754 = vpop.f32.mrb[0].mxu0
        %3755 = vdwg.mxu0
        %v3757 = vlaneseq
        %v3758 = vshrl.u32 %v3757, 7
        %v3759 = vsub.s32 0, %v3758
        %v3760 = vrot.slane %v2609, %v3759
        %v3762 = vadd.f32 %v3726, %v3760
        %v3763 = vadd.f32 %v3729, %v3760
        %v3764 = vadd.f32 %v3734, %v3760
        %v3765 = vadd.f32 %v3737, %v3760
        %v3766 = vadd.f32 %v3742, %v3760
        %v3767 = vadd.f32 %v3745, %v3760
        %v3768 = vadd.f32 %v3750, %v3760
        %v3769 = vadd.f32 %v3753, %v3760
        %v3770 = vmul.f32 %v3762, %v3762
        %v3771 = vmul.f32 %v3763, %v3763
        %v3772 = vmul.f32 %v3764, %v3764
        %v3773 = vmul.f32 %v3765, %v3765
        %v3774 = vmul.f32 %v3766, %v3766
        %v3775 = vmul.f32 %v3767, %v3767
        %v3776 = vmul.f32 %v3768, %v3768
        %v3777 = vmul.f32 %v3769, %v3769
        %v3778 = vsel %vm1212, %v3770, 0.0
        %3779 = vadd.xlane.f32.xlu0 %v3778
        %v3780 = vpop.xlane.xlu0 %3779
        %v3781 = vsel %vm1212, %v3771, 0.0
        %3782 = vadd.xlane.f32.xlu0 %v3781
        %v3783 = vpop.xlane.xlu0 %3782
        %v3784 = vsel %vm1212, %v3772, 0.0
        %3785 = vadd.xlane.f32.xlu0 %v3784
        %v3786 = vpop.xlane.xlu0 %3785
        %v3787 = vsel %vm1212, %v3773, 0.0
        %3788 = vadd.xlane.f32.xlu0 %v3787
        %v3789 = vpop.xlane.xlu0 %3788
        %v3790 = vsel %vm1212, %v3774, 0.0
        %3791 = vadd.xlane.f32.xlu0 %v3790
        %v3792 = vpop.xlane.xlu0 %3791
        %v3793 = vsel %vm1212, %v3775, 0.0
        %3794 = vadd.xlane.f32.xlu0 %v3793
        %v3795 = vpop.xlane.xlu0 %3794
        %v3796 = vsel %vm1212, %v3776, 0.0
        %3797 = vadd.xlane.f32.xlu0 %v3796
        %v3798 = vpop.xlane.xlu0 %3797
        %v3799 = vsel %vm1212, %v3777, 0.0
        %3800 = vadd.xlane.f32.xlu0 %v3799
        %v3801 = vpop.xlane.xlu0 %3800
        %v3802 = vadd.f32 %v3780, 1e-08
        %v3803 = vadd.f32 %v3783, 1e-08
        %v3804 = vadd.f32 %v3786, 1e-08
        %v3805 = vadd.f32 %v3789, 1e-08
        %v3806 = vadd.f32 %v3792, 1e-08
        %v3807 = vadd.f32 %v3795, 1e-08
        %v3808 = vadd.f32 %v3798, 1e-08
        %v3809 = vadd.f32 %v3801, 1e-08
        %v3810 = vrsqrt.pop %v3802
        %v3811 = vrsqrt.pop %v3803
        %v3812 = vrsqrt.pop %v3804
        %v3813 = vrsqrt.pop %v3805
        %v3814 = vrsqrt.pop %v3806
        %v3815 = vrsqrt.pop %v3807
        %v3816 = vrsqrt.pop %v3808
        %v3817 = vrsqrt.pop %v3809
        %v3818 = vmul.f32 %v3762, %v3810
        %v3819 = vmul.f32 %v3763, %v3811
        %v3820 = vmul.f32 %v3764, %v3812
        %v3821 = vmul.f32 %v3765, %v3813
        %v3822 = vmul.f32 %v3766, %v3814
        %v3823 = vmul.f32 %v3767, %v3815
        %v3824 = vmul.f32 %v3768, %v3816
        %v3825 = vmul.f32 %v3769, %v3817
        %v3826 = vmul.f32 %v3818, %v2628
        %v3827 = vmul.f32 %v3819, %v2628
        %v3828 = vmul.f32 %v3820, %v2628
        %v3829 = vmul.f32 %v3821, %v2628
        %v3830 = vmul.f32 %v3822, %v2628
        %v3831 = vmul.f32 %v3823, %v2628
        %v3832 = vmul.f32 %v3824, %v2628
        %v3833 = vmul.f32 %v3825, %v2628
        %v3834 = vsel %vm1212, %v3826, 0.0
        %v3835 = vrot.slane %v3834, 4
        %v3836 = vadd.f32 %v3834, %v3835
        %v3837 = vrot.slane %v3836, 2
        %v3838 = vadd.f32 %v3836, %v3837
        %v3839 = vrot.slane %v3838, 1
        %v3840 = vadd.f32 %v3838, %v3839
        %v3841 = vsel %vm1212, %v3827, 0.0
        %v3842 = vrot.slane %v3841, 4
        %v3843 = vadd.f32 %v3841, %v3842
        %v3844 = vrot.slane %v3843, 2
        %v3845 = vadd.f32 %v3843, %v3844
        %v3846 = vrot.slane %v3845, 1
        %v3847 = vadd.f32 %v3845, %v3846
        %v3848 = vsel %vm1212, %v3828, 0.0
        %v3849 = vrot.slane %v3848, 4
        %v3850 = vadd.f32 %v3848, %v3849
        %v3851 = vrot.slane %v3850, 2
        %v3852 = vadd.f32 %v3850, %v3851
        %v3853 = vrot.slane %v3852, 1
        %v3854 = vadd.f32 %v3852, %v3853
        %v3855 = vsel %vm1212, %v3829, 0.0
        %v3856 = vrot.slane %v3855, 4
        %v3857 = vadd.f32 %v3855, %v3856
        %v3858 = vrot.slane %v3857, 2
        %v3859 = vadd.f32 %v3857, %v3858
        %v3860 = vrot.slane %v3859, 1
        %v3861 = vadd.f32 %v3859, %v3860
        %v3862 = vsel %vm1212, %v3830, 0.0
        %v3863 = vrot.slane %v3862, 4
        %v3864 = vadd.f32 %v3862, %v3863
        %v3865 = vrot.slane %v3864, 2
        %v3866 = vadd.f32 %v3864, %v3865
        %v3867 = vrot.slane %v3866, 1
        %v3868 = vadd.f32 %v3866, %v3867
        %v3869 = vsel %vm1212, %v3831, 0.0
        %v3870 = vrot.slane %v3869, 4
        %v3871 = vadd.f32 %v3869, %v3870
        %v3872 = vrot.slane %v3871, 2
        %v3873 = vadd.f32 %v3871, %v3872
        %v3874 = vrot.slane %v3873, 1
        %v3875 = vadd.f32 %v3873, %v3874
        %v3876 = vsel %vm1212, %v3832, 0.0
        %v3877 = vrot.slane %v3876, 4
        %v3878 = vadd.f32 %v3876, %v3877
        %v3879 = vrot.slane %v3878, 2
        %v3880 = vadd.f32 %v3878, %v3879
        %v3881 = vrot.slane %v3880, 1
        %v3882 = vadd.f32 %v3880, %v3881
        %v3883 = vsel %vm1212, %v3833, 0.0
        %v3884 = vrot.slane %v3883, 4
        %v3885 = vadd.f32 %v3883, %v3884
        %v3886 = vrot.slane %v3885, 2
        %v3887 = vadd.f32 %v3885, %v3886
        %v3888 = vrot.slane %v3887, 1
        %v3889 = vadd.f32 %v3887, %v3888
        %v3890 = vstv %s2623
        %v3891 = vmul.f32 %v3840, %v3890
        %v3892 = vmul.f32 %v3847, %v3890
        %v3893 = vmul.f32 %v3854, %v3890
        %v3894 = vmul.f32 %v3861, %v3890
        %v3895 = vmul.f32 %v3868, %v3890
        %v3896 = vmul.f32 %v3875, %v3890
        %v3897 = vmul.f32 %v3882, %v3890
        %v3898 = vmul.f32 %v3889, %v3890
        %v3899 = vpack.c.bf16 %v3819, %v3818
        %v3900 = vpack.c.bf16 %v3821, %v3820
        %v3901 = vpack.c.bf16 %v3823, %v3822
        %v3902 = vpack.c.bf16 %v3825, %v3824
        %v3905 = vunpack.c.l.b16 %v2610
        %v3906 = vunpack.c.l.b16 %v2611
        %v3907 = vpack.c.b16 %v3906, %v3905
        %v3909 = vsel %vm1212, %v3899, 0
        %v3912 = vsel %vm1212, %v3900, 0
        %v3915 = vsel %vm1212, %v3901, 0
        %v3918 = vsel %vm1212, %v3902, 0
        %v3921 = vsel %vm1212, %v3907, 0
        %3923 = vmatprep.subr.bf16.mxu0 0
        %3924 = vmatpush1.bf16.xpose.msra.mxu0 %v3921
        %3925 = vmatprep.subr.bf16.mxu0 0
        %3926 = vmatpush1.bf16.xpose.msra.mxu0 0
        %3927 = vmatprep.subr.bf16.mxu0 0
        %3928 = vmatpush1.bf16.xpose.msra.mxu0 0
        %3929 = vmatprep.subr.bf16.mxu0 0
        %3930 = vmatpush1.bf16.xpose.msra.mxu0 0
        %3931 = vmatprep.subr.bf16.mxu0 0
        %3932 = vmatpush1.bf16.xpose.msra.mxu0 0
        %3933 = vmatprep.subr.bf16.mxu0 0
        %3934 = vmatpush1.bf16.xpose.msra.mxu0 0
        %3935 = vmatprep.subr.bf16.mxu0 0
        %3936 = vmatpush1.bf16.xpose.msra.mxu0 0
        %3937 = vmatprep.subr.bf16.mxu0 0
        %3938 = vmatpush1.bf16.xpose.msra.mxu0 0
        %3939 = vmatprep.subr.bf16.mxu0 0
        %3940 = vmatpush1.bf16.xpose.msra.mxu0 0
        %3941 = vmatprep.subr.bf16.mxu0 0
        %3942 = vmatpush1.bf16.xpose.msra.mxu0 0
        %3943 = vmatprep.subr.bf16.mxu0 0
        %3944 = vmatpush1.bf16.xpose.msra.mxu0 0
        %3945 = vmatprep.subr.bf16.mxu0 0
        %3946 = vmatpush1.bf16.xpose.msra.mxu0 0
        %3947 = vmatprep.subr.bf16.mxu0 0
        %3948 = vmatpush1.bf16.xpose.msra.mxu0 0
        %3949 = vmatprep.subr.bf16.mxu0 0
        %3950 = vmatpush1.bf16.xpose.msra.mxu0 0
        %3951 = vmatprep.subr.bf16.mxu0 0
        %3952 = vmatpush1.bf16.xpose.msra.mxu0 0
        %3953 = vmatprep.subr.bf16.mxu0 0
        %3954 = vmatpush1.bf16.xpose.msra.mxu0 0
        %3955 = vmatprep.mubr.bf16.mxu0 0
        %3956 = vmatmul.mubr.bf16.gmra.mrb[0].mxu0 %v3909
        %v3957 = vpop.f32.mrb[0].mxu0
        %v3958 = vadd.f32 0.0, %v3957
        %v3959 = vpop.f32.mrb[0].mxu0
        %v3960 = vpop.f32.mrb[0].mxu0
        %v3961 = vadd.f32 0.0, %v3960
        %v3962 = vpop.f32.mrb[0].mxu0
        %3963 = vmatprep.mubr.bf16.mxu0 0
        %3964 = vmatmul.mubr.bf16.gmra.mrb[0].mxu0 %v3912
        %v3965 = vpop.f32.mrb[0].mxu0
        %v3966 = vadd.f32 0.0, %v3965
        %v3967 = vpop.f32.mrb[0].mxu0
        %v3968 = vpop.f32.mrb[0].mxu0
        %v3969 = vadd.f32 0.0, %v3968
        %v3970 = vpop.f32.mrb[0].mxu0
        %3971 = vmatprep.mubr.bf16.mxu0 0
        %3972 = vmatmul.mubr.bf16.gmra.mrb[0].mxu0 %v3915
        %v3973 = vpop.f32.mrb[0].mxu0
        %v3974 = vadd.f32 0.0, %v3973
        %v3975 = vpop.f32.mrb[0].mxu0
        %v3976 = vpop.f32.mrb[0].mxu0
        %v3977 = vadd.f32 0.0, %v3976
        %v3978 = vpop.f32.mrb[0].mxu0
        %3979 = vmatprep.mubr.bf16.mxu0 0
        %3980 = vmatmul.mubr.bf16.gmra.mrb[0].mxu0 %v3918
        %v3981 = vpop.f32.mrb[0].mxu0
        %v3982 = vadd.f32 0.0, %v3981
        %v3983 = vpop.f32.mrb[0].mxu0
        %v3984 = vpop.f32.mrb[0].mxu0
        %v3985 = vadd.f32 0.0, %v3984
        %v3986 = vpop.f32.mrb[0].mxu0
        %3987 = vdwg.mxu0
        %v3989 = vlaneseq
        %v3990 = vshrl.u32 %v3989, 7
        %v3991 = vsub.s32 0, %v3990
        %v3992 = vrot.slane %v2612, %v3991
        %v3994 = vadd.f32 %v3958, %v3992
        %v3995 = vadd.f32 %v3961, %v3992
        %v3996 = vadd.f32 %v3966, %v3992
        %v3997 = vadd.f32 %v3969, %v3992
        %v3998 = vadd.f32 %v3974, %v3992
        %v3999 = vadd.f32 %v3977, %v3992
        %v4000 = vadd.f32 %v3982, %v3992
        %v4001 = vadd.f32 %v3985, %v3992
        %v4002 = vtanh.pop %v3994
        %v4003 = vtanh.pop %v3995
        %v4004 = vtanh.pop %v3996
        %v4005 = vtanh.pop %v3997
        %v4006 = vtanh.pop %v3998
        %v4007 = vtanh.pop %v3999
        %v4008 = vtanh.pop %v4000
        %v4009 = vtanh.pop %v4001
        %v4010 = vpack.c.bf16 %v3891, %v3891
        %v4011 = vpack.c.bf16 %v3892, %v3892
        %v4012 = vpack.c.bf16 %v3893, %v3893
        %v4013 = vpack.c.bf16 %v3894, %v3894
        %v4014 = vpack.c.bf16 %v3895, %v3895
        %v4015 = vpack.c.bf16 %v3896, %v3896
        %v4016 = vpack.c.bf16 %v3897, %v3897
        %v4017 = vpack.c.bf16 %v3898, %v3898
        %v4019 = vlaneseq
        %v4020 = vshrl.u32 %v4019, 7
        %v4021 = vsub.s32 0, %v4020
        %v4022 = vrot.slane %v2615, %v4021
        %v4032 = vunpack.c.l.b16 %v4010
        %v4033 = vunpack.c.l.b16 %v4011
        %v4034 = vunpack.c.l.b16 %v4012
        %v4035 = vunpack.c.l.b16 %v4013
        %v4036 = vunpack.c.l.b16 %v4014
        %v4037 = vunpack.c.l.b16 %v4015
        %v4038 = vunpack.c.l.b16 %v4016
        %v4039 = vunpack.c.l.b16 %v4017
        %v4040 = vsel %vm2106, %v4033, %v4032
        %v4041 = vsel %vm2108, %v4034, %v4040
        %v4042 = vsel %vm2110, %v4035, %v4041
        %v4043 = vsel %vm2112, %v4036, %v4042
        %v4044 = vsel %vm2114, %v4037, %v4043
        %v4045 = vsel %vm2116, %v4038, %v4044
        %v4046 = vsel %vm2118, %v4039, %v4045
        %v4047 = vpack.c.b16 %v4046, %v4046
        %v4050 = vunpack.c.l.b16 %v2613
        %v4051 = vunpack.c.l.b16 %v2614
        %v4052 = vpack.c.b16 %v4051, %v4050
        %v4054 = vsel %vm1212, %v4047, 0
        %v4057 = vsel %vm1212, %v4052, 0
        %4059 = vmatprep.subr.bf16.mxu0 0
        %4060 = vmatpush1.bf16.xpose.msra.mxu0 %v4057
        %4061 = vmatprep.subr.bf16.mxu0 0
        %4062 = vmatpush1.bf16.xpose.msra.mxu0 0
        %4063 = vmatprep.subr.bf16.mxu0 0
        %4064 = vmatpush1.bf16.xpose.msra.mxu0 0
        %4065 = vmatprep.subr.bf16.mxu0 0
        %4066 = vmatpush1.bf16.xpose.msra.mxu0 0
        %4067 = vmatprep.subr.bf16.mxu0 0
        %4068 = vmatpush1.bf16.xpose.msra.mxu0 0
        %4069 = vmatprep.subr.bf16.mxu0 0
        %4070 = vmatpush1.bf16.xpose.msra.mxu0 0
        %4071 = vmatprep.subr.bf16.mxu0 0
        %4072 = vmatpush1.bf16.xpose.msra.mxu0 0
        %4073 = vmatprep.subr.bf16.mxu0 0
        %4074 = vmatpush1.bf16.xpose.msra.mxu0 0
        %4075 = vmatprep.subr.bf16.mxu0 0
        %4076 = vmatpush1.bf16.xpose.msra.mxu0 0
        %4077 = vmatprep.subr.bf16.mxu0 0
        %4078 = vmatpush1.bf16.xpose.msra.mxu0 0
        %4079 = vmatprep.subr.bf16.mxu0 0
        %4080 = vmatpush1.bf16.xpose.msra.mxu0 0
        %4081 = vmatprep.subr.bf16.mxu0 0
        %4082 = vmatpush1.bf16.xpose.msra.mxu0 0
        %4083 = vmatprep.subr.bf16.mxu0 0
        %4084 = vmatpush1.bf16.xpose.msra.mxu0 0
        %4085 = vmatprep.subr.bf16.mxu0 0
        %4086 = vmatpush1.bf16.xpose.msra.mxu0 0
        %4087 = vmatprep.subr.bf16.mxu0 0
        %4088 = vmatpush1.bf16.xpose.msra.mxu0 0
        %4089 = vmatprep.subr.bf16.mxu0 0
        %4090 = vmatpush1.bf16.xpose.msra.mxu0 0
        %4091 = vmatprep.mubr.bf16.mxu0 0
        %4092 = vmatmul.mubr.bf16.gmra.mrb[0].mxu0 %v4054
        %v4093 = vpop.f32.mrb[0].mxu0
        %v4094 = vadd.f32 %v4022, %v4093
        %v4095 = vpop.f32.mrb[0].mxu0
        %v4096 = vpop.f32.mrb[0].mxu0
        %v4097 = vpop.f32.mrb[0].mxu0
        %4098 = vdwg.mxu0
        %v4099 = vtanh.pop %v4094
        %v4101 = vcombine.high %v4099, %v4099
        %v4103 = vunpack.c.l.s4 1966171168
        %v4104 = vunpack.c.0.s8 %v4103
        %v4105 = vlaneseq
        %v4106 = vshrl.u32 %v4105, 7
        %v4107 = vsub.s32 %v4104, %v4106
        %v4108 = vrot.slane %v4099, %v4107
        %v4110 = vunpack.c.l.s4 1966171168
        %v4111 = vunpack.c.0.s8 %v4110
        %v4112 = vlaneseq
        %v4113 = vshrl.u32 %v4112, 7
        %v4114 = vsub.s32 %v4111, %v4113
        %v4115 = vrot.slane %v4101, %v4114
        %v4116 = vcombine.high %v4108, %v4108
        %v4117 = vcombine.high %v4115, %v4115
        %v4119 = vunpack.c.l.s4 1966171168
        %v4120 = vunpack.c.0.s8 %v4119
        %v4121 = vlaneseq
        %v4122 = vshrl.u32 %v4121, 7
        %v4123 = vsub.s32 %v4120, %v4122
        %v4124 = vrot.slane %v4108, %v4123
        %v4126 = vunpack.c.l.s4 1966171168
        %v4127 = vunpack.c.0.s8 %v4126
        %v4128 = vlaneseq
        %v4129 = vshrl.u32 %v4128, 7
        %v4130 = vsub.s32 %v4127, %v4129
        %v4131 = vrot.slane %v4115, %v4130
        %v4133 = vunpack.c.l.s4 1966171168
        %v4134 = vunpack.c.0.s8 %v4133
        %v4135 = vlaneseq
        %v4136 = vshrl.u32 %v4135, 7
        %v4137 = vsub.s32 %v4134, %v4136
        %v4138 = vrot.slane %v4116, %v4137
        %v4140 = vunpack.c.l.s4 1966171168
        %v4141 = vunpack.c.0.s8 %v4140
        %v4142 = vlaneseq
        %v4143 = vshrl.u32 %v4142, 7
        %v4144 = vsub.s32 %v4141, %v4143
        %v4145 = vrot.slane %v4117, %v4144
        %v4146 = vcombine.high %v4124, %v4124
        %v4147 = vcombine.high %v4131, %v4131
        %v4148 = vcombine.high %v4138, %v4138
        %v4149 = vcombine.high %v4145, %v4145
        %v4150 = vlaneseq
        %v4151 = vshrl.u32 %v4150, 7
        %v4152 = vsub.s32 0, %v4151
        %v4153 = vrot.slane %v4124, %v4152
        %v4154 = vlaneseq
        %v4155 = vshrl.u32 %v4154, 7
        %v4156 = vsub.s32 0, %v4155
        %v4157 = vrot.slane %v4138, %v4156
        %v4158 = vlaneseq
        %v4159 = vshrl.u32 %v4158, 7
        %v4160 = vsub.s32 0, %v4159
        %v4161 = vrot.slane %v4146, %v4160
        %v4162 = vlaneseq
        %v4163 = vshrl.u32 %v4162, 7
        %v4164 = vsub.s32 0, %v4163
        %v4165 = vrot.slane %v4148, %v4164
        %v4166 = vlaneseq
        %v4167 = vshrl.u32 %v4166, 7
        %v4168 = vsub.s32 0, %v4167
        %v4169 = vrot.slane %v4131, %v4168
        %v4170 = vlaneseq
        %v4171 = vshrl.u32 %v4170, 7
        %v4172 = vsub.s32 0, %v4171
        %v4173 = vrot.slane %v4145, %v4172
        %v4174 = vlaneseq
        %v4175 = vshrl.u32 %v4174, 7
        %v4176 = vsub.s32 0, %v4175
        %v4177 = vrot.slane %v4147, %v4176
        %v4178 = vlaneseq
        %v4179 = vshrl.u32 %v4178, 7
        %v4180 = vsub.s32 0, %v4179
        %v4181 = vrot.slane %v4149, %v4180
        %v4190 = vmul.f32 %v4002, %v4153
        %v4191 = vmul.f32 %v4003, %v4157
        %v4192 = vmul.f32 %v4004, %v4161
        %v4193 = vmul.f32 %v4005, %v4165
        %v4194 = vmul.f32 %v4006, %v4169
        %v4195 = vmul.f32 %v4007, %v4173
        %v4196 = vmul.f32 %v4008, %v4177
        %v4197 = vmul.f32 %v4009, %v4181
        %v4199 = vlaneseq
        %v4200 = vshrl.u32 %v4199, 7
        %v4201 = vsub.s32 0, %v4200
        %v4202 = vrot.slane %v2616, %v4201
        %v4204 = vmul.f32 %v4190, %v4202
        %v4205 = vmul.f32 %v4191, %v4202
        %v4206 = vmul.f32 %v4192, %v4202
        %v4207 = vmul.f32 %v4193, %v4202
        %v4208 = vmul.f32 %v4194, %v4202
        %v4209 = vmul.f32 %v4195, %v4202
        %v4210 = vmul.f32 %v4196, %v4202
        %v4211 = vmul.f32 %v4197, %v4202
        %v4212 = vsel %vm1212, %v4204, 0.0
        %4213 = vadd.xlane.f32.xlu0 %v4212
        %v4214 = vpop.xlane.xlu0 %4213
        %v4215 = vsel %vm1212, %v4205, 0.0
        %4216 = vadd.xlane.f32.xlu0 %v4215
        %v4217 = vpop.xlane.xlu0 %4216
        %v4218 = vsel %vm1212, %v4206, 0.0
        %4219 = vadd.xlane.f32.xlu0 %v4218
        %v4220 = vpop.xlane.xlu0 %4219
        %v4221 = vsel %vm1212, %v4207, 0.0
        %4222 = vadd.xlane.f32.xlu0 %v4221
        %v4223 = vpop.xlane.xlu0 %4222
        %v4224 = vsel %vm1212, %v4208, 0.0
        %4225 = vadd.xlane.f32.xlu0 %v4224
        %v4226 = vpop.xlane.xlu0 %4225
        %v4227 = vsel %vm1212, %v4209, 0.0
        %4228 = vadd.xlane.f32.xlu0 %v4227
        %v4229 = vpop.xlane.xlu0 %4228
        %v4230 = vsel %vm1212, %v4210, 0.0
        %4231 = vadd.xlane.f32.xlu0 %v4230
        %v4232 = vpop.xlane.xlu0 %4231
        %v4233 = vsel %vm1212, %v4211, 0.0
        %4234 = vadd.xlane.f32.xlu0 %v4233
        %v4235 = vpop.xlane.xlu0 %4234
        %s4236 = vtos %v2617
        %v4237 = vstv %s4236
        %v4238 = vadd.f32 %v4214, %v4237
        %v4239 = vadd.f32 %v4217, %v4237
        %v4240 = vadd.f32 %v4220, %v4237
        %v4241 = vadd.f32 %v4223, %v4237
        %v4242 = vadd.f32 %v4226, %v4237
        %v4243 = vadd.f32 %v4229, %v4237
        %v4244 = vadd.f32 %v4232, %v4237
        %v4245 = vadd.f32 %v4235, %v4237
        %vm4246 = vcmp.eq.s32.totalorder %v2629, 1
        %v4255 = vlaneseq
        %v4256 = vshrl.u32 %v4255, 7
        %v4257 = vsub.s32 %v761, %v4256
        %v4258 = vrot.slane %v4238, %v4257
        %v4259 = vlaneseq
        %v4260 = vshrl.u32 %v4259, 7
        %v4261 = vsub.s32 %v761, %v4260
        %v4262 = vrot.slane %v4239, %v4261
        %v4263 = vlaneseq
        %v4264 = vshrl.u32 %v4263, 7
        %v4265 = vsub.s32 %v761, %v4264
        %v4266 = vrot.slane %v4240, %v4265
        %v4267 = vlaneseq
        %v4268 = vshrl.u32 %v4267, 7
        %v4269 = vsub.s32 %v761, %v4268
        %v4270 = vrot.slane %v4241, %v4269
        %v4271 = vlaneseq
        %v4272 = vshrl.u32 %v4271, 7
        %v4273 = vsub.s32 %v761, %v4272
        %v4274 = vrot.slane %v4242, %v4273
        %v4275 = vlaneseq
        %v4276 = vshrl.u32 %v4275, 7
        %v4277 = vsub.s32 %v761, %v4276
        %v4278 = vrot.slane %v4243, %v4277
        %v4279 = vlaneseq
        %v4280 = vshrl.u32 %v4279, 7
        %v4281 = vsub.s32 %v761, %v4280
        %v4282 = vrot.slane %v4244, %v4281
        %v4283 = vlaneseq
        %v4284 = vshrl.u32 %v4283, 7
        %v4285 = vsub.s32 %v761, %v4284
        %v4286 = vrot.slane %v4245, %v4285
        %v4287 = vsel %vm2106, %v4262, %v4258
        %v4288 = vsel %vm2108, %v4266, %v4287
        %v4289 = vsel %vm2110, %v4270, %v4288
        %v4290 = vsel %vm2112, %v4274, %v4289
        %v4291 = vsel %vm2114, %v4278, %v4290
        %v4292 = vsel %vm2116, %v4282, %v4291
        %v4293 = vsel %vm2118, %v4286, %v4292
        %v4295 = vsel %vm4246, %v4293, -1e+30
        %v4296 = vsel %vm851, %v4295, -inf
        %4297 = vmax.xlane.f32.xlu0 %v4296
        %v4298 = vpop.xlane.xlu0 %4297
        %v4299 = vsub.f32 %v4295, %v4298
        %v4300 = vmul.f32 %v4299, 1.442695
        %v4301 = vpow.pop %v4300
        %v4302 = vmul.f32 %v4301, %v2630
        %v4303 = vsel %vm851, %v4302, 0.0
        %4304 = vadd.xlane.f32.xlu0 %v4303
        %v4305 = vpop.xlane.xlu0 %4304
        %v4306 = vrcp.pop %v4305
        %v4307 = vmul.f32 %v4302, %v4306
        %v4308 = vlaneseq
        %v4309 = vshrl.u32 %v4308, 7
        %v4310 = vsub.s32 0, %v4309
        %v4311 = vrot.slane %v4307, %v4310
        %4313 = vbcast.lane.b32.xlu0 %v4311, 256
        %v4314 = vpop.permute.xlu0 %4313
        %v4315 = vlaneseq
        %v4316 = vshrl.u32 %v4315, 7
        %v4317 = vsub.s32 1, %v4316
        %v4318 = vrot.slane %v4307, %v4317
        %4320 = vbcast.lane.b32.xlu0 %v4318, 256
        %v4321 = vpop.permute.xlu0 %4320
        %v4322 = vlaneseq
        %v4323 = vshrl.u32 %v4322, 7
        %v4324 = vsub.s32 2, %v4323
        %v4325 = vrot.slane %v4307, %v4324
        %4327 = vbcast.lane.b32.xlu0 %v4325, 256
        %v4328 = vpop.permute.xlu0 %4327
        %v4329 = vlaneseq
        %v4330 = vshrl.u32 %v4329, 7
        %v4331 = vsub.s32 3, %v4330
        %v4332 = vrot.slane %v4307, %v4331
        %4334 = vbcast.lane.b32.xlu0 %v4332, 256
        %v4335 = vpop.permute.xlu0 %4334
        %v4336 = vlaneseq
        %v4337 = vshrl.u32 %v4336, 7
        %v4338 = vsub.s32 4, %v4337
        %v4339 = vrot.slane %v4307, %v4338
        %4341 = vbcast.lane.b32.xlu0 %v4339, 256
        %v4342 = vpop.permute.xlu0 %4341
        %v4343 = vlaneseq
        %v4344 = vshrl.u32 %v4343, 7
        %v4345 = vsub.s32 5, %v4344
        %v4346 = vrot.slane %v4307, %v4345
        %4348 = vbcast.lane.b32.xlu0 %v4346, 256
        %v4349 = vpop.permute.xlu0 %4348
        %v4350 = vlaneseq
        %v4351 = vshrl.u32 %v4350, 7
        %v4352 = vsub.s32 6, %v4351
        %v4353 = vrot.slane %v4307, %v4352
        %4355 = vbcast.lane.b32.xlu0 %v4353, 256
        %v4356 = vpop.permute.xlu0 %4355
        %v4357 = vlaneseq
        %v4358 = vshrl.u32 %v4357, 7
        %v4359 = vsub.s32 7, %v4358
        %v4360 = vrot.slane %v4307, %v4359
        %4362 = vbcast.lane.b32.xlu0 %v4360, 256
        %v4363 = vpop.permute.xlu0 %4362
        %v4364 = vmul.f32 %v4314, %v3818
        %v4365 = vmul.f32 %v4321, %v3819
        %v4366 = vmul.f32 %v4328, %v3820
        %v4367 = vmul.f32 %v4335, %v3821
        %v4368 = vmul.f32 %v4342, %v3822
        %v4369 = vmul.f32 %v4349, %v3823
        %v4370 = vmul.f32 %v4356, %v3824
        %v4371 = vmul.f32 %v4363, %v3825
        %v4372 = vsel %vm1212, %v4364, 0.0
        %v4373 = vrot.slane %v4372, 4
        %v4374 = vadd.f32 %v4372, %v4373
        %v4375 = vrot.slane %v4374, 2
        %v4376 = vadd.f32 %v4374, %v4375
        %v4377 = vrot.slane %v4376, 1
        %v4378 = vadd.f32 %v4376, %v4377
        %v4379 = vsel %vm1212, %v4365, 0.0
        %v4380 = vrot.slane %v4379, 4
        %v4381 = vadd.f32 %v4379, %v4380
        %v4382 = vrot.slane %v4381, 2
        %v4383 = vadd.f32 %v4381, %v4382
        %v4384 = vrot.slane %v4383, 1
        %v4385 = vadd.f32 %v4383, %v4384
        %v4386 = vsel %vm1212, %v4366, 0.0
        %v4387 = vrot.slane %v4386, 4
        %v4388 = vadd.f32 %v4386, %v4387
        %v4389 = vrot.slane %v4388, 2
        %v4390 = vadd.f32 %v4388, %v4389
        %v4391 = vrot.slane %v4390, 1
        %v4392 = vadd.f32 %v4390, %v4391
        %v4393 = vsel %vm1212, %v4367, 0.0
        %v4394 = vrot.slane %v4393, 4
        %v4395 = vadd.f32 %v4393, %v4394
        %v4396 = vrot.slane %v4395, 2
        %v4397 = vadd.f32 %v4395, %v4396
        %v4398 = vrot.slane %v4397, 1
        %v4399 = vadd.f32 %v4397, %v4398
        %v4400 = vsel %vm1212, %v4368, 0.0
        %v4401 = vrot.slane %v4400, 4
        %v4402 = vadd.f32 %v4400, %v4401
        %v4403 = vrot.slane %v4402, 2
        %v4404 = vadd.f32 %v4402, %v4403
        %v4405 = vrot.slane %v4404, 1
        %v4406 = vadd.f32 %v4404, %v4405
        %v4407 = vsel %vm1212, %v4369, 0.0
        %v4408 = vrot.slane %v4407, 4
        %v4409 = vadd.f32 %v4407, %v4408
        %v4410 = vrot.slane %v4409, 2
        %v4411 = vadd.f32 %v4409, %v4410
        %v4412 = vrot.slane %v4411, 1
        %v4413 = vadd.f32 %v4411, %v4412
        %v4414 = vsel %vm1212, %v4370, 0.0
        %v4415 = vrot.slane %v4414, 4
        %v4416 = vadd.f32 %v4414, %v4415
        %v4417 = vrot.slane %v4416, 2
        %v4418 = vadd.f32 %v4416, %v4417
        %v4419 = vrot.slane %v4418, 1
        %v4420 = vadd.f32 %v4418, %v4419
        %v4421 = vsel %vm1212, %v4371, 0.0
        %v4422 = vrot.slane %v4421, 4
        %v4423 = vadd.f32 %v4421, %v4422
        %v4424 = vrot.slane %v4423, 2
        %v4425 = vadd.f32 %v4423, %v4424
        %v4426 = vrot.slane %v4425, 1
        %v4427 = vadd.f32 %v4425, %v4426
        %v4428 = vmul.f32 %v4378, %v4378
        %v4429 = vmul.f32 %v4385, %v4385
        %v4430 = vmul.f32 %v4392, %v4392
        %v4431 = vmul.f32 %v4399, %v4399
        %v4432 = vmul.f32 %v4406, %v4406
        %v4433 = vmul.f32 %v4413, %v4413
        %v4434 = vmul.f32 %v4420, %v4420
        %v4435 = vmul.f32 %v4427, %v4427
        %v4444 = vsel %vm2106, %v4429, %v4428
        %v4445 = vsel %vm2108, %v4430, %v4444
        %v4446 = vsel %vm2110, %v4431, %v4445
        %v4447 = vsel %vm2112, %v4432, %v4446
        %v4448 = vsel %vm2114, %v4433, %v4447
        %v4449 = vsel %vm2116, %v4434, %v4448
        %v4450 = vsel %vm2118, %v4435, %v4449
        %v4452 = vsel %vm1212, %v4450, 0.0
        %4453 = vadd.xlane.f32.xlu0 %v4452
        %v4454 = vpop.xlane.xlu0 %4453
        %v4455 = vadd.f32 %v4454, 1e-08
        %v4456 = vrsqrt.pop %v4455
        %v4458 = vrot.slane %v4456, 1
        %v4459 = vrot.slane %v4456, 2
        %v4460 = vrot.slane %v4456, 3
        %v4461 = vrot.slane %v4456, 4
        %v4462 = vrot.slane %v4456, 5
        %v4463 = vrot.slane %v4456, 6
        %v4464 = vrot.slane %v4456, 7
        %v4473 = vmul.f32 %v4378, %v4456
        %v4474 = vmul.f32 %v4385, %v4458
        %v4475 = vmul.f32 %v4392, %v4459
        %v4476 = vmul.f32 %v4399, %v4460
        %v4477 = vmul.f32 %v4406, %v4461
        %v4478 = vmul.f32 %v4413, %v4462
        %v4479 = vmul.f32 %v4420, %v4463
        %v4480 = vmul.f32 %v4427, %v4464
        %v4482 = vlaneseq
        %v4483 = vshrl.u32 %v4482, 7
        %v4484 = vsub.s32 0, %v4483
        %v4485 = vrot.slane %v2618, %v4484
        %v4487 = vmul.f32 %v4473, %v4485
        %v4488 = vmul.f32 %v4474, %v4485
        %v4489 = vmul.f32 %v4475, %v4485
        %v4490 = vmul.f32 %v4476, %v4485
        %v4491 = vmul.f32 %v4477, %v4485
        %v4492 = vmul.f32 %v4478, %v4485
        %v4493 = vmul.f32 %v4479, %v4485
        %v4494 = vmul.f32 %v4480, %v4485
        %v4503 = vrot.slane %v4488, 7
        %v4504 = vsel %vm2106, %v4503, %v4487
        %v4505 = vrot.slane %v4489, 6
        %v4506 = vsel %vm2108, %v4505, %v4504
        %v4507 = vrot.slane %v4490, 5
        %v4508 = vsel %vm2110, %v4507, %v4506
        %v4509 = vrot.slane %v4491, 4
        %v4510 = vsel %vm2112, %v4509, %v4508
        %v4511 = vrot.slane %v4492, 3
        %v4512 = vsel %vm2114, %v4511, %v4510
        %v4513 = vrot.slane %v4493, 2
        %v4514 = vsel %vm2116, %v4513, %v4512
        %v4515 = vrot.slane %v4494, 1
        %v4516 = vsel %vm2118, %v4515, %v4514
        %v4518 = vsel %vm1212, %v4516, 0.0
        %4519 = vadd.xlane.f32.xlu0 %v4518
        %v4520 = vpop.xlane.xlu0 %4519
        %s4521 = vtos %v2619
        %v4522 = vstv %s4521
        %v4523 = vadd.f32 %v4520, %v4522
        %v4524 = vsub.f32 0.0, %v4523
        %v4525 = vmul.f32 %v4524, 1.442695
        %v4526 = vpow.pop %v4525
        %v4527 = vadd.f32 %v4526, 1.0
        %v4528 = vrcp.pop %v4527
        %v4529 = vmul.f32 1.0, %v4528
        %v4531 = vlaneseq
        %v4532 = vshrl.u32 %v4531, 7
        %v4533 = vsub.s32 %v761, %v4532
        %v4534 = vrot.slane %v2602, %v4533
        %v4537 = vlaneseq
        %v4538 = vshrl.u32 %v4537, 7
        %v4539 = vsub.s32 %v761, %v4538
        %v4540 = vrot.slane %v4529, %v4539
        %vm4542 = vcmask 1040384
        %v4543 = vsel %vm4542, %v4534, %v4540
        %vm4544 = vcmask 58368
        %4545 = vst.msk [vmem:[%s536] sm:$0x3] %vm4544, %v4543
        %s4546 = sand.u32 %s349, 1
        %s4547 = scalar_lea.sflag [#allocation8], %s4546
        %s4548 = sand.u32 %s349, 1
        %s4549 = smul.addr %s4548, 2
        %s4550 = scalar_lea.vmem [#allocation12], %s4549
        // Predicated region
        $region85: #{tpu_custom_call.1} parent=71 // pred_check
          %p4551 = pneg %p359
        $region86: #{tpu_custom_call.1} parent=71 // pred_check_branch
          %4553 = sbr.rel (%p4551) target = $region88
        $region87: #{tpu_custom_call.1} parent=71 // pred_region
          %s4555 = ssub.s32 32, 32
          %4556 = vsyncadd %s4547, %s4555
          %s4557 = smul.addr %s48, 2
          %s4558 = sadd.s32 %s49, %s4557
          %s4559 = smul.addr %s4558, 32
          %s4560 = scalar_lea.hbm %s14, %s4559
          %s4562 = sshll.u32 %s4550, 4
          %s4563 = int_to_ptr.vmem [resolvable:$true] %s4562
          %4565 = dma.vmem_to_hbm [thread:$0]  %s4563, 32, %s4560, %s4547
        $region88: #{tpu_custom_call.1} parent=71 // pred_fallthru
          _
      $region72: #{tpu_custom_call.1} parent=5 // pred_fallthru
        _
      %p4566 = scmp.le.s32.totalorder 2, %s39
      // Predicated region
      $region89: #{tpu_custom_call.1} parent=5 // pred_check
        %p4567 = pneg %p4566
      $region90: #{tpu_custom_call.1} parent=5 // pred_check_branch
        %4569 = sbr.rel (%p4567) target = $region92
      $region91: #{tpu_custom_call.1} parent=5 // pred_region
        %s4570 = ssub.s32 %s39, 2
        // Predicated region
        $region93: #{tpu_custom_call.1} parent=91 // pred_check
          %p4571 = pneg %p365
        $region94: #{tpu_custom_call.1} parent=91 // pred_check_branch
          %4573 = sbr.rel (%p4571) target = $region96
        $region95: #{tpu_custom_call.1} parent=91 // pred_region
          %s4574 = sand.u32 %s350, 1
          %s4575 = scalar_lea.sflag [#allocation8], %s4574
          %s4576 = sand.u32 %s350, 1
          %s4577 = smul.addr %s4576, 2
          %s4578 = scalar_lea.vmem [#allocation12], %s4577
          %4579 = dma.done %s4575, 32
        $region96: #{tpu_custom_call.1} parent=91 // pred_fallthru
          _
      $region92: #{tpu_custom_call.1} parent=5 // pred_fallthru
        _
    $region6: #{tpu_custom_call.1} parent=1 // loop_footer
      %s43 = sadd.s32 1, %s39
    $region7: #{tpu_custom_call.1} parent=1 // loop_footer_branch
      %38 = sbr.rel target = $region3
    $region8: #{tpu_custom_call.1} parent=1 // loop_exit
      _
    %4580 = vsyncpa [#allocation7], 1
    %s4581 = scalar_lea.sflag [#allocation7], 1
    %4582 = vsyncpa %s4581, 1
    %4583 = vsyncpa [#allocation10], 1
    %s4584 = scalar_lea.sflag [#allocation10], 1
    %4585 = vsyncpa %s4584, 1
    %4586 = vsyncpa [#allocation8], 1
    %s4587 = scalar_lea.sflag [#allocation8], 1
    %4588 = vsyncpa %s4587, 1

</llo_original>
